<compile_context>
chip_gen: v7x
topology: tpu7x:2x2x1
jax: 0.10.0
libtpu: 0.0.40
codegen_flags: <defaults>
</compile_context>

<pallas_src>
import functools

import jax
import jax.numpy as jnp
import numpy as np
from jax.experimental import pallas as pl
from jax.experimental.pallas import tpu as pltpu

EPS = 1e-5

# ---------------------------------------------------------------------------
# Static architecture constants of RFB_E (fixed by the PyTorch module).
# ---------------------------------------------------------------------------
BRANCH_K = (3, 5, 7)   # (1,k)/(k,1) kernel extents of branches 1..3
BRANCH_D = (3, 5, 7)   # dilation of the trailing 3x3 conv of branches 1..3

ROW_TAPS = tuple((0, dj) for dj in range(-3, 4))   # (1,k) convs, batched
COL_TAPS = tuple((di, 0) for di in range(-3, 4))   # (k,1) convs, batched


def _dilated_union_taps():
    taps = []
    for d in BRANCH_D:
        for di in (-d, 0, d):
            for dj in (-d, 0, d):
                if (di, dj) not in taps:
                    taps.append((di, dj))
    return tuple(taps)


DIL_TAPS = _dilated_union_taps()                                      # 25 taps
CAT_TAPS = tuple((di, dj) for di in (-1, 0, 1) for dj in (-1, 0, 1))  # 9 taps

ALL_TAPS = ROW_TAPS + COL_TAPS + DIL_TAPS + CAT_TAPS
MB_ROW = 0
MB_COL = MB_ROW + len(ROW_TAPS)
MB_DIL = MB_COL + len(COL_TAPS)
MB_CAT = MB_DIL + len(DIL_TAPS)
N_TAPS = MB_CAT + len(CAT_TAPS)                                       # 48


def _rup(x, m):
    return ((x + m - 1) // m) * m


# ---------------------------------------------------------------------------
# Fused Pallas kernel: the entire E.forward for one image per grid step.
# Layout: channel-major, flat pixel index on lanes (lane-dense).
# ---------------------------------------------------------------------------
def e_fused_kernel(x_ref, mask_ref,
                   wh_ref, bh_ref,
                   wrow_ref, brow_ref,
                   wcol_ref, bcol_ref,
                   wdil_ref, bdil_ref,
                   wcat_ref, bcat_ref,
                   o_ref,
                   slab_ref,
                   *, W, C, Rp):
    C1P = _rup(C, 8)          # padded single-branch channel group
    C3P = _rup(3 * C, 8)      # padded 3-branch channel group
    CATG = C1P + C3P          # conv_cat slab group height per tap

    def shifted(v, off, mrow):
        """v[:, (p+off) % Rp], with out-of-image neighbours zeroed by mask."""
        if off:
            v = pltpu.roll(v, shift=(-off) % Rp, axis=1)   # lane roll (XLU)
        if mrow is not None:
            v = v * mask_ref[mrow:mrow + 1, :]             # hoisted 0/1 mask
        return v

    # --- stage 1: conv_up (1x1+bias) folded into all five 1x1 heads --------
    head = (jnp.dot(wh_ref[...], x_ref[...],
                    preferred_element_type=jnp.float32) + bh_ref[...])
    x0 = head[0:C1P, :]                         # branch0 output (pad rows 0)
    a = head[C1P:C1P + C3P, :]                  # [branch1|branch2|branch3]
    res = head[C1P + C3P:C1P + C3P + C1P, :]    # conv_res(x_up)

    # --- stages 2-4: batched branch convs, one big-K matmul per stage ------
    def branch_stage(a_in, taps, mbase, w_ref, b_ref):
        for t, (di, dj) in enumerate(taps):
            off = di * W + dj
            mrow = None if (di == 0 and dj == 0) else mbase + t
            slab_ref[t * C3P:(t + 1) * C3P, :] = shifted(a_in, off, mrow)
        k = len(taps) * C3P
        return (jnp.dot(w_ref[...], slab_ref[0:k, :],
                        preferred_element_type=jnp.float32) + b_ref[...])

    a = branch_stage(a, ROW_TAPS, MB_ROW, wrow_ref, brow_ref)  # (1,3/5/7)
    a = branch_stage(a, COL_TAPS, MB_COL, wcol_ref, bcol_ref)  # (3/5/7,1)
    a = branch_stage(a, DIL_TAPS, MB_DIL, wdil_ref, bdil_ref)  # dilated 3x3

    # --- stage 5: conv_cat over [x0 | x1 x2 x3], + conv_res, final ReLU ----
    for t, (di, dj) in enumerate(CAT_TAPS):
        off = di * W + dj
        mrow = None if (di == 0 and dj == 0) else MB_CAT + t
        slab_ref[t * CATG:t * CATG + C1P, :] = shifted(x0, off, mrow)
        slab_ref[t * CATG + C1P:(t + 1) * CATG, :] = shifted(a, off, mrow)
    k = len(CAT_TAPS) * CATG
    cat = (jnp.dot(wcat_ref[...], slab_ref[0:k, :],
                   preferred_element_type=jnp.float32) + bcat_ref[...])
    o_ref[...] = jnp.maximum(cat + res, 0.0)


# ---------------------------------------------------------------------------
# pallas_call wrapper
# ---------------------------------------------------------------------------
def _const_spec(shape):
    nd = len(shape)
    return pl.BlockSpec(shape, lambda i, _nd=nd: (0,) * _nd)


def e_pallas(xt, masks, ws, *, N, W, C, Rp):
    C1P = _rup(C, 8)
    C3P = _rup(3 * C, 8)
    slab_rows = max(len(ROW_TAPS) * C3P,
                    len(DIL_TAPS) * C3P,
                    len(CAT_TAPS) * (C1P + C3P))

    kernel = functools.partial(e_fused_kernel, W=W, C=C, Rp=Rp)

    in_specs = ([pl.BlockSpec((C1P, Rp), lambda i: (0, i)),
                 _const_spec(tuple(masks.shape))]
                + [_const_spec(tuple(w.shape)) for w in ws])

    return pl.pallas_call(
        kernel,
        out_shape=jax.ShapeDtypeStruct((C1P, N * Rp), jnp.float32),
        grid=(N,),
        in_specs=in_specs,
        out_specs=pl.BlockSpec((C1P, Rp), lambda i: (0, i)),
        scratch_shapes=[pltpu.VMEM((slab_rows, Rp), jnp.float32)],
        compiler_params=pltpu.CompilerParams(
            dimension_semantics=("parallel",),
            vmem_limit_bytes=32 * 1024 * 1024),
    )(xt, masks, *ws)


# ---------------------------------------------------------------------------
# Host-side (traced) weight preparation: BN folding, conv_up folding,
# block-diagonal branch batching, per-stage big-K weight stacks (transposed
# orientation: weights are (C_out, K) so the kernel computes W @ X).
# ---------------------------------------------------------------------------
def _bn_fold(p):
    s = p["gamma"] / jnp.sqrt(p["var"] + EPS)
    return s, p["beta"] - p["mean"] * s


def _tap_oc_ic(w, kh, kw, s):
    # (Cout, Cin, KH, KW) tap (kh, kw) -> (Cout, Cin), BN scale folded in.
    return w[:, :, kh, kw] * s[:, None]


def _pad2(m, rows, cols):
    r, c = m.shape
    return jnp.pad(m, ((0, rows - r), (0, cols - c)))


def _pad_col(v, rows):
    return jnp.pad(v, (0, rows - v.shape[0]))[:, None]


def build_kernel_weights(params, C):
    C1P = _rup(C, 8)
    C3P = _rup(3 * C, 8)
    CATG = C1P + C3P

    # ---- fold conv_up (1x1 + bias) into every 1x1 conv that consumes it --
    Au = params["up_w"][:, :, 0, 0]                    # (C, C)  [out, in]
    bu = params["up_b"]                                # (C,)

    def fold_head(p):
        s, t = _bn_fold(p)
        A = _tap_oc_ic(p["w"], 0, 0, s)                # (C, C)
        return A @ Au, A @ bu + t

    m0, c0 = fold_head(params["b0"][0])
    mb, cb = zip(*[fold_head(params[b][0]) for b in ("b1", "b2", "b3")])
    mr, cr = fold_head(params["conv_res"])

    w_head = jnp.concatenate([
        _pad2(m0, C1P, C1P),
        _pad2(jnp.concatenate(mb, axis=0), C3P, C1P),
        _pad2(mr, C1P, C1P)], axis=0)                  # (2*C1P+C3P, C1P)
    b_head = jnp.concatenate([
        _pad_col(c0, C1P),
        _pad_col(jnp.concatenate(cb), C3P),
        _pad_col(cr, C1P)], axis=0)                    # (2*C1P+C3P, 1)

    # ---- batched branch stages: block-diagonal per tap, stacked along K ---
    def branch_stage_w(idx, taps, tap_entry):
        layers = [params[b][idx] for b in ("b1", "b2", "b3")]
        folded = [_bn_fold(p) for p in layers]
        cols = []
        for (di, dj) in taps:
            A = jnp.zeros((C3P, C3P), jnp.float32)
            for b, (p, (s, _)) in enumerate(zip(layers, folded)):
                e = tap_entry(b, di, dj)
                if e is not None:
                    blk = _tap_oc_ic(p["w"], e[0], e[1], s)
                    A = A.at[b * C:(b + 1) * C, b * C:(b + 1) * C].set(blk)
            cols.append(A)
        w = jnp.concatenate(cols, axis=1)              # (C3P, T*C3P)
        bias = _pad_col(jnp.concatenate([t for _, t in folded]), C3P)
        return w, bias

    def row_entry(b, di, dj):
        half = BRANCH_K[b] // 2
        return (0, dj + half) if abs(dj) <= half else None

    def col_entry(b, di, dj):
        half = BRANCH_K[b] // 2
        return (di + half, 0) if abs(di) <= half else None

    def dil_entry(b, di, dj):
        d = BRANCH_D[b]
        if di in (-d, 0, d) and dj in (-d, 0, d):
            return (di // d + 1, dj // d + 1)
        return None

    w_row, b_row = branch_stage_w(1, ROW_TAPS, row_entry)
    w_col, b_col = branch_stage_w(2, COL_TAPS, col_entry)
    w_dil, b_dil = branch_stage_w(3, DIL_TAPS, dil_entry)

    # ---- conv_cat (3x3 over cat(x0,x1,x2,x3)), split per input group ------
    s_cat, t_cat = _bn_fold(params["conv_cat"])
    wcat = params["conv_cat"]["w"]                     # (C, 4C, 3, 3)
    cols = []
    for (di, dj) in CAT_TAPS:
        A = _tap_oc_ic(wcat, di + 1, dj + 1, s_cat)    # (C, 4C)
        G = jnp.zeros((C1P, CATG), jnp.float32)
        G = G.at[:C, 0:C].set(A[:, 0:C])               # x0 channels
        G = G.at[:C, C1P:C1P + 3 * C].set(A[:, C:4 * C])  # x1|x2|x3 channels
        cols.append(G)
    w_cat = jnp.concatenate(cols, axis=1)              # (C1P, 9*CATG)
    b_cat = _pad_col(t_cat, C1P)

    return (w_head, b_head, w_row, b_row, w_col, b_col,
            w_dil, b_dil, w_cat, b_cat)


def build_masks(H, W, Rp):
    """Per-tap border-validity masks (host precomputed, static geometry)."""
    R = H * W
    p = np.arange(Rp)
    h = p // W
    w = p % W
    rows = []
    for (di, dj) in ALL_TAPS:
        ok = ((h + di >= 0) & (h + di < H) & (w + dj >= 0) & (w + dj < W)
              & (p < R))
        rows.append(ok.astype(np.float32))
    return np.stack(rows, axis=0)                      # (N_TAPS, Rp)


# ---------------------------------------------------------------------------
# Full forward pass of module E (single fused Pallas kernel on the hot path)
# ---------------------------------------------------------------------------
@jax.jit
def e_forward(x_nchw, params):
    N, C, H, W = x_nchw.shape
    R = H * W
    Rp = _rup(R, 128)          # lane-dense pixel axis
    C1P = _rup(C, 8)

    # channel-major layout with pixels on lanes: (C1P, N*Rp), zero padded.
    xt = jnp.transpose(x_nchw, (1, 0, 2, 3)).reshape(C, N, R)
    xt = jnp.pad(xt.astype(jnp.float32),
                 ((0, C1P - C), (0, 0), (0, Rp - R))).reshape(C1P, N * Rp)

    ws = build_kernel_weights(params, C)
    masks = jnp.asarray(build_masks(H, W, Rp))

    out = e_pallas(xt, masks, ws, N=N, W=W, C=C, Rp=Rp)
    out = out.reshape(C1P, N, Rp)[:C, :, :R].reshape(C, N, H, W)
    return jnp.transpose(out, (1, 0, 2, 3))            # -> NCHW


# ---------------------------------------------------------------------------
# Parameter construction (deterministic, synthetic; all conv geometry static)
# ---------------------------------------------------------------------------
def make_basic_conv(key, cin, cout, kh, kw):
    k1, k2, k3, k4, k5 = jax.random.split(key, 5)
    fan_in = cin * kh * kw
    return {
        "w": jax.random.normal(k1, (cout, cin, kh, kw), jnp.float32)
        / np.sqrt(fan_in),
        "gamma": 1.0 + 0.1 * jax.random.normal(k2, (cout,), jnp.float32),
        "beta": 0.1 * jax.random.normal(k3, (cout,), jnp.float32),
        "mean": 0.05 * jax.random.normal(k4, (cout,), jnp.float32),
        "var": 1.0 + 0.1 * jax.random.uniform(k5, (cout,), jnp.float32),
    }


def make_params(key, c):
    keys = iter(jax.random.split(key, 32))
    return {
        "up_w": jax.random.normal(next(keys), (c, c, 1, 1), jnp.float32)
        / np.sqrt(c),
        "up_b": 0.1 * jax.random.normal(next(keys), (c,), jnp.float32),
        "b0": [make_basic_conv(next(keys), c, c, 1, 1)],
        "b1": [make_basic_conv(next(keys), c, c, 1, 1),
               make_basic_conv(next(keys), c, c, 1, 3),
               make_basic_conv(next(keys), c, c, 3, 1),
               make_basic_conv(next(keys), c, c, 3, 3)],
        "b2": [make_basic_conv(next(keys), c, c, 1, 1),
               make_basic_conv(next(keys), c, c, 1, 5),
               make_basic_conv(next(keys), c, c, 5, 1),
               make_basic_conv(next(keys), c, c, 3, 3)],
        "b3": [make_basic_conv(next(keys), c, c, 1, 1),
               make_basic_conv(next(keys), c, c, 1, 7),
               make_basic_conv(next(keys), c, c, 7, 1),
               make_basic_conv(next(keys), c, c, 3, 3)],
        "conv_cat": make_basic_conv(next(keys), 4 * c, c, 3, 3),
        "conv_res": make_basic_conv(next(keys), c, c, 1, 1),
    }


# ---------------------------------------------------------------------------
# Pure-JAX reference (lax.conv) for the correctness check
# ---------------------------------------------------------------------------
def ref_bconv(x_nhwc, p, padding, dilation):
    w_hwio = jnp.transpose(p["w"], (2, 3, 1, 0))
    y = jax.lax.conv_general_dilated(
        x_nhwc, w_hwio, window_strides=(1, 1),
        padding=((padding[0], padding[0]), (padding[1], padding[1])),
        rhs_dilation=dilation,
        dimension_numbers=("NHWC", "HWIO", "NHWC"))
    s = p["gamma"] / jnp.sqrt(p["var"] + EPS)
    return y * s + (p["beta"] - p["mean"] * s)


def ref_forward(x_nchw, params):
    x = jnp.transpose(x_nchw, (0, 2, 3, 1)).astype(jnp.float32)
    wu = jnp.transpose(params["up_w"], (2, 3, 1, 0))
    x_up = jax.lax.conv_general_dilated(
        x, wu, (1, 1), ((0, 0), (0, 0)),
        dimension_numbers=("NHWC", "HWIO", "NHWC")) + params["up_b"]

    def branch(layers, pads, dils):
        y = x_up
        for p, pd, dl in zip(layers, pads, dils):
            y = ref_bconv(y, p, pd, dl)
        return y

    x0 = ref_bconv(x_up, params["b0"][0], (0, 0), (1, 1))
    x1 = branch(params["b1"], [(0, 0), (0, 1), (1, 0), (3, 3)],
                [(1, 1), (1, 1), (1, 1), (3, 3)])
    x2 = branch(params["b2"], [(0, 0), (0, 2), (2, 0), (5, 5)],
                [(1, 1), (1, 1), (1, 1), (5, 5)])
    x3 = branch(params["b3"], [(0, 0), (0, 3), (3, 0), (7, 7)],
                [(1, 1), (1, 1), (1, 1), (7, 7)])
    x_cat = ref_bconv(jnp.concatenate([x0, x1, x2, x3], -1),
                      params["conv_cat"], (1, 1), (1, 1))
    edge = jnp.maximum(
        x_cat + ref_bconv(x_up, params["conv_res"], (0, 0), (1, 1)), 0.0)
    return jnp.transpose(edge, (0, 3, 1, 2))


# ---------------------------------------------------------------------------
if __name__ == "__main__":
    key = jax.random.PRNGKey(0)
    k_x, k_p = jax.random.split(key)

    N, C, H, W = 2, 4, 16, 16          # small shapes consistent with E(in_channels=4)
    x = jax.random.normal(k_x, (N, C, H, W), jnp.float32)
    params = make_params(k_p, C)

    out = jax.block_until_ready(e_forward(x, params))
    ref = jax.block_until_ready(ref_forward(x, params))

    np.testing.assert_allclose(np.asarray(out), np.asarray(ref),
                               rtol=1e-3, atol=1e-3)
    assert out.shape == (N, C, H, W)

    print("KERNEL_OK")
</pallas_src>

<mosaic_0001>
module attributes {stable_mosaic.version = 11 : i64} {
  func.func @e_fused_kernel(%arg0: i32, %arg1: memref<8x256xf32, #tpu.memory_space<vmem>>, %arg2: memref<48x256xf32, #tpu.memory_space<vmem>>, %arg3: memref<32x8xf32, #tpu.memory_space<vmem>>, %arg4: memref<32x1xf32, #tpu.memory_space<vmem>>, %arg5: memref<16x112xf32, #tpu.memory_space<vmem>>, %arg6: memref<16x1xf32, #tpu.memory_space<vmem>>, %arg7: memref<16x112xf32, #tpu.memory_space<vmem>>, %arg8: memref<16x1xf32, #tpu.memory_space<vmem>>, %arg9: memref<16x400xf32, #tpu.memory_space<vmem>>, %arg10: memref<16x1xf32, #tpu.memory_space<vmem>>, %arg11: memref<8x216xf32, #tpu.memory_space<vmem>>, %arg12: memref<8x1xf32, #tpu.memory_space<vmem>>, %arg13: memref<8x256xf32, #tpu.memory_space<vmem>>, %arg14: memref<400x256xf32, #tpu.memory_space<vmem>>) attributes {dimension_semantics = [#tpu.dimension_semantics<parallel>], iteration_bounds = array<i64: 2>, scalar_prefetch = 0 : i64, scratch_operands = 1 : i64, tpu.core_type = #tpu.core_type<tc>, window_params = [{transform_indices = @transform_0, window_bounds = array<i64: 8, 256>}, {pipeline_mode = #tpu.pipeline_mode<synchronous>, transform_indices = @transform_1, window_bounds = array<i64: 48, 256>}, {pipeline_mode = #tpu.pipeline_mode<synchronous>, transform_indices = @transform_2, window_bounds = array<i64: 32, 8>}, {pipeline_mode = #tpu.pipeline_mode<synchronous>, transform_indices = @transform_3, window_bounds = array<i64: 32, 1>}, {pipeline_mode = #tpu.pipeline_mode<synchronous>, transform_indices = @transform_4, window_bounds = array<i64: 16, 112>}, {pipeline_mode = #tpu.pipeline_mode<synchronous>, transform_indices = @transform_5, window_bounds = array<i64: 16, 1>}, {pipeline_mode = #tpu.pipeline_mode<synchronous>, transform_indices = @transform_6, window_bounds = array<i64: 16, 112>}, {pipeline_mode = #tpu.pipeline_mode<synchronous>, transform_indices = @transform_7, window_bounds = array<i64: 16, 1>}, {pipeline_mode = #tpu.pipeline_mode<synchronous>, transform_indices = @transform_8, window_bounds = array<i64: 16, 400>}, {pipeline_mode = #tpu.pipeline_mode<synchronous>, transform_indices = @transform_9, window_bounds = array<i64: 16, 1>}, {pipeline_mode = #tpu.pipeline_mode<synchronous>, transform_indices = @transform_10, window_bounds = array<i64: 8, 216>}, {pipeline_mode = #tpu.pipeline_mode<synchronous>, transform_indices = @transform_11, window_bounds = array<i64: 8, 1>}, {transform_indices = @transform_12, window_bounds = array<i64: 8, 256>}]} {
    %c0 = arith.constant 0 : index
    %c0_0 = arith.constant 0 : index
    %0 = vector.load %arg3[%c0, %c0_0] : memref<32x8xf32, #tpu.memory_space<vmem>>, vector<32x8xf32>
    %c0_1 = arith.constant 0 : index
    %c0_2 = arith.constant 0 : index
    %1 = vector.load %arg1[%c0_1, %c0_2] : memref<8x256xf32, #tpu.memory_space<vmem>>, vector<8x256xf32>
    %cst = arith.constant dense<0.000000e+00> : vector<32x256xf32>
    %2 = tpu.matmul %0, %1, %cst {dimension_numbers = #tpu.dot_dimension_numbers<[1], [0], [0], [1], [0, 0, 1, 1], [], []>} : vector<32x8xf32>, vector<8x256xf32>, vector<32x256xf32> -> vector<32x256xf32>
    %c0_3 = arith.constant 0 : index
    %c0_4 = arith.constant 0 : index
    %3 = vector.load %arg4[%c0_3, %c0_4] : memref<32x1xf32, #tpu.memory_space<vmem>>, vector<32x1xf32>
    %4 = vector.broadcast %3 : vector<32x1xf32> to vector<32x256xf32>
    %5 = arith.addf %2, %4 : vector<32x256xf32>
    %6 = vector.extract_strided_slice %5 {offsets = [0, 0], sizes = [8, 256], strides = [1, 1]} : vector<32x256xf32> to vector<8x256xf32>
    %7 = vector.extract_strided_slice %5 {offsets = [8, 0], sizes = [16, 256], strides = [1, 1]} : vector<32x256xf32> to vector<16x256xf32>
    %8 = vector.extract_strided_slice %5 {offsets = [24, 0], sizes = [8, 256], strides = [1, 1]} : vector<32x256xf32> to vector<8x256xf32>
    %c3_i32 = arith.constant 3 : i32
    %9 = tpu.dynamic_rotate %7 by %c3_i32 dim 1 : vector<16x256xf32>, i32 -> vector<16x256xf32>
    %c0_5 = arith.constant 0 : index
    %c0_6 = arith.constant 0 : index
    %10 = vector.load %arg2[%c0_5, %c0_6] : memref<48x256xf32, #tpu.memory_space<vmem>>, vector<1x256xf32>
    %11 = vector.broadcast %10 : vector<1x256xf32> to vector<16x256xf32>
    %12 = arith.mulf %9, %11 : vector<16x256xf32>
    %c0_7 = arith.constant 0 : index
    %c0_8 = arith.constant 0 : index
    %13 = vector.load %arg14[%c0_7, %c0_8] : memref<400x256xf32, #tpu.memory_space<vmem>>, vector<16x256xf32>
    tpu.vector_store %arg14[%c0_7, %c0_8], %12 {strides = array<i32>} : memref<400x256xf32, #tpu.memory_space<vmem>>, vector<16x256xf32>,
    %c2_i32 = arith.constant 2 : i32
    %14 = tpu.dynamic_rotate %7 by %c2_i32 dim 1 : vector<16x256xf32>, i32 -> vector<16x256xf32>
    %c1 = arith.constant 1 : index
    %c0_9 = arith.constant 0 : index
    %15 = vector.load %arg2[%c1, %c0_9] : memref<48x256xf32, #tpu.memory_space<vmem>>, vector<1x256xf32>
    %16 = vector.broadcast %15 : vector<1x256xf32> to vector<16x256xf32>
    %17 = arith.mulf %14, %16 : vector<16x256xf32>
    %c16 = arith.constant 16 : index
    %c0_10 = arith.constant 0 : index
    %18 = vector.load %arg14[%c16, %c0_10] : memref<400x256xf32, #tpu.memory_space<vmem>>, vector<16x256xf32>
    tpu.vector_store %arg14[%c16, %c0_10], %17 {strides = array<i32>} : memref<400x256xf32, #tpu.memory_space<vmem>>, vector<16x256xf32>,
    %c1_i32 = arith.constant 1 : i32
    %19 = tpu.dynamic_rotate %7 by %c1_i32 dim 1 : vector<16x256xf32>, i32 -> vector<16x256xf32>
    %c2 = arith.constant 2 : index
    %c0_11 = arith.constant 0 : index
    %20 = vector.load %arg2[%c2, %c0_11] : memref<48x256xf32, #tpu.memory_space<vmem>>, vector<1x256xf32>
    %21 = vector.broadcast %20 : vector<1x256xf32> to vector<16x256xf32>
    %22 = arith.mulf %19, %21 : vector<16x256xf32>
    %c32 = arith.constant 32 : index
    %c0_12 = arith.constant 0 : index
    %23 = vector.load %arg14[%c32, %c0_12] : memref<400x256xf32, #tpu.memory_space<vmem>>, vector<16x256xf32>
    tpu.vector_store %arg14[%c32, %c0_12], %22 {strides = array<i32>} : memref<400x256xf32, #tpu.memory_space<vmem>>, vector<16x256xf32>,
    %c48 = arith.constant 48 : index
    %c0_13 = arith.constant 0 : index
    %24 = vector.load %arg14[%c48, %c0_13] : memref<400x256xf32, #tpu.memory_space<vmem>>, vector<16x256xf32>
    tpu.vector_store %arg14[%c48, %c0_13], %7 {strides = array<i32>} : memref<400x256xf32, #tpu.memory_space<vmem>>, vector<16x256xf32>,
    %c255_i32 = arith.constant 255 : i32
    %25 = tpu.dynamic_rotate %7 by %c255_i32 dim 1 : vector<16x256xf32>, i32 -> vector<16x256xf32>
    %c4 = arith.constant 4 : index
    %c0_14 = arith.constant 0 : index
    %26 = vector.load %arg2[%c4, %c0_14] : memref<48x256xf32, #tpu.memory_space<vmem>>, vector<1x256xf32>
    %27 = vector.broadcast %26 : vector<1x256xf32> to vector<16x256xf32>
    %28 = arith.mulf %25, %27 : vector<16x256xf32>
    %c64 = arith.constant 64 : index
    %c0_15 = arith.constant 0 : index
    %29 = vector.load %arg14[%c64, %c0_15] : memref<400x256xf32, #tpu.memory_space<vmem>>, vector<16x256xf32>
    tpu.vector_store %arg14[%c64, %c0_15], %28 {strides = array<i32>} : memref<400x256xf32, #tpu.memory_space<vmem>>, vector<16x256xf32>,
    %c254_i32 = arith.constant 254 : i32
    %30 = tpu.dynamic_rotate %7 by %c254_i32 dim 1 : vector<16x256xf32>, i32 -> vector<16x256xf32>
    %c5 = arith.constant 5 : index
    %c0_16 = arith.constant 0 : index
    %31 = vector.load %arg2[%c5, %c0_16] : memref<48x256xf32, #tpu.memory_space<vmem>>, vector<1x256xf32>
    %32 = vector.broadcast %31 : vector<1x256xf32> to vector<16x256xf32>
    %33 = arith.mulf %30, %32 : vector<16x256xf32>
    %c80 = arith.constant 80 : index
    %c0_17 = arith.constant 0 : index
    %34 = vector.load %arg14[%c80, %c0_17] : memref<400x256xf32, #tpu.memory_space<vmem>>, vector<16x256xf32>
    tpu.vector_store %arg14[%c80, %c0_17], %33 {strides = array<i32>} : memref<400x256xf32, #tpu.memory_space<vmem>>, vector<16x256xf32>,
    %c253_i32 = arith.constant 253 : i32
    %35 = tpu.dynamic_rotate %7 by %c253_i32 dim 1 : vector<16x256xf32>, i32 -> vector<16x256xf32>
    %c6 = arith.constant 6 : index
    %c0_18 = arith.constant 0 : index
    %36 = vector.load %arg2[%c6, %c0_18] : memref<48x256xf32, #tpu.memory_space<vmem>>, vector<1x256xf32>
    %37 = vector.broadcast %36 : vector<1x256xf32> to vector<16x256xf32>
    %38 = arith.mulf %35, %37 : vector<16x256xf32>
    %c96 = arith.constant 96 : index
    %c0_19 = arith.constant 0 : index
    %39 = vector.load %arg14[%c96, %c0_19] : memref<400x256xf32, #tpu.memory_space<vmem>>, vector<16x256xf32>
    tpu.vector_store %arg14[%c96, %c0_19], %38 {strides = array<i32>} : memref<400x256xf32, #tpu.memory_space<vmem>>, vector<16x256xf32>,
    %c0_20 = arith.constant 0 : index
    %c0_21 = arith.constant 0 : index
    %40 = vector.load %arg5[%c0_20, %c0_21] : memref<16x112xf32, #tpu.memory_space<vmem>>, vector<16x112xf32>
    %c0_22 = arith.constant 0 : index
    %c0_23 = arith.constant 0 : index
    %41 = vector.load %arg14[%c0_22, %c0_23] : memref<400x256xf32, #tpu.memory_space<vmem>>, vector<112x256xf32>
    %cst_24 = arith.constant dense<0.000000e+00> : vector<16x256xf32>
    %42 = tpu.matmul %40, %41, %cst_24 {dimension_numbers = #tpu.dot_dimension_numbers<[1], [0], [0], [1], [0, 0, 1, 1], [], []>} : vector<16x112xf32>, vector<112x256xf32>, vector<16x256xf32> -> vector<16x256xf32>
    %c0_25 = arith.constant 0 : index
    %c0_26 = arith.constant 0 : index
    %43 = vector.load %arg6[%c0_25, %c0_26] : memref<16x1xf32, #tpu.memory_space<vmem>>, vector<16x1xf32>
    %44 = vector.broadcast %43 : vector<16x1xf32> to vector<16x256xf32>
    %45 = arith.addf %42, %44 : vector<16x256xf32>
    %c48_i32 = arith.constant 48 : i32
    %46 = tpu.dynamic_rotate %45 by %c48_i32 dim 1 : vector<16x256xf32>, i32 -> vector<16x256xf32>
    %c7 = arith.constant 7 : index
    %c0_27 = arith.constant 0 : index
    %47 = vector.load %arg2[%c7, %c0_27] : memref<48x256xf32, #tpu.memory_space<vmem>>, vector<1x256xf32>
    %48 = vector.broadcast %47 : vector<1x256xf32> to vector<16x256xf32>
    %49 = arith.mulf %46, %48 : vector<16x256xf32>
    %c0_28 = arith.constant 0 : index
    %c0_29 = arith.constant 0 : index
    %50 = vector.load %arg14[%c0_28, %c0_29] : memref<400x256xf32, #tpu.memory_space<vmem>>, vector<16x256xf32>
    tpu.vector_store %arg14[%c0_28, %c0_29], %49 {strides = array<i32>} : memref<400x256xf32, #tpu.memory_space<vmem>>, vector<16x256xf32>,
    %c32_i32 = arith.constant 32 : i32
    %51 = tpu.dynamic_rotate %45 by %c32_i32 dim 1 : vector<16x256xf32>, i32 -> vector<16x256xf32>
    %c8 = arith.constant 8 : index
    %c0_30 = arith.constant 0 : index
    %52 = vector.load %arg2[%c8, %c0_30] : memref<48x256xf32, #tpu.memory_space<vmem>>, vector<1x256xf32>
    %53 = vector.broadcast %52 : vector<1x256xf32> to vector<16x256xf32>
    %54 = arith.mulf %51, %53 : vector<16x256xf32>
    %c16_31 = arith.constant 16 : index
    %c0_32 = arith.constant 0 : index
    %55 = vector.load %arg14[%c16_31, %c0_32] : memref<400x256xf32, #tpu.memory_space<vmem>>, vector<16x256xf32>
    tpu.vector_store %arg14[%c16_31, %c0_32], %54 {strides = array<i32>} : memref<400x256xf32, #tpu.memory_space<vmem>>, vector<16x256xf32>,
    %c16_i32 = arith.constant 16 : i32
    %56 = tpu.dynamic_rotate %45 by %c16_i32 dim 1 : vector<16x256xf32>, i32 -> vector<16x256xf32>
    %c9 = arith.constant 9 : index
    %c0_33 = arith.constant 0 : index
    %57 = vector.load %arg2[%c9, %c0_33] : memref<48x256xf32, #tpu.memory_space<vmem>>, vector<1x256xf32>
    %58 = vector.broadcast %57 : vector<1x256xf32> to vector<16x256xf32>
    %59 = arith.mulf %56, %58 : vector<16x256xf32>
    %c32_34 = arith.constant 32 : index
    %c0_35 = arith.constant 0 : index
    %60 = vector.load %arg14[%c32_34, %c0_35] : memref<400x256xf32, #tpu.memory_space<vmem>>, vector<16x256xf32>
    tpu.vector_store %arg14[%c32_34, %c0_35], %59 {strides = array<i32>} : memref<400x256xf32, #tpu.memory_space<vmem>>, vector<16x256xf32>,
    %c48_36 = arith.constant 48 : index
    %c0_37 = arith.constant 0 : index
    %61 = vector.load %arg14[%c48_36, %c0_37] : memref<400x256xf32, #tpu.memory_space<vmem>>, vector<16x256xf32>
    tpu.vector_store %arg14[%c48_36, %c0_37], %45 {strides = array<i32>} : memref<400x256xf32, #tpu.memory_space<vmem>>, vector<16x256xf32>,
    %c240_i32 = arith.constant 240 : i32
    %62 = tpu.dynamic_rotate %45 by %c240_i32 dim 1 : vector<16x256xf32>, i32 -> vector<16x256xf32>
    %c11 = arith.constant 11 : index
    %c0_38 = arith.constant 0 : index
    %63 = vector.load %arg2[%c11, %c0_38] : memref<48x256xf32, #tpu.memory_space<vmem>>, vector<1x256xf32>
    %64 = vector.broadcast %63 : vector<1x256xf32> to vector<16x256xf32>
    %65 = arith.mulf %62, %64 : vector<16x256xf32>
    %c64_39 = arith.constant 64 : index
    %c0_40 = arith.constant 0 : index
    %66 = vector.load %arg14[%c64_39, %c0_40] : memref<400x256xf32, #tpu.memory_space<vmem>>, vector<16x256xf32>
    tpu.vector_store %arg14[%c64_39, %c0_40], %65 {strides = array<i32>} : memref<400x256xf32, #tpu.memory_space<vmem>>, vector<16x256xf32>,
    %c224_i32 = arith.constant 224 : i32
    %67 = tpu.dynamic_rotate %45 by %c224_i32 dim 1 : vector<16x256xf32>, i32 -> vector<16x256xf32>
    %c12 = arith.constant 12 : index
    %c0_41 = arith.constant 0 : index
    %68 = vector.load %arg2[%c12, %c0_41] : memref<48x256xf32, #tpu.memory_space<vmem>>, vector<1x256xf32>
    %69 = vector.broadcast %68 : vector<1x256xf32> to vector<16x256xf32>
    %70 = arith.mulf %67, %69 : vector<16x256xf32>
    %c80_42 = arith.constant 80 : index
    %c0_43 = arith.constant 0 : index
    %71 = vector.load %arg14[%c80_42, %c0_43] : memref<400x256xf32, #tpu.memory_space<vmem>>, vector<16x256xf32>
    tpu.vector_store %arg14[%c80_42, %c0_43], %70 {strides = array<i32>} : memref<400x256xf32, #tpu.memory_space<vmem>>, vector<16x256xf32>,
    %c208_i32 = arith.constant 208 : i32
    %72 = tpu.dynamic_rotate %45 by %c208_i32 dim 1 : vector<16x256xf32>, i32 -> vector<16x256xf32>
    %c13 = arith.constant 13 : index
    %c0_44 = arith.constant 0 : index
    %73 = vector.load %arg2[%c13, %c0_44] : memref<48x256xf32, #tpu.memory_space<vmem>>, vector<1x256xf32>
    %74 = vector.broadcast %73 : vector<1x256xf32> to vector<16x256xf32>
    %75 = arith.mulf %72, %74 : vector<16x256xf32>
    %c96_45 = arith.constant 96 : index
    %c0_46 = arith.constant 0 : index
    %76 = vector.load %arg14[%c96_45, %c0_46] : memref<400x256xf32, #tpu.memory_space<vmem>>, vector<16x256xf32>
    tpu.vector_store %arg14[%c96_45, %c0_46], %75 {strides = array<i32>} : memref<400x256xf32, #tpu.memory_space<vmem>>, vector<16x256xf32>,
    %c0_47 = arith.constant 0 : index
    %c0_48 = arith.constant 0 : index
    %77 = vector.load %arg7[%c0_47, %c0_48] : memref<16x112xf32, #tpu.memory_space<vmem>>, vector<16x112xf32>
    %c0_49 = arith.constant 0 : index
    %c0_50 = arith.constant 0 : index
    %78 = vector.load %arg14[%c0_49, %c0_50] : memref<400x256xf32, #tpu.memory_space<vmem>>, vector<112x256xf32>
    %cst_51 = arith.constant dense<0.000000e+00> : vector<16x256xf32>
    %79 = tpu.matmul %77, %78, %cst_51 {dimension_numbers = #tpu.dot_dimension_numbers<[1], [0], [0], [1], [0, 0, 1, 1], [], []>} : vector<16x112xf32>, vector<112x256xf32>, vector<16x256xf32> -> vector<16x256xf32>
    %c0_52 = arith.constant 0 : index
    %c0_53 = arith.constant 0 : index
    %80 = vector.load %arg8[%c0_52, %c0_53] : memref<16x1xf32, #tpu.memory_space<vmem>>, vector<16x1xf32>
    %81 = vector.broadcast %80 : vector<16x1xf32> to vector<16x256xf32>
    %82 = arith.addf %79, %81 : vector<16x256xf32>
    %c51_i32 = arith.constant 51 : i32
    %83 = tpu.dynamic_rotate %82 by %c51_i32 dim 1 : vector<16x256xf32>, i32 -> vector<16x256xf32>
    %c14 = arith.constant 14 : index
    %c0_54 = arith.constant 0 : index
    %84 = vector.load %arg2[%c14, %c0_54] : memref<48x256xf32, #tpu.memory_space<vmem>>, vector<1x256xf32>
    %85 = vector.broadcast %84 : vector<1x256xf32> to vector<16x256xf32>
    %86 = arith.mulf %83, %85 : vector<16x256xf32>
    %c0_55 = arith.constant 0 : index
    %c0_56 = arith.constant 0 : index
    %87 = vector.load %arg14[%c0_55, %c0_56] : memref<400x256xf32, #tpu.memory_space<vmem>>, vector<16x256xf32>
    tpu.vector_store %arg14[%c0_55, %c0_56], %86 {strides = array<i32>} : memref<400x256xf32, #tpu.memory_space<vmem>>, vector<16x256xf32>,
    %c48_i32_57 = arith.constant 48 : i32
    %88 = tpu.dynamic_rotate %82 by %c48_i32_57 dim 1 : vector<16x256xf32>, i32 -> vector<16x256xf32>
    %c15 = arith.constant 15 : index
    %c0_58 = arith.constant 0 : index
    %89 = vector.load %arg2[%c15, %c0_58] : memref<48x256xf32, #tpu.memory_space<vmem>>, vector<1x256xf32>
    %90 = vector.broadcast %89 : vector<1x256xf32> to vector<16x256xf32>
    %91 = arith.mulf %88, %90 : vector<16x256xf32>
    %c16_59 = arith.constant 16 : index
    %c0_60 = arith.constant 0 : index
    %92 = vector.load %arg14[%c16_59, %c0_60] : memref<400x256xf32, #tpu.memory_space<vmem>>, vector<16x256xf32>
    tpu.vector_store %arg14[%c16_59, %c0_60], %91 {strides = array<i32>} : memref<400x256xf32, #tpu.memory_space<vmem>>, vector<16x256xf32>,
    %c45_i32 = arith.constant 45 : i32
    %93 = tpu.dynamic_rotate %82 by %c45_i32 dim 1 : vector<16x256xf32>, i32 -> vector<16x256xf32>
    %c16_61 = arith.constant 16 : index
    %c0_62 = arith.constant 0 : index
    %94 = vector.load %arg2[%c16_61, %c0_62] : memref<48x256xf32, #tpu.memory_space<vmem>>, vector<1x256xf32>
    %95 = vector.broadcast %94 : vector<1x256xf32> to vector<16x256xf32>
    %96 = arith.mulf %93, %95 : vector<16x256xf32>
    %c32_63 = arith.constant 32 : index
    %c0_64 = arith.constant 0 : index
    %97 = vector.load %arg14[%c32_63, %c0_64] : memref<400x256xf32, #tpu.memory_space<vmem>>, vector<16x256xf32>
    tpu.vector_store %arg14[%c32_63, %c0_64], %96 {strides = array<i32>} : memref<400x256xf32, #tpu.memory_space<vmem>>, vector<16x256xf32>,
    %c3_i32_65 = arith.constant 3 : i32
    %98 = tpu.dynamic_rotate %82 by %c3_i32_65 dim 1 : vector<16x256xf32>, i32 -> vector<16x256xf32>
    %c17 = arith.constant 17 : index
    %c0_66 = arith.constant 0 : index
    %99 = vector.load %arg2[%c17, %c0_66] : memref<48x256xf32, #tpu.memory_space<vmem>>, vector<1x256xf32>
    %100 = vector.broadcast %99 : vector<1x256xf32> to vector<16x256xf32>
    %101 = arith.mulf %98, %100 : vector<16x256xf32>
    %c48_67 = arith.constant 48 : index
    %c0_68 = arith.constant 0 : index
    %102 = vector.load %arg14[%c48_67, %c0_68] : memref<400x256xf32, #tpu.memory_space<vmem>>, vector<16x256xf32>
    tpu.vector_store %arg14[%c48_67, %c0_68], %101 {strides = array<i32>} : memref<400x256xf32, #tpu.memory_space<vmem>>, vector<16x256xf32>,
    %c64_69 = arith.constant 64 : index
    %c0_70 = arith.constant 0 : index
    %103 = vector.load %arg14[%c64_69, %c0_70] : memref<400x256xf32, #tpu.memory_space<vmem>>, vector<16x256xf32>
    tpu.vector_store %arg14[%c64_69, %c0_70], %82 {strides = array<i32>} : memref<400x256xf32, #tpu.memory_space<vmem>>, vector<16x256xf32>,
    %c253_i32_71 = arith.constant 253 : i32
    %104 = tpu.dynamic_rotate %82 by %c253_i32_71 dim 1 : vector<16x256xf32>, i32 -> vector<16x256xf32>
    %c19 = arith.constant 19 : index
    %c0_72 = arith.constant 0 : index
    %105 = vector.load %arg2[%c19, %c0_72] : memref<48x256xf32, #tpu.memory_space<vmem>>, vector<1x256xf32>
    %106 = vector.broadcast %105 : vector<1x256xf32> to vector<16x256xf32>
    %107 = arith.mulf %104, %106 : vector<16x256xf32>
    %c80_73 = arith.constant 80 : index
    %c0_74 = arith.constant 0 : index
    %108 = vector.load %arg14[%c80_73, %c0_74] : memref<400x256xf32, #tpu.memory_space<vmem>>, vector<16x256xf32>
    tpu.vector_store %arg14[%c80_73, %c0_74], %107 {strides = array<i32>} : memref<400x256xf32, #tpu.memory_space<vmem>>, vector<16x256xf32>,
    %c211_i32 = arith.constant 211 : i32
    %109 = tpu.dynamic_rotate %82 by %c211_i32 dim 1 : vector<16x256xf32>, i32 -> vector<16x256xf32>
    %c20 = arith.constant 20 : index
    %c0_75 = arith.constant 0 : index
    %110 = vector.load %arg2[%c20, %c0_75] : memref<48x256xf32, #tpu.memory_space<vmem>>, vector<1x256xf32>
    %111 = vector.broadcast %110 : vector<1x256xf32> to vector<16x256xf32>
    %112 = arith.mulf %109, %111 : vector<16x256xf32>
    %c96_76 = arith.constant 96 : index
    %c0_77 = arith.constant 0 : index
    %113 = vector.load %arg14[%c96_76, %c0_77] : memref<400x256xf32, #tpu.memory_space<vmem>>, vector<16x256xf32>
    tpu.vector_store %arg14[%c96_76, %c0_77], %112 {strides = array<i32>} : memref<400x256xf32, #tpu.memory_space<vmem>>, vector<16x256xf32>,
    %c208_i32_78 = arith.constant 208 : i32
    %114 = tpu.dynamic_rotate %82 by %c208_i32_78 dim 1 : vector<16x256xf32>, i32 -> vector<16x256xf32>
    %c21 = arith.constant 21 : index
    %c0_79 = arith.constant 0 : index
    %115 = vector.load %arg2[%c21, %c0_79] : memref<48x256xf32, #tpu.memory_space<vmem>>, vector<1x256xf32>
    %116 = vector.broadcast %115 : vector<1x256xf32> to vector<16x256xf32>
    %117 = arith.mulf %114, %116 : vector<16x256xf32>
    %c112 = arith.constant 112 : index
    %c0_80 = arith.constant 0 : index
    %118 = vector.load %arg14[%c112, %c0_80] : memref<400x256xf32, #tpu.memory_space<vmem>>, vector<16x256xf32>
    tpu.vector_store %arg14[%c112, %c0_80], %117 {strides = array<i32>} : memref<400x256xf32, #tpu.memory_space<vmem>>, vector<16x256xf32>,
    %c205_i32 = arith.constant 205 : i32
    %119 = tpu.dynamic_rotate %82 by %c205_i32 dim 1 : vector<16x256xf32>, i32 -> vector<16x256xf32>
    %c22 = arith.constant 22 : index
    %c0_81 = arith.constant 0 : index
    %120 = vector.load %arg2[%c22, %c0_81] : memref<48x256xf32, #tpu.memory_space<vmem>>, vector<1x256xf32>
    %121 = vector.broadcast %120 : vector<1x256xf32> to vector<16x256xf32>
    %122 = arith.mulf %119, %121 : vector<16x256xf32>
    %c128 = arith.constant 128 : index
    %c0_82 = arith.constant 0 : index
    %123 = vector.load %arg14[%c128, %c0_82] : memref<400x256xf32, #tpu.memory_space<vmem>>, vector<16x256xf32>
    tpu.vector_store %arg14[%c128, %c0_82], %122 {strides = array<i32>} : memref<400x256xf32, #tpu.memory_space<vmem>>, vector<16x256xf32>,
    %c85_i32 = arith.constant 85 : i32
    %124 = tpu.dynamic_rotate %82 by %c85_i32 dim 1 : vector<16x256xf32>, i32 -> vector<16x256xf32>
    %c23 = arith.constant 23 : index
    %c0_83 = arith.constant 0 : index
    %125 = vector.load %arg2[%c23, %c0_83] : memref<48x256xf32, #tpu.memory_space<vmem>>, vector<1x256xf32>
    %126 = vector.broadcast %125 : vector<1x256xf32> to vector<16x256xf32>
    %127 = arith.mulf %124, %126 : vector<16x256xf32>
    %c144 = arith.constant 144 : index
    %c0_84 = arith.constant 0 : index
    %128 = vector.load %arg14[%c144, %c0_84] : memref<400x256xf32, #tpu.memory_space<vmem>>, vector<16x256xf32>
    tpu.vector_store %arg14[%c144, %c0_84], %127 {strides = array<i32>} : memref<400x256xf32, #tpu.memory_space<vmem>>, vector<16x256xf32>,
    %c80_i32 = arith.constant 80 : i32
    %129 = tpu.dynamic_rotate %82 by %c80_i32 dim 1 : vector<16x256xf32>, i32 -> vector<16x256xf32>
    %c24 = arith.constant 24 : index
    %c0_85 = arith.constant 0 : index
    %130 = vector.load %arg2[%c24, %c0_85] : memref<48x256xf32, #tpu.memory_space<vmem>>, vector<1x256xf32>
    %131 = vector.broadcast %130 : vector<1x256xf32> to vector<16x256xf32>
    %132 = arith.mulf %129, %131 : vector<16x256xf32>
    %c160 = arith.constant 160 : index
    %c0_86 = arith.constant 0 : index
    %133 = vector.load %arg14[%c160, %c0_86] : memref<400x256xf32, #tpu.memory_space<vmem>>, vector<16x256xf32>
    tpu.vector_store %arg14[%c160, %c0_86], %132 {strides = array<i32>} : memref<400x256xf32, #tpu.memory_space<vmem>>, vector<16x256xf32>,
    %c75_i32 = arith.constant 75 : i32
    %134 = tpu.dynamic_rotate %82 by %c75_i32 dim 1 : vector<16x256xf32>, i32 -> vector<16x256xf32>
    %c25 = arith.constant 25 : index
    %c0_87 = arith.constant 0 : index
    %135 = vector.load %arg2[%c25, %c0_87] : memref<48x256xf32, #tpu.memory_space<vmem>>, vector<1x256xf32>
    %136 = vector.broadcast %135 : vector<1x256xf32> to vector<16x256xf32>
    %137 = arith.mulf %134, %136 : vector<16x256xf32>
    %c176 = arith.constant 176 : index
    %c0_88 = arith.constant 0 : index
    %138 = vector.load %arg14[%c176, %c0_88] : memref<400x256xf32, #tpu.memory_space<vmem>>, vector<16x256xf32>
    tpu.vector_store %arg14[%c176, %c0_88], %137 {strides = array<i32>} : memref<400x256xf32, #tpu.memory_space<vmem>>, vector<16x256xf32>,
    %c5_i32 = arith.constant 5 : i32
    %139 = tpu.dynamic_rotate %82 by %c5_i32 dim 1 : vector<16x256xf32>, i32 -> vector<16x256xf32>
    %c26 = arith.constant 26 : index
    %c0_89 = arith.constant 0 : index
    %140 = vector.load %arg2[%c26, %c0_89] : memref<48x256xf32, #tpu.memory_space<vmem>>, vector<1x256xf32>
    %141 = vector.broadcast %140 : vector<1x256xf32> to vector<16x256xf32>
    %142 = arith.mulf %139, %141 : vector<16x256xf32>
    %c192 = arith.constant 192 : index
    %c0_90 = arith.constant 0 : index
    %143 = vector.load %arg14[%c192, %c0_90] : memref<400x256xf32, #tpu.memory_space<vmem>>, vector<16x256xf32>
    tpu.vector_store %arg14[%c192, %c0_90], %142 {strides = array<i32>} : memref<400x256xf32, #tpu.memory_space<vmem>>, vector<16x256xf32>,
    %c251_i32 = arith.constant 251 : i32
    %144 = tpu.dynamic_rotate %82 by %c251_i32 dim 1 : vector<16x256xf32>, i32 -> vector<16x256xf32>
    %c27 = arith.constant 27 : index
    %c0_91 = arith.constant 0 : index
    %145 = vector.load %arg2[%c27, %c0_91] : memref<48x256xf32, #tpu.memory_space<vmem>>, vector<1x256xf32>
    %146 = vector.broadcast %145 : vector<1x256xf32> to vector<16x256xf32>
    %147 = arith.mulf %144, %146 : vector<16x256xf32>
    %c208 = arith.constant 208 : index
    %c0_92 = arith.constant 0 : index
    %148 = vector.load %arg14[%c208, %c0_92] : memref<400x256xf32, #tpu.memory_space<vmem>>, vector<16x256xf32>
    tpu.vector_store %arg14[%c208, %c0_92], %147 {strides = array<i32>} : memref<400x256xf32, #tpu.memory_space<vmem>>, vector<16x256xf32>,
    %c181_i32 = arith.constant 181 : i32
    %149 = tpu.dynamic_rotate %82 by %c181_i32 dim 1 : vector<16x256xf32>, i32 -> vector<16x256xf32>
    %c28 = arith.constant 28 : index
    %c0_93 = arith.constant 0 : index
    %150 = vector.load %arg2[%c28, %c0_93] : memref<48x256xf32, #tpu.memory_space<vmem>>, vector<1x256xf32>
    %151 = vector.broadcast %150 : vector<1x256xf32> to vector<16x256xf32>
    %152 = arith.mulf %149, %151 : vector<16x256xf32>
    %c224 = arith.constant 224 : index
    %c0_94 = arith.constant 0 : index
    %153 = vector.load %arg14[%c224, %c0_94] : memref<400x256xf32, #tpu.memory_space<vmem>>, vector<16x256xf32>
    tpu.vector_store %arg14[%c224, %c0_94], %152 {strides = array<i32>} : memref<400x256xf32, #tpu.memory_space<vmem>>, vector<16x256xf32>,
    %c176_i32 = arith.constant 176 : i32
    %154 = tpu.dynamic_rotate %82 by %c176_i32 dim 1 : vector<16x256xf32>, i32 -> vector<16x256xf32>
    %c29 = arith.constant 29 : index
    %c0_95 = arith.constant 0 : index
    %155 = vector.load %arg2[%c29, %c0_95] : memref<48x256xf32, #tpu.memory_space<vmem>>, vector<1x256xf32>
    %156 = vector.broadcast %155 : vector<1x256xf32> to vector<16x256xf32>
    %157 = arith.mulf %154, %156 : vector<16x256xf32>
    %c240 = arith.constant 240 : index
    %c0_96 = arith.constant 0 : index
    %158 = vector.load %arg14[%c240, %c0_96] : memref<400x256xf32, #tpu.memory_space<vmem>>, vector<16x256xf32>
    tpu.vector_store %arg14[%c240, %c0_96], %157 {strides = array<i32>} : memref<400x256xf32, #tpu.memory_space<vmem>>, vector<16x256xf32>,
    %c171_i32 = arith.constant 171 : i32
    %159 = tpu.dynamic_rotate %82 by %c171_i32 dim 1 : vector<16x256xf32>, i32 -> vector<16x256xf32>
    %c30 = arith.constant 30 : index
    %c0_97 = arith.constant 0 : index
    %160 = vector.load %arg2[%c30, %c0_97] : memref<48x256xf32, #tpu.memory_space<vmem>>, vector<1x256xf32>
    %161 = vector.broadcast %160 : vector<1x256xf32> to vector<16x256xf32>
    %162 = arith.mulf %159, %161 : vector<16x256xf32>
    %c256 = arith.constant 256 : index
    %c0_98 = arith.constant 0 : index
    %163 = vector.load %arg14[%c256, %c0_98] : memref<400x256xf32, #tpu.memory_space<vmem>>, vector<16x256xf32>
    tpu.vector_store %arg14[%c256, %c0_98], %162 {strides = array<i32>} : memref<400x256xf32, #tpu.memory_space<vmem>>, vector<16x256xf32>,
    %c119_i32 = arith.constant 119 : i32
    %164 = tpu.dynamic_rotate %82 by %c119_i32 dim 1 : vector<16x256xf32>, i32 -> vector<16x256xf32>
    %c31 = arith.constant 31 : index
    %c0_99 = arith.constant 0 : index
    %165 = vector.load %arg2[%c31, %c0_99] : memref<48x256xf32, #tpu.memory_space<vmem>>, vector<1x256xf32>
    %166 = vector.broadcast %165 : vector<1x256xf32> to vector<16x256xf32>
    %167 = arith.mulf %164, %166 : vector<16x256xf32>
    %c272 = arith.constant 272 : index
    %c0_100 = arith.constant 0 : index
    %168 = vector.load %arg14[%c272, %c0_100] : memref<400x256xf32, #tpu.memory_space<vmem>>, vector<16x256xf32>
    tpu.vector_store %arg14[%c272, %c0_100], %167 {strides = array<i32>} : memref<400x256xf32, #tpu.memory_space<vmem>>, vector<16x256xf32>,
    %c112_i32 = arith.constant 112 : i32
    %169 = tpu.dynamic_rotate %82 by %c112_i32 dim 1 : vector<16x256xf32>, i32 -> vector<16x256xf32>
    %c32_101 = arith.constant 32 : index
    %c0_102 = arith.constant 0 : index
    %170 = vector.load %arg2[%c32_101, %c0_102] : memref<48x256xf32, #tpu.memory_space<vmem>>, vector<1x256xf32>
    %171 = vector.broadcast %170 : vector<1x256xf32> to vector<16x256xf32>
    %172 = arith.mulf %169, %171 : vector<16x256xf32>
    %c288 = arith.constant 288 : index
    %c0_103 = arith.constant 0 : index
    %173 = vector.load %arg14[%c288, %c0_103] : memref<400x256xf32, #tpu.memory_space<vmem>>, vector<16x256xf32>
    tpu.vector_store %arg14[%c288, %c0_103], %172 {strides = array<i32>} : memref<400x256xf32, #tpu.memory_space<vmem>>, vector<16x256xf32>,
    %c105_i32 = arith.constant 105 : i32
    %174 = tpu.dynamic_rotate %82 by %c105_i32 dim 1 : vector<16x256xf32>, i32 -> vector<16x256xf32>
    %c33 = arith.constant 33 : index
    %c0_104 = arith.constant 0 : index
    %175 = vector.load %arg2[%c33, %c0_104] : memref<48x256xf32, #tpu.memory_space<vmem>>, vector<1x256xf32>
    %176 = vector.broadcast %175 : vector<1x256xf32> to vector<16x256xf32>
    %177 = arith.mulf %174, %176 : vector<16x256xf32>
    %c304 = arith.constant 304 : index
    %c0_105 = arith.constant 0 : index
    %178 = vector.load %arg14[%c304, %c0_105] : memref<400x256xf32, #tpu.memory_space<vmem>>, vector<16x256xf32>
    tpu.vector_store %arg14[%c304, %c0_105], %177 {strides = array<i32>} : memref<400x256xf32, #tpu.memory_space<vmem>>, vector<16x256xf32>,
    %c7_i32 = arith.constant 7 : i32
    %179 = tpu.dynamic_rotate %82 by %c7_i32 dim 1 : vector<16x256xf32>, i32 -> vector<16x256xf32>
    %c34 = arith.constant 34 : index
    %c0_106 = arith.constant 0 : index
    %180 = vector.load %arg2[%c34, %c0_106] : memref<48x256xf32, #tpu.memory_space<vmem>>, vector<1x256xf32>
    %181 = vector.broadcast %180 : vector<1x256xf32> to vector<16x256xf32>
    %182 = arith.mulf %179, %181 : vector<16x256xf32>
    %c320 = arith.constant 320 : index
    %c0_107 = arith.constant 0 : index
    %183 = vector.load %arg14[%c320, %c0_107] : memref<400x256xf32, #tpu.memory_space<vmem>>, vector<16x256xf32>
    tpu.vector_store %arg14[%c320, %c0_107], %182 {strides = array<i32>} : memref<400x256xf32, #tpu.memory_space<vmem>>, vector<16x256xf32>,
    %c249_i32 = arith.constant 249 : i32
    %184 = tpu.dynamic_rotate %82 by %c249_i32 dim 1 : vector<16x256xf32>, i32 -> vector<16x256xf32>
    %c35 = arith.constant 35 : index
    %c0_108 = arith.constant 0 : index
    %185 = vector.load %arg2[%c35, %c0_108] : memref<48x256xf32, #tpu.memory_space<vmem>>, vector<1x256xf32>
    %186 = vector.broadcast %185 : vector<1x256xf32> to vector<16x256xf32>
    %187 = arith.mulf %184, %186 : vector<16x256xf32>
    %c336 = arith.constant 336 : index
    %c0_109 = arith.constant 0 : index
    %188 = vector.load %arg14[%c336, %c0_109] : memref<400x256xf32, #tpu.memory_space<vmem>>, vector<16x256xf32>
    tpu.vector_store %arg14[%c336, %c0_109], %187 {strides = array<i32>} : memref<400x256xf32, #tpu.memory_space<vmem>>, vector<16x256xf32>,
    %c151_i32 = arith.constant 151 : i32
    %189 = tpu.dynamic_rotate %82 by %c151_i32 dim 1 : vector<16x256xf32>, i32 -> vector<16x256xf32>
    %c36 = arith.constant 36 : index
    %c0_110 = arith.constant 0 : index
    %190 = vector.load %arg2[%c36, %c0_110] : memref<48x256xf32, #tpu.memory_space<vmem>>, vector<1x256xf32>
    %191 = vector.broadcast %190 : vector<1x256xf32> to vector<16x256xf32>
    %192 = arith.mulf %189, %191 : vector<16x256xf32>
    %c352 = arith.constant 352 : index
    %c0_111 = arith.constant 0 : index
    %193 = vector.load %arg14[%c352, %c0_111] : memref<400x256xf32, #tpu.memory_space<vmem>>, vector<16x256xf32>
    tpu.vector_store %arg14[%c352, %c0_111], %192 {strides = array<i32>} : memref<400x256xf32, #tpu.memory_space<vmem>>, vector<16x256xf32>,
    %c144_i32 = arith.constant 144 : i32
    %194 = tpu.dynamic_rotate %82 by %c144_i32 dim 1 : vector<16x256xf32>, i32 -> vector<16x256xf32>
    %c37 = arith.constant 37 : index
    %c0_112 = arith.constant 0 : index
    %195 = vector.load %arg2[%c37, %c0_112] : memref<48x256xf32, #tpu.memory_space<vmem>>, vector<1x256xf32>
    %196 = vector.broadcast %195 : vector<1x256xf32> to vector<16x256xf32>
    %197 = arith.mulf %194, %196 : vector<16x256xf32>
    %c368 = arith.constant 368 : index
    %c0_113 = arith.constant 0 : index
    %198 = vector.load %arg14[%c368, %c0_113] : memref<400x256xf32, #tpu.memory_space<vmem>>, vector<16x256xf32>
    tpu.vector_store %arg14[%c368, %c0_113], %197 {strides = array<i32>} : memref<400x256xf32, #tpu.memory_space<vmem>>, vector<16x256xf32>,
    %c137_i32 = arith.constant 137 : i32
    %199 = tpu.dynamic_rotate %82 by %c137_i32 dim 1 : vector<16x256xf32>, i32 -> vector<16x256xf32>
    %c38 = arith.constant 38 : index
    %c0_114 = arith.constant 0 : index
    %200 = vector.load %arg2[%c38, %c0_114] : memref<48x256xf32, #tpu.memory_space<vmem>>, vector<1x256xf32>
    %201 = vector.broadcast %200 : vector<1x256xf32> to vector<16x256xf32>
    %202 = arith.mulf %199, %201 : vector<16x256xf32>
    %c384 = arith.constant 384 : index
    %c0_115 = arith.constant 0 : index
    %203 = vector.load %arg14[%c384, %c0_115] : memref<400x256xf32, #tpu.memory_space<vmem>>, vector<16x256xf32>
    tpu.vector_store %arg14[%c384, %c0_115], %202 {strides = array<i32>} : memref<400x256xf32, #tpu.memory_space<vmem>>, vector<16x256xf32>,
    %c0_116 = arith.constant 0 : index
    %c0_117 = arith.constant 0 : index
    %204 = vector.load %arg9[%c0_116, %c0_117] : memref<16x400xf32, #tpu.memory_space<vmem>>, vector<16x400xf32>
    %c0_118 = arith.constant 0 : index
    %c0_119 = arith.constant 0 : index
    %205 = vector.load %arg14[%c0_118, %c0_119] : memref<400x256xf32, #tpu.memory_space<vmem>>, vector<400x256xf32>
    %cst_120 = arith.constant dense<0.000000e+00> : vector<16x256xf32>
    %206 = tpu.matmul %204, %205, %cst_120 {dimension_numbers = #tpu.dot_dimension_numbers<[1], [0], [0], [1], [0, 0, 1, 1], [], []>} : vector<16x400xf32>, vector<400x256xf32>, vector<16x256xf32> -> vector<16x256xf32>
    %c0_121 = arith.constant 0 : index
    %c0_122 = arith.constant 0 : index
    %207 = vector.load %arg10[%c0_121, %c0_122] : memref<16x1xf32, #tpu.memory_space<vmem>>, vector<16x1xf32>
    %208 = vector.broadcast %207 : vector<16x1xf32> to vector<16x256xf32>
    %209 = arith.addf %206, %208 : vector<16x256xf32>
    %c17_i32 = arith.constant 17 : i32
    %210 = tpu.dynamic_rotate %6 by %c17_i32 dim 1 : vector<8x256xf32>, i32 -> vector<8x256xf32>
    %c39 = arith.constant 39 : index
    %c0_123 = arith.constant 0 : index
    %211 = vector.load %arg2[%c39, %c0_123] : memref<48x256xf32, #tpu.memory_space<vmem>>, vector<1x256xf32>
    %212 = vector.broadcast %211 : vector<1x256xf32> to vector<8x256xf32>
    %213 = arith.mulf %210, %212 : vector<8x256xf32>
    %c0_124 = arith.constant 0 : index
    %c0_125 = arith.constant 0 : index
    %214 = vector.load %arg14[%c0_124, %c0_125] : memref<400x256xf32, #tpu.memory_space<vmem>>, vector<8x256xf32>
    tpu.vector_store %arg14[%c0_124, %c0_125], %213 {strides = array<i32>} : memref<400x256xf32, #tpu.memory_space<vmem>>, vector<8x256xf32>,
    %c17_i32_126 = arith.constant 17 : i32
    %215 = tpu.dynamic_rotate %209 by %c17_i32_126 dim 1 : vector<16x256xf32>, i32 -> vector<16x256xf32>
    %c39_127 = arith.constant 39 : index
    %c0_128 = arith.constant 0 : index
    %216 = vector.load %arg2[%c39_127, %c0_128] : memref<48x256xf32, #tpu.memory_space<vmem>>, vector<1x256xf32>
    %217 = vector.broadcast %216 : vector<1x256xf32> to vector<16x256xf32>
    %218 = arith.mulf %215, %217 : vector<16x256xf32>
    %c8_129 = arith.constant 8 : index
    %c0_130 = arith.constant 0 : index
    %219 = vector.load %arg14[%c8_129, %c0_130] : memref<400x256xf32, #tpu.memory_space<vmem>>, vector<16x256xf32>
    tpu.vector_store %arg14[%c8_129, %c0_130], %218 {strides = array<i32>} : memref<400x256xf32, #tpu.memory_space<vmem>>, vector<16x256xf32>,
    %c16_i32_131 = arith.constant 16 : i32
    %220 = tpu.dynamic_rotate %6 by %c16_i32_131 dim 1 : vector<8x256xf32>, i32 -> vector<8x256xf32>
    %c40 = arith.constant 40 : index
    %c0_132 = arith.constant 0 : index
    %221 = vector.load %arg2[%c40, %c0_132] : memref<48x256xf32, #tpu.memory_space<vmem>>, vector<1x256xf32>
    %222 = vector.broadcast %221 : vector<1x256xf32> to vector<8x256xf32>
    %223 = arith.mulf %220, %222 : vector<8x256xf32>
    %c24_133 = arith.constant 24 : index
    %c0_134 = arith.constant 0 : index
    %224 = vector.load %arg14[%c24_133, %c0_134] : memref<400x256xf32, #tpu.memory_space<vmem>>, vector<8x256xf32>
    tpu.vector_store %arg14[%c24_133, %c0_134], %223 {strides = array<i32>} : memref<400x256xf32, #tpu.memory_space<vmem>>, vector<8x256xf32>,
    %c16_i32_135 = arith.constant 16 : i32
    %225 = tpu.dynamic_rotate %209 by %c16_i32_135 dim 1 : vector<16x256xf32>, i32 -> vector<16x256xf32>
    %c40_136 = arith.constant 40 : index
    %c0_137 = arith.constant 0 : index
    %226 = vector.load %arg2[%c40_136, %c0_137] : memref<48x256xf32, #tpu.memory_space<vmem>>, vector<1x256xf32>
    %227 = vector.broadcast %226 : vector<1x256xf32> to vector<16x256xf32>
    %228 = arith.mulf %225, %227 : vector<16x256xf32>
    %c32_138 = arith.constant 32 : index
    %c0_139 = arith.constant 0 : index
    %229 = vector.load %arg14[%c32_138, %c0_139] : memref<400x256xf32, #tpu.memory_space<vmem>>, vector<16x256xf32>
    tpu.vector_store %arg14[%c32_138, %c0_139], %228 {strides = array<i32>} : memref<400x256xf32, #tpu.memory_space<vmem>>, vector<16x256xf32>,
    %c15_i32 = arith.constant 15 : i32
    %230 = tpu.dynamic_rotate %6 by %c15_i32 dim 1 : vector<8x256xf32>, i32 -> vector<8x256xf32>
    %c41 = arith.constant 41 : index
    %c0_140 = arith.constant 0 : index
    %231 = vector.load %arg2[%c41, %c0_140] : memref<48x256xf32, #tpu.memory_space<vmem>>, vector<1x256xf32>
    %232 = vector.broadcast %231 : vector<1x256xf32> to vector<8x256xf32>
    %233 = arith.mulf %230, %232 : vector<8x256xf32>
    %c48_141 = arith.constant 48 : index
    %c0_142 = arith.constant 0 : index
    %234 = vector.load %arg14[%c48_141, %c0_142] : memref<400x256xf32, #tpu.memory_space<vmem>>, vector<8x256xf32>
    tpu.vector_store %arg14[%c48_141, %c0_142], %233 {strides = array<i32>} : memref<400x256xf32, #tpu.memory_space<vmem>>, vector<8x256xf32>,
    %c15_i32_143 = arith.constant 15 : i32
    %235 = tpu.dynamic_rotate %209 by %c15_i32_143 dim 1 : vector<16x256xf32>, i32 -> vector<16x256xf32>
    %c41_144 = arith.constant 41 : index
    %c0_145 = arith.constant 0 : index
    %236 = vector.load %arg2[%c41_144, %c0_145] : memref<48x256xf32, #tpu.memory_space<vmem>>, vector<1x256xf32>
    %237 = vector.broadcast %236 : vector<1x256xf32> to vector<16x256xf32>
    %238 = arith.mulf %235, %237 : vector<16x256xf32>
    %c56 = arith.constant 56 : index
    %c0_146 = arith.constant 0 : index
    %239 = vector.load %arg14[%c56, %c0_146] : memref<400x256xf32, #tpu.memory_space<vmem>>, vector<16x256xf32>
    tpu.vector_store %arg14[%c56, %c0_146], %238 {strides = array<i32>} : memref<400x256xf32, #tpu.memory_space<vmem>>, vector<16x256xf32>,
    %c1_i32_147 = arith.constant 1 : i32
    %240 = tpu.dynamic_rotate %6 by %c1_i32_147 dim 1 : vector<8x256xf32>, i32 -> vector<8x256xf32>
    %c42 = arith.constant 42 : index
    %c0_148 = arith.constant 0 : index
    %241 = vector.load %arg2[%c42, %c0_148] : memref<48x256xf32, #tpu.memory_space<vmem>>, vector<1x256xf32>
    %242 = vector.broadcast %241 : vector<1x256xf32> to vector<8x256xf32>
    %243 = arith.mulf %240, %242 : vector<8x256xf32>
    %c72 = arith.constant 72 : index
    %c0_149 = arith.constant 0 : index
    %244 = vector.load %arg14[%c72, %c0_149] : memref<400x256xf32, #tpu.memory_space<vmem>>, vector<8x256xf32>
    tpu.vector_store %arg14[%c72, %c0_149], %243 {strides = array<i32>} : memref<400x256xf32, #tpu.memory_space<vmem>>, vector<8x256xf32>,
    %c1_i32_150 = arith.constant 1 : i32
    %245 = tpu.dynamic_rotate %209 by %c1_i32_150 dim 1 : vector<16x256xf32>, i32 -> vector<16x256xf32>
    %c42_151 = arith.constant 42 : index
    %c0_152 = arith.constant 0 : index
    %246 = vector.load %arg2[%c42_151, %c0_152] : memref<48x256xf32, #tpu.memory_space<vmem>>, vector<1x256xf32>
    %247 = vector.broadcast %246 : vector<1x256xf32> to vector<16x256xf32>
    %248 = arith.mulf %245, %247 : vector<16x256xf32>
    %c80_153 = arith.constant 80 : index
    %c0_154 = arith.constant 0 : index
    %249 = vector.load %arg14[%c80_153, %c0_154] : memref<400x256xf32, #tpu.memory_space<vmem>>, vector<16x256xf32>
    tpu.vector_store %arg14[%c80_153, %c0_154], %248 {strides = array<i32>} : memref<400x256xf32, #tpu.memory_space<vmem>>, vector<16x256xf32>,
    %c96_155 = arith.constant 96 : index
    %c0_156 = arith.constant 0 : index
    %250 = vector.load %arg14[%c96_155, %c0_156] : memref<400x256xf32, #tpu.memory_space<vmem>>, vector<8x256xf32>
    tpu.vector_store %arg14[%c96_155, %c0_156], %6 {strides = array<i32>} : memref<400x256xf32, #tpu.memory_space<vmem>>, vector<8x256xf32>,
    %c104 = arith.constant 104 : index
    %c0_157 = arith.constant 0 : index
    %251 = vector.load %arg14[%c104, %c0_157] : memref<400x256xf32, #tpu.memory_space<vmem>>, vector<16x256xf32>
    tpu.vector_store %arg14[%c104, %c0_157], %209 {strides = array<i32>} : memref<400x256xf32, #tpu.memory_space<vmem>>, vector<16x256xf32>,
    %c255_i32_158 = arith.constant 255 : i32
    %252 = tpu.dynamic_rotate %6 by %c255_i32_158 dim 1 : vector<8x256xf32>, i32 -> vector<8x256xf32>
    %c44 = arith.constant 44 : index
    %c0_159 = arith.constant 0 : index
    %253 = vector.load %arg2[%c44, %c0_159] : memref<48x256xf32, #tpu.memory_space<vmem>>, vector<1x256xf32>
    %254 = vector.broadcast %253 : vector<1x256xf32> to vector<8x256xf32>
    %255 = arith.mulf %252, %254 : vector<8x256xf32>
    %c120 = arith.constant 120 : index
    %c0_160 = arith.constant 0 : index
    %256 = vector.load %arg14[%c120, %c0_160] : memref<400x256xf32, #tpu.memory_space<vmem>>, vector<8x256xf32>
    tpu.vector_store %arg14[%c120, %c0_160], %255 {strides = array<i32>} : memref<400x256xf32, #tpu.memory_space<vmem>>, vector<8x256xf32>,
    %c255_i32_161 = arith.constant 255 : i32
    %257 = tpu.dynamic_rotate %209 by %c255_i32_161 dim 1 : vector<16x256xf32>, i32 -> vector<16x256xf32>
    %c44_162 = arith.constant 44 : index
    %c0_163 = arith.constant 0 : index
    %258 = vector.load %arg2[%c44_162, %c0_163] : memref<48x256xf32, #tpu.memory_space<vmem>>, vector<1x256xf32>
    %259 = vector.broadcast %258 : vector<1x256xf32> to vector<16x256xf32>
    %260 = arith.mulf %257, %259 : vector<16x256xf32>
    %c128_164 = arith.constant 128 : index
    %c0_165 = arith.constant 0 : index
    %261 = vector.load %arg14[%c128_164, %c0_165] : memref<400x256xf32, #tpu.memory_space<vmem>>, vector<16x256xf32>
    tpu.vector_store %arg14[%c128_164, %c0_165], %260 {strides = array<i32>} : memref<400x256xf32, #tpu.memory_space<vmem>>, vector<16x256xf32>,
    %c241_i32 = arith.constant 241 : i32
    %262 = tpu.dynamic_rotate %6 by %c241_i32 dim 1 : vector<8x256xf32>, i32 -> vector<8x256xf32>
    %c45 = arith.constant 45 : index
    %c0_166 = arith.constant 0 : index
    %263 = vector.load %arg2[%c45, %c0_166] : memref<48x256xf32, #tpu.memory_space<vmem>>, vector<1x256xf32>
    %264 = vector.broadcast %263 : vector<1x256xf32> to vector<8x256xf32>
    %265 = arith.mulf %262, %264 : vector<8x256xf32>
    %c144_167 = arith.constant 144 : index
    %c0_168 = arith.constant 0 : index
    %266 = vector.load %arg14[%c144_167, %c0_168] : memref<400x256xf32, #tpu.memory_space<vmem>>, vector<8x256xf32>
    tpu.vector_store %arg14[%c144_167, %c0_168], %265 {strides = array<i32>} : memref<400x256xf32, #tpu.memory_space<vmem>>, vector<8x256xf32>,
    %c241_i32_169 = arith.constant 241 : i32
    %267 = tpu.dynamic_rotate %209 by %c241_i32_169 dim 1 : vector<16x256xf32>, i32 -> vector<16x256xf32>
    %c45_170 = arith.constant 45 : index
    %c0_171 = arith.constant 0 : index
    %268 = vector.load %arg2[%c45_170, %c0_171] : memref<48x256xf32, #tpu.memory_space<vmem>>, vector<1x256xf32>
    %269 = vector.broadcast %268 : vector<1x256xf32> to vector<16x256xf32>
    %270 = arith.mulf %267, %269 : vector<16x256xf32>
    %c152 = arith.constant 152 : index
    %c0_172 = arith.constant 0 : index
    %271 = vector.load %arg14[%c152, %c0_172] : memref<400x256xf32, #tpu.memory_space<vmem>>, vector<16x256xf32>
    tpu.vector_store %arg14[%c152, %c0_172], %270 {strides = array<i32>} : memref<400x256xf32, #tpu.memory_space<vmem>>, vector<16x256xf32>,
    %c240_i32_173 = arith.constant 240 : i32
    %272 = tpu.dynamic_rotate %6 by %c240_i32_173 dim 1 : vector<8x256xf32>, i32 -> vector<8x256xf32>
    %c46 = arith.constant 46 : index
    %c0_174 = arith.constant 0 : index
    %273 = vector.load %arg2[%c46, %c0_174] : memref<48x256xf32, #tpu.memory_space<vmem>>, vector<1x256xf32>
    %274 = vector.broadcast %273 : vector<1x256xf32> to vector<8x256xf32>
    %275 = arith.mulf %272, %274 : vector<8x256xf32>
    %c168 = arith.constant 168 : index
    %c0_175 = arith.constant 0 : index
    %276 = vector.load %arg14[%c168, %c0_175] : memref<400x256xf32, #tpu.memory_space<vmem>>, vector<8x256xf32>
    tpu.vector_store %arg14[%c168, %c0_175], %275 {strides = array<i32>} : memref<400x256xf32, #tpu.memory_space<vmem>>, vector<8x256xf32>,
    %c240_i32_176 = arith.constant 240 : i32
    %277 = tpu.dynamic_rotate %209 by %c240_i32_176 dim 1 : vector<16x256xf32>, i32 -> vector<16x256xf32>
    %c46_177 = arith.constant 46 : index
    %c0_178 = arith.constant 0 : index
    %278 = vector.load %arg2[%c46_177, %c0_178] : memref<48x256xf32, #tpu.memory_space<vmem>>, vector<1x256xf32>
    %279 = vector.broadcast %278 : vector<1x256xf32> to vector<16x256xf32>
    %280 = arith.mulf %277, %279 : vector<16x256xf32>
    %c176_179 = arith.constant 176 : index
    %c0_180 = arith.constant 0 : index
    %281 = vector.load %arg14[%c176_179, %c0_180] : memref<400x256xf32, #tpu.memory_space<vmem>>, vector<16x256xf32>
    tpu.vector_store %arg14[%c176_179, %c0_180], %280 {strides = array<i32>} : memref<400x256xf32, #tpu.memory_space<vmem>>, vector<16x256xf32>,
    %c239_i32 = arith.constant 239 : i32
    %282 = tpu.dynamic_rotate %6 by %c239_i32 dim 1 : vector<8x256xf32>, i32 -> vector<8x256xf32>
    %c47 = arith.constant 47 : index
    %c0_181 = arith.constant 0 : index
    %283 = vector.load %arg2[%c47, %c0_181] : memref<48x256xf32, #tpu.memory_space<vmem>>, vector<1x256xf32>
    %284 = vector.broadcast %283 : vector<1x256xf32> to vector<8x256xf32>
    %285 = arith.mulf %282, %284 : vector<8x256xf32>
    %c192_182 = arith.constant 192 : index
    %c0_183 = arith.constant 0 : index
    %286 = vector.load %arg14[%c192_182, %c0_183] : memref<400x256xf32, #tpu.memory_space<vmem>>, vector<8x256xf32>
    tpu.vector_store %arg14[%c192_182, %c0_183], %285 {strides = array<i32>} : memref<400x256xf32, #tpu.memory_space<vmem>>, vector<8x256xf32>,
    %c239_i32_184 = arith.constant 239 : i32
    %287 = tpu.dynamic_rotate %209 by %c239_i32_184 dim 1 : vector<16x256xf32>, i32 -> vector<16x256xf32>
    %c47_185 = arith.constant 47 : index
    %c0_186 = arith.constant 0 : index
    %288 = vector.load %arg2[%c47_185, %c0_186] : memref<48x256xf32, #tpu.memory_space<vmem>>, vector<1x256xf32>
    %289 = vector.broadcast %288 : vector<1x256xf32> to vector<16x256xf32>
    %290 = arith.mulf %287, %289 : vector<16x256xf32>
    %c200 = arith.constant 200 : index
    %c0_187 = arith.constant 0 : index
    %291 = vector.load %arg14[%c200, %c0_187] : memref<400x256xf32, #tpu.memory_space<vmem>>, vector<16x256xf32>
    tpu.vector_store %arg14[%c200, %c0_187], %290 {strides = array<i32>} : memref<400x256xf32, #tpu.memory_space<vmem>>, vector<16x256xf32>,
    %c0_188 = arith.constant 0 : index
    %c0_189 = arith.constant 0 : index
    %292 = vector.load %arg11[%c0_188, %c0_189] : memref<8x216xf32, #tpu.memory_space<vmem>>, vector<8x216xf32>
    %c0_190 = arith.constant 0 : index
    %c0_191 = arith.constant 0 : index
    %293 = vector.load %arg14[%c0_190, %c0_191] : memref<400x256xf32, #tpu.memory_space<vmem>>, vector<216x256xf32>
    %cst_192 = arith.constant dense<0.000000e+00> : vector<8x256xf32>
    %294 = tpu.matmul %292, %293, %cst_192 {dimension_numbers = #tpu.dot_dimension_numbers<[1], [0], [0], [1], [0, 0, 1, 1], [], []>} : vector<8x216xf32>, vector<216x256xf32>, vector<8x256xf32> -> vector<8x256xf32>
    %c0_193 = arith.constant 0 : index
    %c0_194 = arith.constant 0 : index
    %295 = vector.load %arg12[%c0_193, %c0_194] : memref<8x1xf32, #tpu.memory_space<vmem>>, vector<8x1xf32>
    %296 = vector.broadcast %295 : vector<8x1xf32> to vector<8x256xf32>
    %297 = arith.addf %294, %296 : vector<8x256xf32>
    %298 = arith.addf %297, %8 : vector<8x256xf32>
    %cst_195 = arith.constant 0.000000e+00 : f32
    %299 = vector.broadcast %cst_195 : f32 to vector<8x256xf32>
    %300 = arith.maximumf %298, %299 : vector<8x256xf32>
    %c0_196 = arith.constant 0 : index
    %c0_197 = arith.constant 0 : index
    %301 = vector.load %arg13[%c0_196, %c0_197] : memref<8x256xf32, #tpu.memory_space<vmem>>, vector<8x256xf32>
    tpu.vector_store %arg13[%c0_196, %c0_197], %300 {strides = array<i32>} : memref<8x256xf32, #tpu.memory_space<vmem>>, vector<8x256xf32>,
    return
  }
  func.func @transform_0(%arg0: i32) -> (i32, i32) {
    %c0_i32 = arith.constant 0 : i32
    %c0_i32_0 = arith.constant 0 : i32
    return %c0_i32, %arg0 : i32, i32
  }
  func.func @transform_1(%arg0: i32) -> (i32, i32) {
    %c0_i32 = arith.constant 0 : i32
    %c0_i32_0 = arith.constant 0 : i32
    %c0_i32_1 = arith.constant 0 : i32
    return %c0_i32, %c0_i32_0 : i32, i32
  }
  func.func @transform_2(%arg0: i32) -> (i32, i32) {
    %c0_i32 = arith.constant 0 : i32
    %c0_i32_0 = arith.constant 0 : i32
    %c0_i32_1 = arith.constant 0 : i32
    return %c0_i32, %c0_i32_0 : i32, i32
  }
  func.func @transform_3(%arg0: i32) -> (i32, i32) {
    %c0_i32 = arith.constant 0 : i32
    %c0_i32_0 = arith.constant 0 : i32
    %c0_i32_1 = arith.constant 0 : i32
    return %c0_i32, %c0_i32_0 : i32, i32
  }
  func.func @transform_4(%arg0: i32) -> (i32, i32) {
    %c0_i32 = arith.constant 0 : i32
    %c0_i32_0 = arith.constant 0 : i32
    %c0_i32_1 = arith.constant 0 : i32
    return %c0_i32, %c0_i32_0 : i32, i32
  }
  func.func @transform_5(%arg0: i32) -> (i32, i32) {
    %c0_i32 = arith.constant 0 : i32
    %c0_i32_0 = arith.constant 0 : i32
    %c0_i32_1 = arith.constant 0 : i32
    return %c0_i32, %c0_i32_0 : i32, i32
  }
  func.func @transform_6(%arg0: i32) -> (i32, i32) {
    %c0_i32 = arith.constant 0 : i32
    %c0_i32_0 = arith.constant 0 : i32
    %c0_i32_1 = arith.constant 0 : i32
    return %c0_i32, %c0_i32_0 : i32, i32
  }
  func.func @transform_7(%arg0: i32) -> (i32, i32) {
    %c0_i32 = arith.constant 0 : i32
    %c0_i32_0 = arith.constant 0 : i32
    %c0_i32_1 = arith.constant 0 : i32
    return %c0_i32, %c0_i32_0 : i32, i32
  }
  func.func @transform_8(%arg0: i32) -> (i32, i32) {
    %c0_i32 = arith.constant 0 : i32
    %c0_i32_0 = arith.constant 0 : i32
    %c0_i32_1 = arith.constant 0 : i32
    return %c0_i32, %c0_i32_0 : i32, i32
  }
  func.func @transform_9(%arg0: i32) -> (i32, i32) {
    %c0_i32 = arith.constant 0 : i32
    %c0_i32_0 = arith.constant 0 : i32
    %c0_i32_1 = arith.constant 0 : i32
    return %c0_i32, %c0_i32_0 : i32, i32
  }
  func.func @transform_10(%arg0: i32) -> (i32, i32) {
    %c0_i32 = arith.constant 0 : i32
    %c0_i32_0 = arith.constant 0 : i32
    %c0_i32_1 = arith.constant 0 : i32
    return %c0_i32, %c0_i32_0 : i32, i32
  }
  func.func @transform_11(%arg0: i32) -> (i32, i32) {
    %c0_i32 = arith.constant 0 : i32
    %c0_i32_0 = arith.constant 0 : i32
    %c0_i32_1 = arith.constant 0 : i32
    return %c0_i32, %c0_i32_0 : i32, i32
  }
  func.func @transform_12(%arg0: i32) -> (i32, i32) {
    %c0_i32 = arith.constant 0 : i32
    %c0_i32_0 = arith.constant 0 : i32
    return %c0_i32, %arg0 : i32, i32
  }
}

</mosaic_0001>

<llo_original>
// kernel: e_forward.1
$region0: #{e_forward.1}
  #allocation0 [shape = 'u32[]', space=smem, size = 0x4, offset = 0x4, fixed_abs, tag = 'smem constant byte address 0x4 - core index']
  #allocation1 [shape = 'u32[144,128]{1,0:T(1,128)}', space=vmem, size = 0x12000, scoped, tag = 'internal scratch']
  #allocation2 [shape = 'f32[400,256]{1,0:T(8,128)}', space=vmem, size = 0x64000, scoped, tag = 'scratch operand']
  %s0 = inlined_call_operand.vmem [shape: f32[8,512], index: 0, kind: input, shape index: {}]
  %s1 = inlined_call_operand.vmem [shape: f32[48,256], index: 1, kind: input, shape index: {}]
  %s2 = inlined_call_operand.vmem [shape: f32[32,8], index: 2, kind: input, shape index: {}]
  %s3 = inlined_call_operand.vmem [shape: f32[32,1], index: 3, kind: input, shape index: {}]
  %s4 = inlined_call_operand.vmem [shape: f32[16,112], index: 4, kind: input, shape index: {}]
  %s5 = inlined_call_operand.vmem [shape: f32[16,1], index: 5, kind: input, shape index: {}]
  %s6 = inlined_call_operand.vmem [shape: f32[16,112], index: 6, kind: input, shape index: {}]
  %s7 = inlined_call_operand.vmem [shape: f32[16,1], index: 7, kind: input, shape index: {}]
  %s8 = inlined_call_operand.vmem [shape: f32[16,400], index: 8, kind: input, shape index: {}]
  %s9 = inlined_call_operand.vmem [shape: f32[16,1], index: 9, kind: input, shape index: {}]
  %s10 = inlined_call_operand.vmem [shape: f32[8,216], index: 10, kind: input, shape index: {}]
  %s11 = inlined_call_operand.vmem [shape: f32[8,1], index: 11, kind: input, shape index: {}]
  %s12 = inlined_call_operand.vmem [shape: f32[8,512], index: 12, kind: output, shape index: {}]
  %s13 = sld [smem:[#allocation0]]
  $region81: #{e_forward.1} parent=0
    _
  %s15 = ssub.s32 1, %s13
  %s16 = scalar_select 0, %s15, %s13
  loop: start=0, step=1, limit=4
  $region2: #{e_forward.1} parent=0 // loop_pre_header
    _
  $region3: #{e_forward.1} parent=0 // loop_header
    %s18 = sphi 0, %s22
    %p19 = scmp.ge.s32.totalorder %s18, 4
    %s28 = sphi 0, %s30
    %s31 = sphi 0, %s28
    %s32 = sphi 0, %s31
    %s48 = sphi 0, %s32
    %s52 = sphi 0, %s52
    %s54 = sphi 0, %s52
    %s55 = sphi 0, %s54
    %s69 = sphi 0, %s55
    %s73 = sphi 0, %s73
    %s75 = sphi 0, %s73
    %s76 = sphi 0, %s75
    %s90 = sphi 0, %s76
    %s94 = sphi 0, %s94
    %s96 = sphi 0, %s94
    %s97 = sphi 0, %s96
    %s111 = sphi 0, %s97
    %s115 = sphi 0, %s115
    %s117 = sphi 0, %s115
    %s118 = sphi 0, %s117
    %s132 = sphi 0, %s118
    %s136 = sphi 0, %s136
    %s138 = sphi 0, %s136
    %s139 = sphi 0, %s138
    %s153 = sphi 0, %s139
    %s157 = sphi 0, %s157
    %s159 = sphi 0, %s157
    %s160 = sphi 0, %s159
    %s174 = sphi 0, %s160
    %s178 = sphi 0, %s178
    %s180 = sphi 0, %s178
    %s181 = sphi 0, %s180
    %s195 = sphi 0, %s181
    %s199 = sphi 0, %s199
    %s201 = sphi 0, %s199
    %s202 = sphi 0, %s201
    %s216 = sphi 0, %s202
    %s220 = sphi 0, %s220
    %s222 = sphi 0, %s220
    %s223 = sphi 0, %s222
    %s237 = sphi 0, %s223
    %s241 = sphi 0, %s241
    %s243 = sphi 0, %s241
    %s244 = sphi 0, %s243
    %s258 = sphi 0, %s244
    %s262 = sphi 0, %s262
    %s264 = sphi 0, %s262
    %s265 = sphi 0, %s264
    %s279 = sphi 0, %s265
    %s285 = sphi 0, %s287
    %s288 = sphi 0, %s285
    %s289 = sphi 0, %s288
    %s305 = sphi 0, %s289
  $region4: #{e_forward.1} parent=0 // loop_header_branch
    %21 = sbr.rel (%p19) target = $region8
  $region5: #{e_forward.1} parent=0 // loop_body
    %s23 = ssub.s32 %s18, 1
    %s24 = ssub.s32 %s18, 2
    %s25 = sadd.s32 %s18, 1
    %s26 = ssub.s32 %s18, %s25
    %p27 = scmp.eq.s32.totalorder %s26, 0
    %s29 = sadd.s32 %s28, 1
    %s30 = scalar_select %p27, %s28, %s29
    %p33 = pneg %p27
    %p34 = scmp.eq.s32.totalorder %s18, 1
    %p35 = por %p33, %p34
    %p36 = scmp.ne.s32.totalorder %s28, %s31
    %p37 = scmp.eq.s32.totalorder %s18, 0
    %p38 = por %p36, %p37
    %p39 = scmp.ne.s32.totalorder %s28, %s31
    %p40 = scmp.eq.s32.totalorder %s23, 1
    %p41 = por %p39, %p40
    %p42 = scmp.ne.s32.totalorder %s31, %s32
    %p43 = scmp.eq.s32.totalorder %s23, 0
    %p44 = por %p42, %p43
    %p45 = scmp.ne.s32.totalorder %s31, %s32
    %p46 = scmp.eq.s32.totalorder %s24, 1
    %p47 = por %p45, %p46
    %p49 = scmp.ne.s32.totalorder %s32, %s48
    %p50 = scmp.eq.s32.totalorder %s24, 0
    %p51 = por %p49, %p50
    %s53 = sadd.s32 %s52, 1
    %p56 = scmp.eq.s32.totalorder %s18, 1
    %p57 = scmp.ne.s32.totalorder %s52, %s54
    %p58 = scmp.eq.s32.totalorder %s18, 0
    %p59 = por %p57, %p58
    %p60 = scmp.ne.s32.totalorder %s52, %s54
    %p61 = scmp.eq.s32.totalorder %s23, 1
    %p62 = por %p60, %p61
    %p63 = scmp.ne.s32.totalorder %s54, %s55
    %p64 = scmp.eq.s32.totalorder %s23, 0
    %p65 = por %p63, %p64
    %p66 = scmp.ne.s32.totalorder %s54, %s55
    %p67 = scmp.eq.s32.totalorder %s24, 1
    %p68 = por %p66, %p67
    %p70 = scmp.ne.s32.totalorder %s55, %s69
    %p71 = scmp.eq.s32.totalorder %s24, 0
    %p72 = por %p70, %p71
    %s74 = sadd.s32 %s73, 1
    %p77 = scmp.eq.s32.totalorder %s18, 1
    %p78 = scmp.ne.s32.totalorder %s73, %s75
    %p79 = scmp.eq.s32.totalorder %s18, 0
    %p80 = por %p78, %p79
    %p81 = scmp.ne.s32.totalorder %s73, %s75
    %p82 = scmp.eq.s32.totalorder %s23, 1
    %p83 = por %p81, %p82
    %p84 = scmp.ne.s32.totalorder %s75, %s76
    %p85 = scmp.eq.s32.totalorder %s23, 0
    %p86 = por %p84, %p85
    %p87 = scmp.ne.s32.totalorder %s75, %s76
    %p88 = scmp.eq.s32.totalorder %s24, 1
    %p89 = por %p87, %p88
    %p91 = scmp.ne.s32.totalorder %s76, %s90
    %p92 = scmp.eq.s32.totalorder %s24, 0
    %p93 = por %p91, %p92
    %s95 = sadd.s32 %s94, 1
    %p98 = scmp.eq.s32.totalorder %s18, 1
    %p99 = scmp.ne.s32.totalorder %s94, %s96
    %p100 = scmp.eq.s32.totalorder %s18, 0
    %p101 = por %p99, %p100
    %p102 = scmp.ne.s32.totalorder %s94, %s96
    %p103 = scmp.eq.s32.totalorder %s23, 1
    %p104 = por %p102, %p103
    %p105 = scmp.ne.s32.totalorder %s96, %s97
    %p106 = scmp.eq.s32.totalorder %s23, 0
    %p107 = por %p105, %p106
    %p108 = scmp.ne.s32.totalorder %s96, %s97
    %p109 = scmp.eq.s32.totalorder %s24, 1
    %p110 = por %p108, %p109
    %p112 = scmp.ne.s32.totalorder %s97, %s111
    %p113 = scmp.eq.s32.totalorder %s24, 0
    %p114 = por %p112, %p113
    %s116 = sadd.s32 %s115, 1
    %p119 = scmp.eq.s32.totalorder %s18, 1
    %p120 = scmp.ne.s32.totalorder %s115, %s117
    %p121 = scmp.eq.s32.totalorder %s18, 0
    %p122 = por %p120, %p121
    %p123 = scmp.ne.s32.totalorder %s115, %s117
    %p124 = scmp.eq.s32.totalorder %s23, 1
    %p125 = por %p123, %p124
    %p126 = scmp.ne.s32.totalorder %s117, %s118
    %p127 = scmp.eq.s32.totalorder %s23, 0
    %p128 = por %p126, %p127
    %p129 = scmp.ne.s32.totalorder %s117, %s118
    %p130 = scmp.eq.s32.totalorder %s24, 1
    %p131 = por %p129, %p130
    %p133 = scmp.ne.s32.totalorder %s118, %s132
    %p134 = scmp.eq.s32.totalorder %s24, 0
    %p135 = por %p133, %p134
    %s137 = sadd.s32 %s136, 1
    %p140 = scmp.eq.s32.totalorder %s18, 1
    %p141 = scmp.ne.s32.totalorder %s136, %s138
    %p142 = scmp.eq.s32.totalorder %s18, 0
    %p143 = por %p141, %p142
    %p144 = scmp.ne.s32.totalorder %s136, %s138
    %p145 = scmp.eq.s32.totalorder %s23, 1
    %p146 = por %p144, %p145
    %p147 = scmp.ne.s32.totalorder %s138, %s139
    %p148 = scmp.eq.s32.totalorder %s23, 0
    %p149 = por %p147, %p148
    %p150 = scmp.ne.s32.totalorder %s138, %s139
    %p151 = scmp.eq.s32.totalorder %s24, 1
    %p152 = por %p150, %p151
    %p154 = scmp.ne.s32.totalorder %s139, %s153
    %p155 = scmp.eq.s32.totalorder %s24, 0
    %p156 = por %p154, %p155
    %s158 = sadd.s32 %s157, 1
    %p161 = scmp.eq.s32.totalorder %s18, 1
    %p162 = scmp.ne.s32.totalorder %s157, %s159
    %p163 = scmp.eq.s32.totalorder %s18, 0
    %p164 = por %p162, %p163
    %p165 = scmp.ne.s32.totalorder %s157, %s159
    %p166 = scmp.eq.s32.totalorder %s23, 1
    %p167 = por %p165, %p166
    %p168 = scmp.ne.s32.totalorder %s159, %s160
    %p169 = scmp.eq.s32.totalorder %s23, 0
    %p170 = por %p168, %p169
    %p171 = scmp.ne.s32.totalorder %s159, %s160
    %p172 = scmp.eq.s32.totalorder %s24, 1
    %p173 = por %p171, %p172
    %p175 = scmp.ne.s32.totalorder %s160, %s174
    %p176 = scmp.eq.s32.totalorder %s24, 0
    %p177 = por %p175, %p176
    %s179 = sadd.s32 %s178, 1
    %p182 = scmp.eq.s32.totalorder %s18, 1
    %p183 = scmp.ne.s32.totalorder %s178, %s180
    %p184 = scmp.eq.s32.totalorder %s18, 0
    %p185 = por %p183, %p184
    %p186 = scmp.ne.s32.totalorder %s178, %s180
    %p187 = scmp.eq.s32.totalorder %s23, 1
    %p188 = por %p186, %p187
    %p189 = scmp.ne.s32.totalorder %s180, %s181
    %p190 = scmp.eq.s32.totalorder %s23, 0
    %p191 = por %p189, %p190
    %p192 = scmp.ne.s32.totalorder %s180, %s181
    %p193 = scmp.eq.s32.totalorder %s24, 1
    %p194 = por %p192, %p193
    %p196 = scmp.ne.s32.totalorder %s181, %s195
    %p197 = scmp.eq.s32.totalorder %s24, 0
    %p198 = por %p196, %p197
    %s200 = sadd.s32 %s199, 1
    %p203 = scmp.eq.s32.totalorder %s18, 1
    %p204 = scmp.ne.s32.totalorder %s199, %s201
    %p205 = scmp.eq.s32.totalorder %s18, 0
    %p206 = por %p204, %p205
    %p207 = scmp.ne.s32.totalorder %s199, %s201
    %p208 = scmp.eq.s32.totalorder %s23, 1
    %p209 = por %p207, %p208
    %p210 = scmp.ne.s32.totalorder %s201, %s202
    %p211 = scmp.eq.s32.totalorder %s23, 0
    %p212 = por %p210, %p211
    %p213 = scmp.ne.s32.totalorder %s201, %s202
    %p214 = scmp.eq.s32.totalorder %s24, 1
    %p215 = por %p213, %p214
    %p217 = scmp.ne.s32.totalorder %s202, %s216
    %p218 = scmp.eq.s32.totalorder %s24, 0
    %p219 = por %p217, %p218
    %s221 = sadd.s32 %s220, 1
    %p224 = scmp.eq.s32.totalorder %s18, 1
    %p225 = scmp.ne.s32.totalorder %s220, %s222
    %p226 = scmp.eq.s32.totalorder %s18, 0
    %p227 = por %p225, %p226
    %p228 = scmp.ne.s32.totalorder %s220, %s222
    %p229 = scmp.eq.s32.totalorder %s23, 1
    %p230 = por %p228, %p229
    %p231 = scmp.ne.s32.totalorder %s222, %s223
    %p232 = scmp.eq.s32.totalorder %s23, 0
    %p233 = por %p231, %p232
    %p234 = scmp.ne.s32.totalorder %s222, %s223
    %p235 = scmp.eq.s32.totalorder %s24, 1
    %p236 = por %p234, %p235
    %p238 = scmp.ne.s32.totalorder %s223, %s237
    %p239 = scmp.eq.s32.totalorder %s24, 0
    %p240 = por %p238, %p239
    %s242 = sadd.s32 %s241, 1
    %p245 = scmp.eq.s32.totalorder %s18, 1
    %p246 = scmp.ne.s32.totalorder %s241, %s243
    %p247 = scmp.eq.s32.totalorder %s18, 0
    %p248 = por %p246, %p247
    %p249 = scmp.ne.s32.totalorder %s241, %s243
    %p250 = scmp.eq.s32.totalorder %s23, 1
    %p251 = por %p249, %p250
    %p252 = scmp.ne.s32.totalorder %s243, %s244
    %p253 = scmp.eq.s32.totalorder %s23, 0
    %p254 = por %p252, %p253
    %p255 = scmp.ne.s32.totalorder %s243, %s244
    %p256 = scmp.eq.s32.totalorder %s24, 1
    %p257 = por %p255, %p256
    %p259 = scmp.ne.s32.totalorder %s244, %s258
    %p260 = scmp.eq.s32.totalorder %s24, 0
    %p261 = por %p259, %p260
    %s263 = sadd.s32 %s262, 1
    %p266 = scmp.eq.s32.totalorder %s18, 1
    %p267 = scmp.ne.s32.totalorder %s262, %s264
    %p268 = scmp.eq.s32.totalorder %s18, 0
    %p269 = por %p267, %p268
    %p270 = scmp.ne.s32.totalorder %s262, %s264
    %p271 = scmp.eq.s32.totalorder %s23, 1
    %p272 = por %p270, %p271
    %p273 = scmp.ne.s32.totalorder %s264, %s265
    %p274 = scmp.eq.s32.totalorder %s23, 0
    %p275 = por %p273, %p274
    %p276 = scmp.ne.s32.totalorder %s264, %s265
    %p277 = scmp.eq.s32.totalorder %s24, 1
    %p278 = por %p276, %p277
    %p280 = scmp.ne.s32.totalorder %s265, %s279
    %p281 = scmp.eq.s32.totalorder %s24, 0
    %p282 = por %p280, %p281
    %s283 = ssub.s32 %s18, %s25
    %p284 = scmp.eq.s32.totalorder %s283, 0
    %s286 = sadd.s32 %s285, 1
    %s287 = scalar_select %p284, %s285, %s286
    %p290 = pneg %p284
    %p291 = scmp.eq.s32.totalorder %s18, 1
    %p292 = por %p290, %p291
    %p293 = scmp.ne.s32.totalorder %s285, %s288
    %p294 = scmp.eq.s32.totalorder %s18, 0
    %p295 = por %p293, %p294
    %p296 = scmp.ne.s32.totalorder %s285, %s288
    %p297 = scmp.eq.s32.totalorder %s23, 1
    %p298 = por %p296, %p297
    %p299 = scmp.ne.s32.totalorder %s288, %s289
    %p300 = scmp.eq.s32.totalorder %s23, 0
    %p301 = por %p299, %p300
    %p302 = scmp.ne.s32.totalorder %s288, %s289
    %p303 = scmp.eq.s32.totalorder %s24, 1
    %p304 = por %p302, %p303
    %p306 = scmp.ne.s32.totalorder %s289, %s305
    %p307 = scmp.eq.s32.totalorder %s24, 0
    %p308 = por %p306, %p307
    %p309 = scmp.le.s32.totalorder 1, %s18
    %p310 = scmp.lt.s32.totalorder %s18, 3
    %p311 = pnand %p309, %p310
    %p312 = pneg %p311
    // Predicated region
    $region9: #{e_forward.1} parent=5 // pred_check
      _
    $region10: #{e_forward.1} parent=5 // pred_check_branch
      %314 = sbr.rel (%p311) target = $region12
    $region11: #{e_forward.1} parent=5 // pred_region
      %s315 = ssub.s32 %s18, 1
      // Predicated region
      $region13: #{e_forward.1} parent=11 // pred_check
        %p316 = pneg %p65
      $region14: #{e_forward.1} parent=11 // pred_check_branch
        %318 = sbr.rel (%p316) target = $region16
      $region15: #{e_forward.1} parent=11 // pred_region
        _
      $region16: #{e_forward.1} parent=11 // pred_fallthru
        _
      // Predicated region
      $region17: #{e_forward.1} parent=11 // pred_check
        %p319 = pneg %p86
      $region18: #{e_forward.1} parent=11 // pred_check_branch
        %321 = sbr.rel (%p319) target = $region20
      $region19: #{e_forward.1} parent=11 // pred_region
        _
      $region20: #{e_forward.1} parent=11 // pred_fallthru
        _
      // Predicated region
      $region21: #{e_forward.1} parent=11 // pred_check
        %p322 = pneg %p107
      $region22: #{e_forward.1} parent=11 // pred_check_branch
        %324 = sbr.rel (%p322) target = $region24
      $region23: #{e_forward.1} parent=11 // pred_region
        _
      $region24: #{e_forward.1} parent=11 // pred_fallthru
        _
      // Predicated region
      $region25: #{e_forward.1} parent=11 // pred_check
        %p325 = pneg %p128
      $region26: #{e_forward.1} parent=11 // pred_check_branch
        %327 = sbr.rel (%p325) target = $region28
      $region27: #{e_forward.1} parent=11 // pred_region
        _
      $region28: #{e_forward.1} parent=11 // pred_fallthru
        _
      // Predicated region
      $region29: #{e_forward.1} parent=11 // pred_check
        %p328 = pneg %p149
      $region30: #{e_forward.1} parent=11 // pred_check_branch
        %330 = sbr.rel (%p328) target = $region32
      $region31: #{e_forward.1} parent=11 // pred_region
        _
      $region32: #{e_forward.1} parent=11 // pred_fallthru
        _
      // Predicated region
      $region33: #{e_forward.1} parent=11 // pred_check
        %p331 = pneg %p170
      $region34: #{e_forward.1} parent=11 // pred_check_branch
        %333 = sbr.rel (%p331) target = $region36
      $region35: #{e_forward.1} parent=11 // pred_region
        _
      $region36: #{e_forward.1} parent=11 // pred_fallthru
        _
      // Predicated region
      $region37: #{e_forward.1} parent=11 // pred_check
        %p334 = pneg %p191
      $region38: #{e_forward.1} parent=11 // pred_check_branch
        %336 = sbr.rel (%p334) target = $region40
      $region39: #{e_forward.1} parent=11 // pred_region
        _
      $region40: #{e_forward.1} parent=11 // pred_fallthru
        _
      // Predicated region
      $region41: #{e_forward.1} parent=11 // pred_check
        %p337 = pneg %p212
      $region42: #{e_forward.1} parent=11 // pred_check_branch
        %339 = sbr.rel (%p337) target = $region44
      $region43: #{e_forward.1} parent=11 // pred_region
        _
      $region44: #{e_forward.1} parent=11 // pred_fallthru
        _
      // Predicated region
      $region45: #{e_forward.1} parent=11 // pred_check
        %p340 = pneg %p233
      $region46: #{e_forward.1} parent=11 // pred_check_branch
        %342 = sbr.rel (%p340) target = $region48
      $region47: #{e_forward.1} parent=11 // pred_region
        _
      $region48: #{e_forward.1} parent=11 // pred_fallthru
        _
      // Predicated region
      $region49: #{e_forward.1} parent=11 // pred_check
        %p343 = pneg %p254
      $region50: #{e_forward.1} parent=11 // pred_check_branch
        %345 = sbr.rel (%p343) target = $region52
      $region51: #{e_forward.1} parent=11 // pred_region
        _
      $region52: #{e_forward.1} parent=11 // pred_fallthru
        _
      // Predicated region
      $region53: #{e_forward.1} parent=11 // pred_check
        %p346 = pneg %p275
      $region54: #{e_forward.1} parent=11 // pred_check_branch
        %348 = sbr.rel (%p346) target = $region56
      $region55: #{e_forward.1} parent=11 // pred_region
        _
      $region56: #{e_forward.1} parent=11 // pred_fallthru
        _
    $region12: #{e_forward.1} parent=5 // pred_fallthru
      _
    %p349 = scmp.lt.s32.totalorder %s18, 2
    // Predicated region
    $region57: #{e_forward.1} parent=5 // pred_check
      %p350 = pneg %p349
    $region58: #{e_forward.1} parent=5 // pred_check_branch
      %352 = sbr.rel (%p350) target = $region60
    $region59: #{e_forward.1} parent=5 // pred_region
      // Predicated region
      $region61: #{e_forward.1} parent=59 // pred_check
        %p353 = pneg %p38
      $region62: #{e_forward.1} parent=59 // pred_check_branch
        %355 = sbr.rel (%p353) target = $region64
      $region63: #{e_forward.1} parent=59 // pred_region
        %s356 = smul.u32 2, %s18
        %p357 = scmp.lt.s32.totalorder %s356, 3
        %s358 = scalar_select %p357, %s356, 3
        %s359 = smul.addr %s358, 8
        %s360 = scalar_lea.vmem %s0, %s359
        %s361 = smul.u32 2, %s18
      $region64: #{e_forward.1} parent=59 // pred_fallthru
        _
    $region60: #{e_forward.1} parent=5 // pred_fallthru
      _
    %p362 = scmp.le.s32.totalorder 1, %s18
    %p363 = scmp.lt.s32.totalorder %s18, 3
    %p364 = pnand %p362, %p363
    %p365 = pneg %p364
    // Predicated region
    $region65: #{e_forward.1} parent=5 // pred_check
      _
    $region66: #{e_forward.1} parent=5 // pred_check_branch
      %367 = sbr.rel (%p364) target = $region68
    $region67: #{e_forward.1} parent=5 // pred_region
      %s368 = ssub.s32 %s18, 1
      %s369 = smul.u32 2, %s23
      %p370 = scmp.lt.s32.totalorder %s369, 3
      %s371 = scalar_select %p370, %s369, 3
      %s372 = smul.addr %s371, 8
      %s373 = scalar_lea.vmem %s0, %s372
      %p374 = pneg %p44
      %p375 = pneg %p41
      %p376 = pneg %p65
      %p377 = pneg %p62
      %p378 = pneg %p86
      %p379 = pneg %p83
      %p380 = pneg %p107
      %p381 = pneg %p104
      %p382 = pneg %p128
      %p383 = pneg %p125
      %p384 = pneg %p149
      %p385 = pneg %p146
      %p386 = pneg %p170
      %p387 = pneg %p167
      %p388 = pneg %p191
      %p389 = pneg %p188
      %p390 = pneg %p212
      %p391 = pneg %p209
      %p392 = pneg %p233
      %p393 = pneg %p230
      %p394 = pneg %p254
      %p395 = pneg %p251
      %p396 = pneg %p275
      %p397 = pneg %p272
      %p398 = pneg %p301
      %p399 = pneg %p298
      %s400 = smul.u32 2, %s23
      %p401 = scmp.lt.s32.totalorder %s400, 3
      %s402 = scalar_select %p401, %s400, 3
      %s403 = smul.addr %s402, 8
      %s404 = scalar_lea.vmem %s12, %s403
      %s405 = smul.u32 2, %s23
      %p406 = scmp.lt.s32.totalorder %s405, 3
      %s407 = scalar_select %p406, %s405, 3
      %s408 = smul.addr %s407, 8
      %s409 = scalar_lea.vmem %s0, %s408
      %s410 = smul.u32 2, %s23
      %s411 = smul.u32 2, %s23
      %p412 = scmp.lt.s32.totalorder %s411, 3
      %s413 = scalar_select %p412, %s411, 3
      %s414 = smul.addr %s413, 8
      %s415 = scalar_lea.vmem %s12, %s414
      %s416 = smul.u32 2, %s23
      %v417 = vld [vmem:[%s2] sm:$0xff]
      %v418 = vld [vmem:[%s2 + $0x8] sm:$0xff]
      %v419 = vld [vmem:[%s2 + $0x10] sm:$0xff]
      %v420 = vld [vmem:[%s2 + $0x18] sm:$0xff]
      %v421 = vld [vmem:[%s409] sm:$0xff]
      %v422 = vld [vmem:[%s409 + $0x8] sm:$0xff]
      %v423 = vld [vmem:[%s3] sm:$0xff]
      %v424 = vld [vmem:[%s3 + $0x8] sm:$0xff]
      %v425 = vld [vmem:[%s3 + $0x10] sm:$0xff]
      %v426 = vld [vmem:[%s3 + $0x18] sm:$0xff]
      %428 = vset.pattern.permute.xlu0 0
      %429 = vperm.xlu0 %428, %v423
      %v430 = vpop.permute.xlu0 %429
      %433 = vset.pattern.permute.xlu0 0
      %434 = vperm.xlu0 %433, %v424
      %v435 = vpop.permute.xlu0 %434
      %438 = vset.pattern.permute.xlu0 0
      %439 = vperm.xlu0 %438, %v425
      %v440 = vpop.permute.xlu0 %439
      %443 = vset.pattern.permute.xlu0 0
      %444 = vperm.xlu0 %443, %v426
      %v445 = vpop.permute.xlu0 %444
      %vm447 = vcmask 64512
      %v449 = vsel %vm447, %v417, 0
      %v452 = vsel %vm447, %v418, 0
      %v455 = vsel %vm447, %v419, 0
      %v458 = vsel %vm447, %v420, 0
      %460 = vmatprep.subr.mxu0 %v422
      %461 = vmatpush1.msra.mxu0 %v421
      %462 = vmatprep.subr.mxu0 0.0
      %463 = vmatpush1.msra.mxu0 0.0
      %464 = vmatprep.subr.mxu0 0.0
      %465 = vmatpush1.msra.mxu0 0.0
      %466 = vmatprep.subr.mxu0 0.0
      %467 = vmatpush1.msra.mxu0 0.0
      %468 = vmatprep.subr.mxu0 0.0
      %469 = vmatpush1.msra.mxu0 0.0
      %470 = vmatprep.subr.mxu0 0.0
      %471 = vmatpush1.msra.mxu0 0.0
      %472 = vmatprep.subr.mxu0 0.0
      %473 = vmatpush1.msra.mxu0 0.0
      %474 = vmatprep.subr.mxu0 0.0
      %475 = vmatpush1.msra.mxu0 0.0
      %476 = vmatprep.subr.mxu0 0.0
      %477 = vmatpush1.msra.mxu0 0.0
      %478 = vmatprep.subr.mxu0 0.0
      %479 = vmatpush1.msra.mxu0 0.0
      %480 = vmatprep.subr.mxu0 0.0
      %481 = vmatpush1.msra.mxu0 0.0
      %482 = vmatprep.subr.mxu0 0.0
      %483 = vmatpush1.msra.mxu0 0.0
      %484 = vmatprep.subr.mxu0 0.0
      %485 = vmatpush1.msra.mxu0 0.0
      %486 = vmatprep.subr.mxu0 0.0
      %487 = vmatpush1.msra.mxu0 0.0
      %488 = vmatprep.subr.mxu0 0.0
      %489 = vmatpush1.msra.mxu0 0.0
      %490 = vmatprep.subr.mxu0 0.0
      %491 = vmatpush1.msra.mxu0 0.0
      %492 = vmatprep.subr.mxu0 0.0
      %493 = vmatpush1.msra.mxu0 0.0
      %494 = vmatprep.subr.mxu0 0.0
      %495 = vmatpush1.msra.mxu0 0.0
      %496 = vmatprep.subr.mxu0 0.0
      %497 = vmatpush1.msra.mxu0 0.0
      %498 = vmatprep.subr.mxu0 0.0
      %499 = vmatpush1.msra.mxu0 0.0
      %500 = vmatprep.subr.mxu0 0.0
      %501 = vmatpush1.msra.mxu0 0.0
      %502 = vmatprep.subr.mxu0 0.0
      %503 = vmatpush1.msra.mxu0 0.0
      %504 = vmatprep.subr.mxu0 0.0
      %505 = vmatpush1.msra.mxu0 0.0
      %506 = vmatprep.subr.mxu0 0.0
      %507 = vmatpush1.msra.mxu0 0.0
      %508 = vmatprep.subr.mxu0 0.0
      %509 = vmatpush1.msra.mxu0 0.0
      %510 = vmatprep.subr.mxu0 0.0
      %511 = vmatpush1.msra.mxu0 0.0
      %512 = vmatprep.subr.mxu0 0.0
      %513 = vmatpush1.msra.mxu0 0.0
      %514 = vmatprep.subr.mxu0 0.0
      %515 = vmatpush1.msra.mxu0 0.0
      %516 = vmatprep.subr.mxu0 0.0
      %517 = vmatpush1.msra.mxu0 0.0
      %518 = vmatprep.subr.mxu0 0.0
      %519 = vmatpush1.msra.mxu0 0.0
      %520 = vmatprep.subr.mxu0 0.0
      %521 = vmatpush1.msra.mxu0 0.0
      %522 = vmatprep.subr.mxu0 0.0
      %523 = vmatpush1.msra.mxu0 0.0
      %524 = vmatprep.mubr.f32.mxu0 0.0
      %525 = vmatmul.mubr.f32.gmra.mrb[0].mxu0 %v449
      %v526 = vpop.f32.mrb[0].mxu0
      %v527 = vadd.f32 %v430, %v526
      %v528 = vpop.f32.mrb[0].mxu0
      %v529 = vadd.f32 %v430, %v528
      %530 = vmatprep.mubr.f32.mxu0 0.0
      %531 = vmatmul.mubr.f32.gmra.mrb[0].mxu0 %v452
      %v532 = vpop.f32.mrb[0].mxu0
      %v533 = vadd.f32 %v435, %v532
      %v534 = vpop.f32.mrb[0].mxu0
      %v535 = vadd.f32 %v435, %v534
      %536 = vmatprep.mubr.f32.mxu0 0.0
      %537 = vmatmul.mubr.f32.gmra.mrb[0].mxu0 %v455
      %v538 = vpop.f32.mrb[0].mxu0
      %v539 = vadd.f32 %v440, %v538
      %v540 = vpop.f32.mrb[0].mxu0
      %v541 = vadd.f32 %v440, %v540
      %542 = vmatprep.mubr.f32.mxu0 0.0
      %543 = vmatmul.mubr.f32.gmra.mrb[0].mxu0 %v458
      %v544 = vpop.f32.mrb[0].mxu0
      %v545 = vadd.f32 %v445, %v544
      %v546 = vpop.f32.mrb[0].mxu0
      %v547 = vadd.f32 %v445, %v546
      %548 = vdwg.mxu0
      %549 = vrot.lane.b32.xlu0 %v533, 3
      %v550 = vpop.permute.xlu0 %549
      %551 = vrot.lane.b32.xlu0 %v539, 3
      %v552 = vpop.permute.xlu0 %551
      %553 = vrot.lane.b32.xlu0 %v535, 3
      %v554 = vpop.permute.xlu0 %553
      %555 = vrot.lane.b32.xlu0 %v541, 3
      %v556 = vpop.permute.xlu0 %555
      %v557 = vlaneseq
      %v558 = vand.u32 %v557, 127
      %vm559 = vcmp.lt.s32.totalorder %v558, 3
      %v560 = vsel %vm559, %v550, %v554
      %v561 = vsel %vm559, %v552, %v556
      %v562 = vsel %vm559, %v554, %v550
      %v563 = vsel %vm559, %v556, %v552
      %v564 = vld [vmem:[%s1] ss:$8 sm:$0x3]
      %v566 = vlaneseq
      %v567 = vshrl.u32 %v566, 7
      %v568 = vsub.s32 0, %v567
      %v569 = vrot.slane %v564, %v568
      %v570 = vlaneseq
      %v571 = vshrl.u32 %v570, 7
      %v572 = vsub.s32 1, %v571
      %v573 = vrot.slane %v564, %v572
      %v576 = vmul.f32 %v562, %v569
      %v577 = vmul.f32 %v560, %v573
      %v578 = vmul.f32 %v563, %v569
      %v579 = vmul.f32 %v561, %v573
      %580 = vst [vmem:[#allocation2] sm:$0xff] %v576
      %581 = vst [vmem:[#allocation2 + $0x8] sm:$0xff] %v577
      %582 = vst [vmem:[#allocation2 + $0x10] sm:$0xff] %v578
      %583 = vst [vmem:[#allocation2 + $0x18] sm:$0xff] %v579
      %584 = vrot.lane.b32.xlu0 %v533, 2
      %v585 = vpop.permute.xlu0 %584
      %586 = vrot.lane.b32.xlu0 %v539, 2
      %v587 = vpop.permute.xlu0 %586
      %588 = vrot.lane.b32.xlu0 %v535, 2
      %v589 = vpop.permute.xlu0 %588
      %590 = vrot.lane.b32.xlu0 %v541, 2
      %v591 = vpop.permute.xlu0 %590
      %vm592 = vcmp.lt.s32.totalorder %v558, 2
      %v593 = vsel %vm592, %v585, %v589
      %v594 = vsel %vm592, %v587, %v591
      %v595 = vsel %vm592, %v589, %v585
      %v596 = vsel %vm592, %v591, %v587
      %s597 = scalar_lea.vmem %s1, 1
      %v598 = vld [vmem:[%s597] ss:$8 sm:$0x3]
      %v600 = vlaneseq
      %v601 = vshrl.u32 %v600, 7
      %v602 = vsub.s32 0, %v601
      %v603 = vrot.slane %v598, %v602
      %v604 = vlaneseq
      %v605 = vshrl.u32 %v604, 7
      %v606 = vsub.s32 1, %v605
      %v607 = vrot.slane %v598, %v606
      %v610 = vmul.f32 %v595, %v603
      %v611 = vmul.f32 %v593, %v607
      %v612 = vmul.f32 %v596, %v603
      %v613 = vmul.f32 %v594, %v607
      %614 = vst [vmem:[#allocation2 + $0x20] sm:$0xff] %v610
      %615 = vst [vmem:[#allocation2 + $0x28] sm:$0xff] %v611
      %616 = vst [vmem:[#allocation2 + $0x30] sm:$0xff] %v612
      %617 = vst [vmem:[#allocation2 + $0x38] sm:$0xff] %v613
      %618 = vrot.lane.b32.xlu0 %v533, 1
      %v619 = vpop.permute.xlu0 %618
      %620 = vrot.lane.b32.xlu0 %v539, 1
      %v621 = vpop.permute.xlu0 %620
      %622 = vrot.lane.b32.xlu0 %v535, 1
      %v623 = vpop.permute.xlu0 %622
      %624 = vrot.lane.b32.xlu0 %v541, 1
      %v625 = vpop.permute.xlu0 %624
      %vm626 = vcmp.lt.s32.totalorder %v558, 1
      %v627 = vsel %vm626, %v619, %v623
      %v628 = vsel %vm626, %v621, %v625
      %v629 = vsel %vm626, %v623, %v619
      %v630 = vsel %vm626, %v625, %v621
      %s631 = scalar_lea.vmem %s1, 2
      %v632 = vld [vmem:[%s631] ss:$8 sm:$0x3]
      %v634 = vlaneseq
      %v635 = vshrl.u32 %v634, 7
      %v636 = vsub.s32 0, %v635
      %v637 = vrot.slane %v632, %v636
      %v638 = vlaneseq
      %v639 = vshrl.u32 %v638, 7
      %v640 = vsub.s32 1, %v639
      %v641 = vrot.slane %v632, %v640
      %v644 = vmul.f32 %v629, %v637
      %v645 = vmul.f32 %v627, %v641
      %v646 = vmul.f32 %v630, %v637
      %v647 = vmul.f32 %v628, %v641
      %648 = vst [vmem:[#allocation2 + $0x40] sm:$0xff] %v644
      %649 = vst [vmem:[#allocation2 + $0x48] sm:$0xff] %v645
      %650 = vst [vmem:[#allocation2 + $0x50] sm:$0xff] %v646
      %651 = vst [vmem:[#allocation2 + $0x58] sm:$0xff] %v647
      %652 = vst [vmem:[#allocation2 + $0x60] sm:$0xff] %v533
      %653 = vst [vmem:[#allocation2 + $0x68] sm:$0xff] %v535
      %654 = vst [vmem:[#allocation2 + $0x70] sm:$0xff] %v539
      %655 = vst [vmem:[#allocation2 + $0x78] sm:$0xff] %v541
      %656 = vrot.lane.b32.xlu0 %v533, 127
      %v657 = vpop.permute.xlu0 %656
      %658 = vrot.lane.b32.xlu0 %v539, 127
      %v659 = vpop.permute.xlu0 %658
      %660 = vrot.lane.b32.xlu0 %v535, 127
      %v661 = vpop.permute.xlu0 %660
      %662 = vrot.lane.b32.xlu0 %v541, 127
      %v663 = vpop.permute.xlu0 %662
      %vm664 = vcmp.lt.s32.totalorder %v558, 127
      %v665 = vsel %vm664, %v657, %v661
      %v666 = vsel %vm664, %v659, %v663
      %v667 = vsel %vm664, %v661, %v657
      %v668 = vsel %vm664, %v663, %v659
      %s669 = scalar_lea.vmem %s1, 4
      %v670 = vld [vmem:[%s669] ss:$8 sm:$0x3]
      %v672 = vlaneseq
      %v673 = vshrl.u32 %v672, 7
      %v674 = vsub.s32 0, %v673
      %v675 = vrot.slane %v670, %v674
      %v676 = vlaneseq
      %v677 = vshrl.u32 %v676, 7
      %v678 = vsub.s32 1, %v677
      %v679 = vrot.slane %v670, %v678
      %v682 = vmul.f32 %v665, %v675
      %v683 = vmul.f32 %v667, %v679
      %v684 = vmul.f32 %v666, %v675
      %v685 = vmul.f32 %v668, %v679
      %686 = vst [vmem:[#allocation2 + $0x80] sm:$0xff] %v682
      %687 = vst [vmem:[#allocation2 + $0x88] sm:$0xff] %v683
      %688 = vst [vmem:[#allocation2 + $0x90] sm:$0xff] %v684
      %689 = vst [vmem:[#allocation2 + $0x98] sm:$0xff] %v685
      %690 = vrot.lane.b32.xlu0 %v533, 126
      %v691 = vpop.permute.xlu0 %690
      %692 = vrot.lane.b32.xlu0 %v539, 126
      %v693 = vpop.permute.xlu0 %692
      %694 = vrot.lane.b32.xlu0 %v535, 126
      %v695 = vpop.permute.xlu0 %694
      %696 = vrot.lane.b32.xlu0 %v541, 126
      %v697 = vpop.permute.xlu0 %696
      %vm698 = vcmp.lt.s32.totalorder %v558, 126
      %v699 = vsel %vm698, %v691, %v695
      %v700 = vsel %vm698, %v693, %v697
      %v701 = vsel %vm698, %v695, %v691
      %v702 = vsel %vm698, %v697, %v693
      %s703 = scalar_lea.vmem %s1, 5
      %v704 = vld [vmem:[%s703] ss:$8 sm:$0x3]
      %v706 = vlaneseq
      %v707 = vshrl.u32 %v706, 7
      %v708 = vsub.s32 0, %v707
      %v709 = vrot.slane %v704, %v708
      %v710 = vlaneseq
      %v711 = vshrl.u32 %v710, 7
      %v712 = vsub.s32 1, %v711
      %v713 = vrot.slane %v704, %v712
      %v716 = vmul.f32 %v699, %v709
      %v717 = vmul.f32 %v701, %v713
      %v718 = vmul.f32 %v700, %v709
      %v719 = vmul.f32 %v702, %v713
      %720 = vst [vmem:[#allocation2 + $0xa0] sm:$0xff] %v716
      %721 = vst [vmem:[#allocation2 + $0xa8] sm:$0xff] %v717
      %722 = vst [vmem:[#allocation2 + $0xb0] sm:$0xff] %v718
      %723 = vst [vmem:[#allocation2 + $0xb8] sm:$0xff] %v719
      %724 = vrot.lane.b32.xlu0 %v533, 125
      %v725 = vpop.permute.xlu0 %724
      %726 = vrot.lane.b32.xlu0 %v539, 125
      %v727 = vpop.permute.xlu0 %726
      %728 = vrot.lane.b32.xlu0 %v535, 125
      %v729 = vpop.permute.xlu0 %728
      %730 = vrot.lane.b32.xlu0 %v541, 125
      %v731 = vpop.permute.xlu0 %730
      %vm732 = vcmp.lt.s32.totalorder %v558, 125
      %v733 = vsel %vm732, %v725, %v729
      %v734 = vsel %vm732, %v727, %v731
      %v735 = vsel %vm732, %v729, %v725
      %v736 = vsel %vm732, %v731, %v727
      %s737 = scalar_lea.vmem %s1, 6
      %v738 = vld [vmem:[%s737] ss:$8 sm:$0x3]
      %v740 = vlaneseq
      %v741 = vshrl.u32 %v740, 7
      %v742 = vsub.s32 0, %v741
      %v743 = vrot.slane %v738, %v742
      %v744 = vlaneseq
      %v745 = vshrl.u32 %v744, 7
      %v746 = vsub.s32 1, %v745
      %v747 = vrot.slane %v738, %v746
      %v750 = vmul.f32 %v733, %v743
      %v751 = vmul.f32 %v735, %v747
      %v752 = vmul.f32 %v734, %v743
      %v753 = vmul.f32 %v736, %v747
      %754 = vst [vmem:[#allocation2 + $0xc0] sm:$0xff] %v750
      %755 = vst [vmem:[#allocation2 + $0xc8] sm:$0xff] %v751
      %756 = vst [vmem:[#allocation2 + $0xd0] sm:$0xff] %v752
      %757 = vst [vmem:[#allocation2 + $0xd8] sm:$0xff] %v753
      %v758 = vld [vmem:[%s4] sm:$0xff]
      %v759 = vld [vmem:[%s4 + $0x8] sm:$0xff]
      %v760 = vld [vmem:[#allocation2] sm:$0xff]
      %v761 = vld [vmem:[#allocation2 + $0x8] sm:$0xff]
      %v762 = vld [vmem:[#allocation2 + $0x10] sm:$0xff]
      %v763 = vld [vmem:[#allocation2 + $0x18] sm:$0xff]
      %v764 = vld [vmem:[#allocation2 + $0x20] sm:$0xff]
      %v765 = vld [vmem:[#allocation2 + $0x28] sm:$0xff]
      %v766 = vld [vmem:[#allocation2 + $0x30] sm:$0xff]
      %v767 = vld [vmem:[#allocation2 + $0x38] sm:$0xff]
      %v768 = vld [vmem:[#allocation2 + $0x40] sm:$0xff]
      %v769 = vld [vmem:[#allocation2 + $0x48] sm:$0xff]
      %v770 = vld [vmem:[#allocation2 + $0x50] sm:$0xff]
      %v771 = vld [vmem:[#allocation2 + $0x58] sm:$0xff]
      %v772 = vld [vmem:[#allocation2 + $0x60] sm:$0xff]
      %v773 = vld [vmem:[#allocation2 + $0x68] sm:$0xff]
      %v774 = vld [vmem:[#allocation2 + $0x70] sm:$0xff]
      %v775 = vld [vmem:[#allocation2 + $0x78] sm:$0xff]
      %v776 = vld [vmem:[#allocation2 + $0x80] sm:$0xff]
      %v777 = vld [vmem:[#allocation2 + $0x88] sm:$0xff]
      %v778 = vld [vmem:[#allocation2 + $0x90] sm:$0xff]
      %v779 = vld [vmem:[#allocation2 + $0x98] sm:$0xff]
      %v780 = vld [vmem:[#allocation2 + $0xa0] sm:$0xff]
      %v781 = vld [vmem:[#allocation2 + $0xa8] sm:$0xff]
      %v782 = vld [vmem:[#allocation2 + $0xb0] sm:$0xff]
      %v783 = vld [vmem:[#allocation2 + $0xb8] sm:$0xff]
      %v784 = vld [vmem:[#allocation2 + $0xc0] sm:$0xff]
      %v785 = vld [vmem:[#allocation2 + $0xc8] sm:$0xff]
      %v786 = vld [vmem:[#allocation2 + $0xd0] sm:$0xff]
      %v787 = vld [vmem:[#allocation2 + $0xd8] sm:$0xff]
      %v788 = vld [vmem:[%s5] sm:$0xff]
      %v789 = vld [vmem:[%s5 + $0x8] sm:$0xff]
      %791 = vset.pattern.permute.xlu0 0
      %792 = vperm.xlu0 %791, %v788
      %v793 = vpop.permute.xlu0 %792
      %796 = vset.pattern.permute.xlu0 0
      %797 = vperm.xlu0 %796, %v789
      %v798 = vpop.permute.xlu0 %797
      %vm800 = vcmask 916480
      %v802 = vsel %vm800, %v758, 0
      %v805 = vsel %vm800, %v759, 0
      %807 = vmatprep.subr.mxu0 %v761
      %808 = vmatpush1.msra.mxu0 %v760
      %809 = vmatprep.subr.mxu0 %v763
      %810 = vmatpush1.msra.mxu0 %v762
      %811 = vmatprep.subr.mxu0 %v765
      %812 = vmatpush1.msra.mxu0 %v764
      %813 = vmatprep.subr.mxu0 %v767
      %814 = vmatpush1.msra.mxu0 %v766
      %815 = vmatprep.subr.mxu0 %v769
      %816 = vmatpush1.msra.mxu0 %v768
      %817 = vmatprep.subr.mxu0 %v771
      %818 = vmatpush1.msra.mxu0 %v770
      %819 = vmatprep.subr.mxu0 %v773
      %820 = vmatpush1.msra.mxu0 %v772
      %821 = vmatprep.subr.mxu0 %v775
      %822 = vmatpush1.msra.mxu0 %v774
      %823 = vmatprep.subr.mxu0 %v777
      %824 = vmatpush1.msra.mxu0 %v776
      %825 = vmatprep.subr.mxu0 %v779
      %826 = vmatpush1.msra.mxu0 %v778
      %827 = vmatprep.subr.mxu0 %v781
      %828 = vmatpush1.msra.mxu0 %v780
      %829 = vmatprep.subr.mxu0 %v783
      %830 = vmatpush1.msra.mxu0 %v782
      %831 = vmatprep.subr.mxu0 %v785
      %832 = vmatpush1.msra.mxu0 %v784
      %833 = vmatprep.subr.mxu0 %v787
      %834 = vmatpush1.msra.mxu0 %v786
      %835 = vmatprep.subr.mxu0 0.0
      %836 = vmatpush1.msra.mxu0 0.0
      %837 = vmatprep.subr.mxu0 0.0
      %838 = vmatpush1.msra.mxu0 0.0
      %839 = vmatprep.subr.mxu0 0.0
      %840 = vmatpush1.msra.mxu0 0.0
      %841 = vmatprep.subr.mxu0 0.0
      %842 = vmatpush1.msra.mxu0 0.0
      %843 = vmatprep.subr.mxu0 0.0
      %844 = vmatpush1.msra.mxu0 0.0
      %845 = vmatprep.subr.mxu0 0.0
      %846 = vmatpush1.msra.mxu0 0.0
      %847 = vmatprep.subr.mxu0 0.0
      %848 = vmatpush1.msra.mxu0 0.0
      %849 = vmatprep.subr.mxu0 0.0
      %850 = vmatpush1.msra.mxu0 0.0
      %851 = vmatprep.subr.mxu0 0.0
      %852 = vmatpush1.msra.mxu0 0.0
      %853 = vmatprep.subr.mxu0 0.0
      %854 = vmatpush1.msra.mxu0 0.0
      %855 = vmatprep.subr.mxu0 0.0
      %856 = vmatpush1.msra.mxu0 0.0
      %857 = vmatprep.subr.mxu0 0.0
      %858 = vmatpush1.msra.mxu0 0.0
      %859 = vmatprep.subr.mxu0 0.0
      %860 = vmatpush1.msra.mxu0 0.0
      %861 = vmatprep.subr.mxu0 0.0
      %862 = vmatpush1.msra.mxu0 0.0
      %863 = vmatprep.subr.mxu0 0.0
      %864 = vmatpush1.msra.mxu0 0.0
      %865 = vmatprep.subr.mxu0 0.0
      %866 = vmatpush1.msra.mxu0 0.0
      %867 = vmatprep.subr.mxu0 0.0
      %868 = vmatpush1.msra.mxu0 0.0
      %869 = vmatprep.subr.mxu0 0.0
      %870 = vmatpush1.msra.mxu0 0.0
      %871 = vmatprep.mubr.f32.mxu0 0.0
      %872 = vmatmul.mubr.f32.gmra.mrb[0].mxu0 %v802
      %v873 = vpop.f32.mrb[0].mxu0
      %v874 = vadd.f32 %v793, %v873
      %v875 = vpop.f32.mrb[0].mxu0
      %v876 = vadd.f32 %v793, %v875
      %877 = vmatprep.mubr.f32.mxu0 0.0
      %878 = vmatmul.mubr.f32.gmra.mrb[0].mxu0 %v805
      %v879 = vpop.f32.mrb[0].mxu0
      %v880 = vadd.f32 %v798, %v879
      %v881 = vpop.f32.mrb[0].mxu0
      %v882 = vadd.f32 %v798, %v881
      %883 = vdwg.mxu0
      %884 = vrot.lane.b32.xlu0 %v874, 48
      %v885 = vpop.permute.xlu0 %884
      %886 = vrot.lane.b32.xlu0 %v880, 48
      %v887 = vpop.permute.xlu0 %886
      %888 = vrot.lane.b32.xlu0 %v876, 48
      %v889 = vpop.permute.xlu0 %888
      %890 = vrot.lane.b32.xlu0 %v882, 48
      %v891 = vpop.permute.xlu0 %890
      %vm892 = vcmp.lt.s32.totalorder %v558, 48
      %v893 = vsel %vm892, %v885, %v889
      %v894 = vsel %vm892, %v887, %v891
      %v895 = vsel %vm892, %v889, %v885
      %v896 = vsel %vm892, %v891, %v887
      %s897 = scalar_lea.vmem %s1, 7
      %v898 = vld [vmem:[%s897] ss:$8 sm:$0x3]
      %v900 = vlaneseq
      %v901 = vshrl.u32 %v900, 7
      %v902 = vsub.s32 0, %v901
      %v903 = vrot.slane %v898, %v902
      %v904 = vlaneseq
      %v905 = vshrl.u32 %v904, 7
      %v906 = vsub.s32 1, %v905
      %v907 = vrot.slane %v898, %v906
      %v910 = vmul.f32 %v895, %v903
      %v911 = vmul.f32 %v893, %v907
      %v912 = vmul.f32 %v896, %v903
      %v913 = vmul.f32 %v894, %v907
      %914 = vst [vmem:[#allocation2] sm:$0xff] %v910
      %915 = vst [vmem:[#allocation2 + $0x8] sm:$0xff] %v911
      %916 = vst [vmem:[#allocation2 + $0x10] sm:$0xff] %v912
      %917 = vst [vmem:[#allocation2 + $0x18] sm:$0xff] %v913
      %918 = vrot.lane.b32.xlu0 %v874, 32
      %v919 = vpop.permute.xlu0 %918
      %920 = vrot.lane.b32.xlu0 %v880, 32
      %v921 = vpop.permute.xlu0 %920
      %922 = vrot.lane.b32.xlu0 %v876, 32
      %v923 = vpop.permute.xlu0 %922
      %924 = vrot.lane.b32.xlu0 %v882, 32
      %v925 = vpop.permute.xlu0 %924
      %vm926 = vcmp.lt.s32.totalorder %v558, 32
      %v927 = vsel %vm926, %v919, %v923
      %v928 = vsel %vm926, %v921, %v925
      %v929 = vsel %vm926, %v923, %v919
      %v930 = vsel %vm926, %v925, %v921
      %s931 = scalar_lea.vmem %s1, 16
      %v932 = vld [vmem:[%s931] ss:$8 sm:$0x3]
      %v934 = vlaneseq
      %v935 = vshrl.u32 %v934, 7
      %v936 = vsub.s32 0, %v935
      %v937 = vrot.slane %v932, %v936
      %v938 = vlaneseq
      %v939 = vshrl.u32 %v938, 7
      %v940 = vsub.s32 1, %v939
      %v941 = vrot.slane %v932, %v940
      %v944 = vmul.f32 %v929, %v937
      %v945 = vmul.f32 %v927, %v941
      %v946 = vmul.f32 %v930, %v937
      %v947 = vmul.f32 %v928, %v941
      %948 = vst [vmem:[#allocation2 + $0x20] sm:$0xff] %v944
      %949 = vst [vmem:[#allocation2 + $0x28] sm:$0xff] %v945
      %950 = vst [vmem:[#allocation2 + $0x30] sm:$0xff] %v946
      %951 = vst [vmem:[#allocation2 + $0x38] sm:$0xff] %v947
      %952 = vrot.lane.b32.xlu0 %v874, 16
      %v953 = vpop.permute.xlu0 %952
      %954 = vrot.lane.b32.xlu0 %v880, 16
      %v955 = vpop.permute.xlu0 %954
      %956 = vrot.lane.b32.xlu0 %v876, 16
      %v957 = vpop.permute.xlu0 %956
      %958 = vrot.lane.b32.xlu0 %v882, 16
      %v959 = vpop.permute.xlu0 %958
      %vm960 = vcmp.lt.s32.totalorder %v558, 16
      %v961 = vsel %vm960, %v953, %v957
      %v962 = vsel %vm960, %v955, %v959
      %v963 = vsel %vm960, %v957, %v953
      %v964 = vsel %vm960, %v959, %v955
      %s965 = scalar_lea.vmem %s1, 17
      %v966 = vld [vmem:[%s965] ss:$8 sm:$0x3]
      %v968 = vlaneseq
      %v969 = vshrl.u32 %v968, 7
      %v970 = vsub.s32 0, %v969
      %v971 = vrot.slane %v966, %v970
      %v972 = vlaneseq
      %v973 = vshrl.u32 %v972, 7
      %v974 = vsub.s32 1, %v973
      %v975 = vrot.slane %v966, %v974
      %v978 = vmul.f32 %v963, %v971
      %v979 = vmul.f32 %v961, %v975
      %v980 = vmul.f32 %v964, %v971
      %v981 = vmul.f32 %v962, %v975
      %982 = vst [vmem:[#allocation2 + $0x40] sm:$0xff] %v978
      %983 = vst [vmem:[#allocation2 + $0x48] sm:$0xff] %v979
      %984 = vst [vmem:[#allocation2 + $0x50] sm:$0xff] %v980
      %985 = vst [vmem:[#allocation2 + $0x58] sm:$0xff] %v981
      %986 = vst [vmem:[#allocation2 + $0x60] sm:$0xff] %v874
      %987 = vst [vmem:[#allocation2 + $0x68] sm:$0xff] %v876
      %988 = vst [vmem:[#allocation2 + $0x70] sm:$0xff] %v880
      %989 = vst [vmem:[#allocation2 + $0x78] sm:$0xff] %v882
      %990 = vrot.lane.b32.xlu0 %v874, 112
      %v991 = vpop.permute.xlu0 %990
      %992 = vrot.lane.b32.xlu0 %v880, 112
      %v993 = vpop.permute.xlu0 %992
      %994 = vrot.lane.b32.xlu0 %v876, 112
      %v995 = vpop.permute.xlu0 %994
      %996 = vrot.lane.b32.xlu0 %v882, 112
      %v997 = vpop.permute.xlu0 %996
      %vm998 = vcmp.lt.s32.totalorder %v558, 112
      %v999 = vsel %vm998, %v991, %v995
      %v1000 = vsel %vm998, %v993, %v997
      %v1001 = vsel %vm998, %v995, %v991
      %v1002 = vsel %vm998, %v997, %v993
      %s1003 = scalar_lea.vmem %s1, 19
      %v1004 = vld [vmem:[%s1003] ss:$8 sm:$0x3]
      %v1006 = vlaneseq
      %v1007 = vshrl.u32 %v1006, 7
      %v1008 = vsub.s32 0, %v1007
      %v1009 = vrot.slane %v1004, %v1008
      %v1010 = vlaneseq
      %v1011 = vshrl.u32 %v1010, 7
      %v1012 = vsub.s32 1, %v1011
      %v1013 = vrot.slane %v1004, %v1012
      %v1016 = vmul.f32 %v999, %v1009
      %v1017 = vmul.f32 %v1001, %v1013
      %v1018 = vmul.f32 %v1000, %v1009
      %v1019 = vmul.f32 %v1002, %v1013
      %1020 = vst [vmem:[#allocation2 + $0x80] sm:$0xff] %v1016
      %1021 = vst [vmem:[#allocation2 + $0x88] sm:$0xff] %v1017
      %1022 = vst [vmem:[#allocation2 + $0x90] sm:$0xff] %v1018
      %1023 = vst [vmem:[#allocation2 + $0x98] sm:$0xff] %v1019
      %1024 = vrot.lane.b32.xlu0 %v874, 96
      %v1025 = vpop.permute.xlu0 %1024
      %1026 = vrot.lane.b32.xlu0 %v880, 96
      %v1027 = vpop.permute.xlu0 %1026
      %1028 = vrot.lane.b32.xlu0 %v876, 96
      %v1029 = vpop.permute.xlu0 %1028
      %1030 = vrot.lane.b32.xlu0 %v882, 96
      %v1031 = vpop.permute.xlu0 %1030
      %vm1032 = vcmp.lt.s32.totalorder %v558, 96
      %v1033 = vsel %vm1032, %v1025, %v1029
      %v1034 = vsel %vm1032, %v1027, %v1031
      %v1035 = vsel %vm1032, %v1029, %v1025
      %v1036 = vsel %vm1032, %v1031, %v1027
      %s1037 = scalar_lea.vmem %s1, 20
      %v1038 = vld [vmem:[%s1037] ss:$8 sm:$0x3]
      %v1040 = vlaneseq
      %v1041 = vshrl.u32 %v1040, 7
      %v1042 = vsub.s32 0, %v1041
      %v1043 = vrot.slane %v1038, %v1042
      %v1044 = vlaneseq
      %v1045 = vshrl.u32 %v1044, 7
      %v1046 = vsub.s32 1, %v1045
      %v1047 = vrot.slane %v1038, %v1046
      %v1050 = vmul.f32 %v1033, %v1043
      %v1051 = vmul.f32 %v1035, %v1047
      %v1052 = vmul.f32 %v1034, %v1043
      %v1053 = vmul.f32 %v1036, %v1047
      %1054 = vst [vmem:[#allocation2 + $0xa0] sm:$0xff] %v1050
      %1055 = vst [vmem:[#allocation2 + $0xa8] sm:$0xff] %v1051
      %1056 = vst [vmem:[#allocation2 + $0xb0] sm:$0xff] %v1052
      %1057 = vst [vmem:[#allocation2 + $0xb8] sm:$0xff] %v1053
      %1058 = vrot.lane.b32.xlu0 %v874, 80
      %v1059 = vpop.permute.xlu0 %1058
      %1060 = vrot.lane.b32.xlu0 %v880, 80
      %v1061 = vpop.permute.xlu0 %1060
      %1062 = vrot.lane.b32.xlu0 %v876, 80
      %v1063 = vpop.permute.xlu0 %1062
      %1064 = vrot.lane.b32.xlu0 %v882, 80
      %v1065 = vpop.permute.xlu0 %1064
      %vm1066 = vcmp.lt.s32.totalorder %v558, 80
      %v1067 = vsel %vm1066, %v1059, %v1063
      %v1068 = vsel %vm1066, %v1061, %v1065
      %v1069 = vsel %vm1066, %v1063, %v1059
      %v1070 = vsel %vm1066, %v1065, %v1061
      %s1071 = scalar_lea.vmem %s1, 21
      %v1072 = vld [vmem:[%s1071] ss:$8 sm:$0x3]
      %v1074 = vlaneseq
      %v1075 = vshrl.u32 %v1074, 7
      %v1076 = vsub.s32 0, %v1075
      %v1077 = vrot.slane %v1072, %v1076
      %v1078 = vlaneseq
      %v1079 = vshrl.u32 %v1078, 7
      %v1080 = vsub.s32 1, %v1079
      %v1081 = vrot.slane %v1072, %v1080
      %v1084 = vmul.f32 %v1067, %v1077
      %v1085 = vmul.f32 %v1069, %v1081
      %v1086 = vmul.f32 %v1068, %v1077
      %v1087 = vmul.f32 %v1070, %v1081
      %1088 = vst [vmem:[#allocation2 + $0xc0] sm:$0xff] %v1084
      %1089 = vst [vmem:[#allocation2 + $0xc8] sm:$0xff] %v1085
      %1090 = vst [vmem:[#allocation2 + $0xd0] sm:$0xff] %v1086
      %1091 = vst [vmem:[#allocation2 + $0xd8] sm:$0xff] %v1087
      %v1092 = vld [vmem:[%s6] sm:$0xff]
      %v1093 = vld [vmem:[%s6 + $0x8] sm:$0xff]
      %v1094 = vld [vmem:[#allocation2] sm:$0xff]
      %v1095 = vld [vmem:[#allocation2 + $0x8] sm:$0xff]
      %v1096 = vld [vmem:[#allocation2 + $0x10] sm:$0xff]
      %v1097 = vld [vmem:[#allocation2 + $0x18] sm:$0xff]
      %v1098 = vld [vmem:[#allocation2 + $0x20] sm:$0xff]
      %v1099 = vld [vmem:[#allocation2 + $0x28] sm:$0xff]
      %v1100 = vld [vmem:[#allocation2 + $0x30] sm:$0xff]
      %v1101 = vld [vmem:[#allocation2 + $0x38] sm:$0xff]
      %v1102 = vld [vmem:[#allocation2 + $0x40] sm:$0xff]
      %v1103 = vld [vmem:[#allocation2 + $0x48] sm:$0xff]
      %v1104 = vld [vmem:[#allocation2 + $0x50] sm:$0xff]
      %v1105 = vld [vmem:[#allocation2 + $0x58] sm:$0xff]
      %v1106 = vld [vmem:[#allocation2 + $0x60] sm:$0xff]
      %v1107 = vld [vmem:[#allocation2 + $0x68] sm:$0xff]
      %v1108 = vld [vmem:[#allocation2 + $0x70] sm:$0xff]
      %v1109 = vld [vmem:[#allocation2 + $0x78] sm:$0xff]
      %v1110 = vld [vmem:[#allocation2 + $0x80] sm:$0xff]
      %v1111 = vld [vmem:[#allocation2 + $0x88] sm:$0xff]
      %v1112 = vld [vmem:[#allocation2 + $0x90] sm:$0xff]
      %v1113 = vld [vmem:[#allocation2 + $0x98] sm:$0xff]
      %v1114 = vld [vmem:[#allocation2 + $0xa0] sm:$0xff]
      %v1115 = vld [vmem:[#allocation2 + $0xa8] sm:$0xff]
      %v1116 = vld [vmem:[#allocation2 + $0xb0] sm:$0xff]
      %v1117 = vld [vmem:[#allocation2 + $0xb8] sm:$0xff]
      %v1118 = vld [vmem:[#allocation2 + $0xc0] sm:$0xff]
      %v1119 = vld [vmem:[#allocation2 + $0xc8] sm:$0xff]
      %v1120 = vld [vmem:[#allocation2 + $0xd0] sm:$0xff]
      %v1121 = vld [vmem:[#allocation2 + $0xd8] sm:$0xff]
      %v1122 = vld [vmem:[%s7] sm:$0xff]
      %v1123 = vld [vmem:[%s7 + $0x8] sm:$0xff]
      %1125 = vset.pattern.permute.xlu0 0
      %1126 = vperm.xlu0 %1125, %v1122
      %v1127 = vpop.permute.xlu0 %1126
      %1130 = vset.pattern.permute.xlu0 0
      %1131 = vperm.xlu0 %1130, %v1123
      %v1132 = vpop.permute.xlu0 %1131
      %v1135 = vsel %vm800, %v1092, 0
      %v1138 = vsel %vm800, %v1093, 0
      %1140 = vmatprep.subr.mxu0 %v1095
      %1141 = vmatpush1.msra.mxu0 %v1094
      %1142 = vmatprep.subr.mxu0 %v1097
      %1143 = vmatpush1.msra.mxu0 %v1096
      %1144 = vmatprep.subr.mxu0 %v1099
      %1145 = vmatpush1.msra.mxu0 %v1098
      %1146 = vmatprep.subr.mxu0 %v1101
      %1147 = vmatpush1.msra.mxu0 %v1100
      %1148 = vmatprep.subr.mxu0 %v1103
      %1149 = vmatpush1.msra.mxu0 %v1102
      %1150 = vmatprep.subr.mxu0 %v1105
      %1151 = vmatpush1.msra.mxu0 %v1104
      %1152 = vmatprep.subr.mxu0 %v1107
      %1153 = vmatpush1.msra.mxu0 %v1106
      %1154 = vmatprep.subr.mxu0 %v1109
      %1155 = vmatpush1.msra.mxu0 %v1108
      %1156 = vmatprep.subr.mxu0 %v1111
      %1157 = vmatpush1.msra.mxu0 %v1110
      %1158 = vmatprep.subr.mxu0 %v1113
      %1159 = vmatpush1.msra.mxu0 %v1112
      %1160 = vmatprep.subr.mxu0 %v1115
      %1161 = vmatpush1.msra.mxu0 %v1114
      %1162 = vmatprep.subr.mxu0 %v1117
      %1163 = vmatpush1.msra.mxu0 %v1116
      %1164 = vmatprep.subr.mxu0 %v1119
      %1165 = vmatpush1.msra.mxu0 %v1118
      %1166 = vmatprep.subr.mxu0 %v1121
      %1167 = vmatpush1.msra.mxu0 %v1120
      %1168 = vmatprep.subr.mxu0 0.0
      %1169 = vmatpush1.msra.mxu0 0.0
      %1170 = vmatprep.subr.mxu0 0.0
      %1171 = vmatpush1.msra.mxu0 0.0
      %1172 = vmatprep.subr.mxu0 0.0
      %1173 = vmatpush1.msra.mxu0 0.0
      %1174 = vmatprep.subr.mxu0 0.0
      %1175 = vmatpush1.msra.mxu0 0.0
      %1176 = vmatprep.subr.mxu0 0.0
      %1177 = vmatpush1.msra.mxu0 0.0
      %1178 = vmatprep.subr.mxu0 0.0
      %1179 = vmatpush1.msra.mxu0 0.0
      %1180 = vmatprep.subr.mxu0 0.0
      %1181 = vmatpush1.msra.mxu0 0.0
      %1182 = vmatprep.subr.mxu0 0.0
      %1183 = vmatpush1.msra.mxu0 0.0
      %1184 = vmatprep.subr.mxu0 0.0
      %1185 = vmatpush1.msra.mxu0 0.0
      %1186 = vmatprep.subr.mxu0 0.0
      %1187 = vmatpush1.msra.mxu0 0.0
      %1188 = vmatprep.subr.mxu0 0.0
      %1189 = vmatpush1.msra.mxu0 0.0
      %1190 = vmatprep.subr.mxu0 0.0
      %1191 = vmatpush1.msra.mxu0 0.0
      %1192 = vmatprep.subr.mxu0 0.0
      %1193 = vmatpush1.msra.mxu0 0.0
      %1194 = vmatprep.subr.mxu0 0.0
      %1195 = vmatpush1.msra.mxu0 0.0
      %1196 = vmatprep.subr.mxu0 0.0
      %1197 = vmatpush1.msra.mxu0 0.0
      %1198 = vmatprep.subr.mxu0 0.0
      %1199 = vmatpush1.msra.mxu0 0.0
      %1200 = vmatprep.subr.mxu0 0.0
      %1201 = vmatpush1.msra.mxu0 0.0
      %1202 = vmatprep.subr.mxu0 0.0
      %1203 = vmatpush1.msra.mxu0 0.0
      %1204 = vmatprep.mubr.f32.mxu0 0.0
      %1205 = vmatmul.mubr.f32.gmra.mrb[0].mxu0 %v1135
      %v1206 = vpop.f32.mrb[0].mxu0
      %v1207 = vadd.f32 %v1127, %v1206
      %v1208 = vpop.f32.mrb[0].mxu0
      %v1209 = vadd.f32 %v1127, %v1208
      %1210 = vmatprep.mubr.f32.mxu0 0.0
      %1211 = vmatmul.mubr.f32.gmra.mrb[0].mxu0 %v1138
      %v1212 = vpop.f32.mrb[0].mxu0
      %v1213 = vadd.f32 %v1132, %v1212
      %v1214 = vpop.f32.mrb[0].mxu0
      %v1215 = vadd.f32 %v1132, %v1214
      %1216 = vdwg.mxu0
      %1217 = vrot.lane.b32.xlu0 %v1207, 51
      %v1218 = vpop.permute.xlu0 %1217
      %1219 = vrot.lane.b32.xlu0 %v1213, 51
      %v1220 = vpop.permute.xlu0 %1219
      %1221 = vrot.lane.b32.xlu0 %v1209, 51
      %v1222 = vpop.permute.xlu0 %1221
      %1223 = vrot.lane.b32.xlu0 %v1215, 51
      %v1224 = vpop.permute.xlu0 %1223
      %vm1225 = vcmp.lt.s32.totalorder %v558, 51
      %v1226 = vsel %vm1225, %v1218, %v1222
      %v1227 = vsel %vm1225, %v1220, %v1224
      %v1228 = vsel %vm1225, %v1222, %v1218
      %v1229 = vsel %vm1225, %v1224, %v1220
      %s1230 = scalar_lea.vmem %s1, 22
      %v1231 = vld [vmem:[%s1230] ss:$8 sm:$0x3]
      %v1233 = vlaneseq
      %v1234 = vshrl.u32 %v1233, 7
      %v1235 = vsub.s32 0, %v1234
      %v1236 = vrot.slane %v1231, %v1235
      %v1237 = vlaneseq
      %v1238 = vshrl.u32 %v1237, 7
      %v1239 = vsub.s32 1, %v1238
      %v1240 = vrot.slane %v1231, %v1239
      %v1243 = vmul.f32 %v1228, %v1236
      %v1244 = vmul.f32 %v1226, %v1240
      %v1245 = vmul.f32 %v1229, %v1236
      %v1246 = vmul.f32 %v1227, %v1240
      %1247 = vst [vmem:[#allocation2] sm:$0xff] %v1243
      %1248 = vst [vmem:[#allocation2 + $0x8] sm:$0xff] %v1244
      %1249 = vst [vmem:[#allocation2 + $0x10] sm:$0xff] %v1245
      %1250 = vst [vmem:[#allocation2 + $0x18] sm:$0xff] %v1246
      %1251 = vrot.lane.b32.xlu0 %v1207, 48
      %v1252 = vpop.permute.xlu0 %1251
      %1253 = vrot.lane.b32.xlu0 %v1213, 48
      %v1254 = vpop.permute.xlu0 %1253
      %1255 = vrot.lane.b32.xlu0 %v1209, 48
      %v1256 = vpop.permute.xlu0 %1255
      %1257 = vrot.lane.b32.xlu0 %v1215, 48
      %v1258 = vpop.permute.xlu0 %1257
      %v1259 = vsel %vm892, %v1252, %v1256
      %v1260 = vsel %vm892, %v1254, %v1258
      %v1261 = vsel %vm892, %v1256, %v1252
      %v1262 = vsel %vm892, %v1258, %v1254
      %s1263 = scalar_lea.vmem %s1, 23
      %v1264 = vld [vmem:[%s1263] ss:$8 sm:$0x3]
      %v1266 = vlaneseq
      %v1267 = vshrl.u32 %v1266, 7
      %v1268 = vsub.s32 0, %v1267
      %v1269 = vrot.slane %v1264, %v1268
      %v1270 = vlaneseq
      %v1271 = vshrl.u32 %v1270, 7
      %v1272 = vsub.s32 1, %v1271
      %v1273 = vrot.slane %v1264, %v1272
      %v1276 = vmul.f32 %v1261, %v1269
      %v1277 = vmul.f32 %v1259, %v1273
      %v1278 = vmul.f32 %v1262, %v1269
      %v1279 = vmul.f32 %v1260, %v1273
      %1280 = vst [vmem:[#allocation2 + $0x20] sm:$0xff] %v1276
      %1281 = vst [vmem:[#allocation2 + $0x28] sm:$0xff] %v1277
      %1282 = vst [vmem:[#allocation2 + $0x30] sm:$0xff] %v1278
      %1283 = vst [vmem:[#allocation2 + $0x38] sm:$0xff] %v1279
      %1284 = vrot.lane.b32.xlu0 %v1207, 45
      %v1285 = vpop.permute.xlu0 %1284
      %1286 = vrot.lane.b32.xlu0 %v1213, 45
      %v1287 = vpop.permute.xlu0 %1286
      %1288 = vrot.lane.b32.xlu0 %v1209, 45
      %v1289 = vpop.permute.xlu0 %1288
      %1290 = vrot.lane.b32.xlu0 %v1215, 45
      %v1291 = vpop.permute.xlu0 %1290
      %vm1292 = vcmp.lt.s32.totalorder %v558, 45
      %v1293 = vsel %vm1292, %v1285, %v1289
      %v1294 = vsel %vm1292, %v1287, %v1291
      %v1295 = vsel %vm1292, %v1289, %v1285
      %v1296 = vsel %vm1292, %v1291, %v1287
      %s1297 = scalar_lea.vmem %s1, 32
      %v1298 = vld [vmem:[%s1297] ss:$8 sm:$0x3]
      %v1300 = vlaneseq
      %v1301 = vshrl.u32 %v1300, 7
      %v1302 = vsub.s32 0, %v1301
      %v1303 = vrot.slane %v1298, %v1302
      %v1304 = vlaneseq
      %v1305 = vshrl.u32 %v1304, 7
      %v1306 = vsub.s32 1, %v1305
      %v1307 = vrot.slane %v1298, %v1306
      %v1310 = vmul.f32 %v1295, %v1303
      %v1311 = vmul.f32 %v1293, %v1307
      %v1312 = vmul.f32 %v1296, %v1303
      %v1313 = vmul.f32 %v1294, %v1307
      %1314 = vst [vmem:[#allocation2 + $0x40] sm:$0xff] %v1310
      %1315 = vst [vmem:[#allocation2 + $0x48] sm:$0xff] %v1311
      %1316 = vst [vmem:[#allocation2 + $0x50] sm:$0xff] %v1312
      %1317 = vst [vmem:[#allocation2 + $0x58] sm:$0xff] %v1313
      %1318 = vrot.lane.b32.xlu0 %v1207, 3
      %v1319 = vpop.permute.xlu0 %1318
      %1320 = vrot.lane.b32.xlu0 %v1213, 3
      %v1321 = vpop.permute.xlu0 %1320
      %1322 = vrot.lane.b32.xlu0 %v1209, 3
      %v1323 = vpop.permute.xlu0 %1322
      %1324 = vrot.lane.b32.xlu0 %v1215, 3
      %v1325 = vpop.permute.xlu0 %1324
      %v1326 = vsel %vm559, %v1319, %v1323
      %v1327 = vsel %vm559, %v1321, %v1325
      %v1328 = vsel %vm559, %v1323, %v1319
      %v1329 = vsel %vm559, %v1325, %v1321
      %s1330 = scalar_lea.vmem %s1, 33
      %v1331 = vld [vmem:[%s1330] ss:$8 sm:$0x3]
      %v1333 = vlaneseq
      %v1334 = vshrl.u32 %v1333, 7
      %v1335 = vsub.s32 0, %v1334
      %v1336 = vrot.slane %v1331, %v1335
      %v1337 = vlaneseq
      %v1338 = vshrl.u32 %v1337, 7
      %v1339 = vsub.s32 1, %v1338
      %v1340 = vrot.slane %v1331, %v1339
      %v1343 = vmul.f32 %v1328, %v1336
      %v1344 = vmul.f32 %v1326, %v1340
      %v1345 = vmul.f32 %v1329, %v1336
      %v1346 = vmul.f32 %v1327, %v1340
      %1347 = vst [vmem:[#allocation2 + $0x60] sm:$0xff] %v1343
      %1348 = vst [vmem:[#allocation2 + $0x68] sm:$0xff] %v1344
      %1349 = vst [vmem:[#allocation2 + $0x70] sm:$0xff] %v1345
      %1350 = vst [vmem:[#allocation2 + $0x78] sm:$0xff] %v1346
      %1351 = vst [vmem:[#allocation2 + $0x80] sm:$0xff] %v1207
      %1352 = vst [vmem:[#allocation2 + $0x88] sm:$0xff] %v1209
      %1353 = vst [vmem:[#allocation2 + $0x90] sm:$0xff] %v1213
      %1354 = vst [vmem:[#allocation2 + $0x98] sm:$0xff] %v1215
      %1355 = vrot.lane.b32.xlu0 %v1207, 125
      %v1356 = vpop.permute.xlu0 %1355
      %1357 = vrot.lane.b32.xlu0 %v1213, 125
      %v1358 = vpop.permute.xlu0 %1357
      %1359 = vrot.lane.b32.xlu0 %v1209, 125
      %v1360 = vpop.permute.xlu0 %1359
      %1361 = vrot.lane.b32.xlu0 %v1215, 125
      %v1362 = vpop.permute.xlu0 %1361
      %v1363 = vsel %vm732, %v1356, %v1360
      %v1364 = vsel %vm732, %v1358, %v1362
      %v1365 = vsel %vm732, %v1360, %v1356
      %v1366 = vsel %vm732, %v1362, %v1358
      %s1367 = scalar_lea.vmem %s1, 35
      %v1368 = vld [vmem:[%s1367] ss:$8 sm:$0x3]
      %v1370 = vlaneseq
      %v1371 = vshrl.u32 %v1370, 7
      %v1372 = vsub.s32 0, %v1371
      %v1373 = vrot.slane %v1368, %v1372
      %v1374 = vlaneseq
      %v1375 = vshrl.u32 %v1374, 7
      %v1376 = vsub.s32 1, %v1375
      %v1377 = vrot.slane %v1368, %v1376
      %v1380 = vmul.f32 %v1363, %v1373
      %v1381 = vmul.f32 %v1365, %v1377
      %v1382 = vmul.f32 %v1364, %v1373
      %v1383 = vmul.f32 %v1366, %v1377
      %1384 = vst [vmem:[#allocation2 + $0xa0] sm:$0xff] %v1380
      %1385 = vst [vmem:[#allocation2 + $0xa8] sm:$0xff] %v1381
      %1386 = vst [vmem:[#allocation2 + $0xb0] sm:$0xff] %v1382
      %1387 = vst [vmem:[#allocation2 + $0xb8] sm:$0xff] %v1383
      %1388 = vrot.lane.b32.xlu0 %v1207, 83
      %v1389 = vpop.permute.xlu0 %1388
      %1390 = vrot.lane.b32.xlu0 %v1213, 83
      %v1391 = vpop.permute.xlu0 %1390
      %1392 = vrot.lane.b32.xlu0 %v1209, 83
      %v1393 = vpop.permute.xlu0 %1392
      %1394 = vrot.lane.b32.xlu0 %v1215, 83
      %v1395 = vpop.permute.xlu0 %1394
      %vm1396 = vcmp.lt.s32.totalorder %v558, 83
      %v1397 = vsel %vm1396, %v1389, %v1393
      %v1398 = vsel %vm1396, %v1391, %v1395
      %v1399 = vsel %vm1396, %v1393, %v1389
      %v1400 = vsel %vm1396, %v1395, %v1391
      %s1401 = scalar_lea.vmem %s1, 36
      %v1402 = vld [vmem:[%s1401] ss:$8 sm:$0x3]
      %v1404 = vlaneseq
      %v1405 = vshrl.u32 %v1404, 7
      %v1406 = vsub.s32 0, %v1405
      %v1407 = vrot.slane %v1402, %v1406
      %v1408 = vlaneseq
      %v1409 = vshrl.u32 %v1408, 7
      %v1410 = vsub.s32 1, %v1409
      %v1411 = vrot.slane %v1402, %v1410
      %v1414 = vmul.f32 %v1397, %v1407
      %v1415 = vmul.f32 %v1399, %v1411
      %v1416 = vmul.f32 %v1398, %v1407
      %v1417 = vmul.f32 %v1400, %v1411
      %1418 = vst [vmem:[#allocation2 + $0xc0] sm:$0xff] %v1414
      %1419 = vst [vmem:[#allocation2 + $0xc8] sm:$0xff] %v1415
      %1420 = vst [vmem:[#allocation2 + $0xd0] sm:$0xff] %v1416
      %1421 = vst [vmem:[#allocation2 + $0xd8] sm:$0xff] %v1417
      %1422 = vrot.lane.b32.xlu0 %v1207, 80
      %v1423 = vpop.permute.xlu0 %1422
      %1424 = vrot.lane.b32.xlu0 %v1213, 80
      %v1425 = vpop.permute.xlu0 %1424
      %1426 = vrot.lane.b32.xlu0 %v1209, 80
      %v1427 = vpop.permute.xlu0 %1426
      %1428 = vrot.lane.b32.xlu0 %v1215, 80
      %v1429 = vpop.permute.xlu0 %1428
      %v1430 = vsel %vm1066, %v1423, %v1427
      %v1431 = vsel %vm1066, %v1425, %v1429
      %v1432 = vsel %vm1066, %v1427, %v1423
      %v1433 = vsel %vm1066, %v1429, %v1425
      %s1434 = scalar_lea.vmem %s1, 37
      %v1435 = vld [vmem:[%s1434] ss:$8 sm:$0x3]
      %v1437 = vlaneseq
      %v1438 = vshrl.u32 %v1437, 7
      %v1439 = vsub.s32 0, %v1438
      %v1440 = vrot.slane %v1435, %v1439
      %v1441 = vlaneseq
      %v1442 = vshrl.u32 %v1441, 7
      %v1443 = vsub.s32 1, %v1442
      %v1444 = vrot.slane %v1435, %v1443
      %v1447 = vmul.f32 %v1430, %v1440
      %v1448 = vmul.f32 %v1432, %v1444
      %v1449 = vmul.f32 %v1431, %v1440
      %v1450 = vmul.f32 %v1433, %v1444
      %1451 = vst [vmem:[#allocation2 + $0xe0] sm:$0xff] %v1447
      %1452 = vst [vmem:[#allocation2 + $0xe8] sm:$0xff] %v1448
      %1453 = vst [vmem:[#allocation2 + $0xf0] sm:$0xff] %v1449
      %1454 = vst [vmem:[#allocation2 + $0xf8] sm:$0xff] %v1450
      %1455 = vrot.lane.b32.xlu0 %v1207, 77
      %v1456 = vpop.permute.xlu0 %1455
      %1457 = vrot.lane.b32.xlu0 %v1213, 77
      %v1458 = vpop.permute.xlu0 %1457
      %1459 = vrot.lane.b32.xlu0 %v1209, 77
      %v1460 = vpop.permute.xlu0 %1459
      %1461 = vrot.lane.b32.xlu0 %v1215, 77
      %v1462 = vpop.permute.xlu0 %1461
      %vm1463 = vcmp.lt.s32.totalorder %v558, 77
      %v1464 = vsel %vm1463, %v1456, %v1460
      %v1465 = vsel %vm1463, %v1458, %v1462
      %v1466 = vsel %vm1463, %v1460, %v1456
      %v1467 = vsel %vm1463, %v1462, %v1458
      %s1468 = scalar_lea.vmem %s1, 38
      %v1469 = vld [vmem:[%s1468] ss:$8 sm:$0x3]
      %v1471 = vlaneseq
      %v1472 = vshrl.u32 %v1471, 7
      %v1473 = vsub.s32 0, %v1472
      %v1474 = vrot.slane %v1469, %v1473
      %v1475 = vlaneseq
      %v1476 = vshrl.u32 %v1475, 7
      %v1477 = vsub.s32 1, %v1476
      %v1478 = vrot.slane %v1469, %v1477
      %v1481 = vmul.f32 %v1464, %v1474
      %v1482 = vmul.f32 %v1466, %v1478
      %v1483 = vmul.f32 %v1465, %v1474
      %v1484 = vmul.f32 %v1467, %v1478
      %1485 = vst [vmem:[#allocation2 + $0x100] sm:$0xff] %v1481
      %1486 = vst [vmem:[#allocation2 + $0x108] sm:$0xff] %v1482
      %1487 = vst [vmem:[#allocation2 + $0x110] sm:$0xff] %v1483
      %1488 = vst [vmem:[#allocation2 + $0x118] sm:$0xff] %v1484
      %1489 = vrot.lane.b32.xlu0 %v1207, 85
      %v1490 = vpop.permute.xlu0 %1489
      %1491 = vrot.lane.b32.xlu0 %v1213, 85
      %v1492 = vpop.permute.xlu0 %1491
      %1493 = vrot.lane.b32.xlu0 %v1209, 85
      %v1494 = vpop.permute.xlu0 %1493
      %1495 = vrot.lane.b32.xlu0 %v1215, 85
      %v1496 = vpop.permute.xlu0 %1495
      %vm1497 = vcmp.lt.s32.totalorder %v558, 85
      %v1498 = vsel %vm1497, %v1490, %v1494
      %v1499 = vsel %vm1497, %v1492, %v1496
      %v1500 = vsel %vm1497, %v1494, %v1490
      %v1501 = vsel %vm1497, %v1496, %v1492
      %s1502 = scalar_lea.vmem %s1, 39
      %v1503 = vld [vmem:[%s1502] ss:$8 sm:$0x3]
      %v1505 = vlaneseq
      %v1506 = vshrl.u32 %v1505, 7
      %v1507 = vsub.s32 0, %v1506
      %v1508 = vrot.slane %v1503, %v1507
      %v1509 = vlaneseq
      %v1510 = vshrl.u32 %v1509, 7
      %v1511 = vsub.s32 1, %v1510
      %v1512 = vrot.slane %v1503, %v1511
      %v1515 = vmul.f32 %v1500, %v1508
      %v1516 = vmul.f32 %v1498, %v1512
      %v1517 = vmul.f32 %v1501, %v1508
      %v1518 = vmul.f32 %v1499, %v1512
      %1519 = vst [vmem:[#allocation2 + $0x120] sm:$0xff] %v1515
      %1520 = vst [vmem:[#allocation2 + $0x128] sm:$0xff] %v1516
      %1521 = vst [vmem:[#allocation2 + $0x130] sm:$0xff] %v1517
      %1522 = vst [vmem:[#allocation2 + $0x138] sm:$0xff] %v1518
      %s1523 = scalar_lea.vmem %s1, 48
      %v1524 = vld [vmem:[%s1523] ss:$8 sm:$0x3]
      %v1526 = vlaneseq
      %v1527 = vshrl.u32 %v1526, 7
      %v1528 = vsub.s32 0, %v1527
      %v1529 = vrot.slane %v1524, %v1528
      %v1530 = vlaneseq
      %v1531 = vshrl.u32 %v1530, 7
      %v1532 = vsub.s32 1, %v1531
      %v1533 = vrot.slane %v1524, %v1532
      %v1536 = vmul.f32 %v1432, %v1529
      %v1537 = vmul.f32 %v1430, %v1533
      %v1538 = vmul.f32 %v1433, %v1529
      %v1539 = vmul.f32 %v1431, %v1533
      %1540 = vst [vmem:[#allocation2 + $0x140] sm:$0xff] %v1536
      %1541 = vst [vmem:[#allocation2 + $0x148] sm:$0xff] %v1537
      %1542 = vst [vmem:[#allocation2 + $0x150] sm:$0xff] %v1538
      %1543 = vst [vmem:[#allocation2 + $0x158] sm:$0xff] %v1539
      %1544 = vrot.lane.b32.xlu0 %v1207, 75
      %v1545 = vpop.permute.xlu0 %1544
      %1546 = vrot.lane.b32.xlu0 %v1213, 75
      %v1547 = vpop.permute.xlu0 %1546
      %1548 = vrot.lane.b32.xlu0 %v1209, 75
      %v1549 = vpop.permute.xlu0 %1548
      %1550 = vrot.lane.b32.xlu0 %v1215, 75
      %v1551 = vpop.permute.xlu0 %1550
      %vm1552 = vcmp.lt.s32.totalorder %v558, 75
      %v1553 = vsel %vm1552, %v1545, %v1549
      %v1554 = vsel %vm1552, %v1547, %v1551
      %v1555 = vsel %vm1552, %v1549, %v1545
      %v1556 = vsel %vm1552, %v1551, %v1547
      %s1557 = scalar_lea.vmem %s1, 49
      %v1558 = vld [vmem:[%s1557] ss:$8 sm:$0x3]
      %v1560 = vlaneseq
      %v1561 = vshrl.u32 %v1560, 7
      %v1562 = vsub.s32 0, %v1561
      %v1563 = vrot.slane %v1558, %v1562
      %v1564 = vlaneseq
      %v1565 = vshrl.u32 %v1564, 7
      %v1566 = vsub.s32 1, %v1565
      %v1567 = vrot.slane %v1558, %v1566
      %v1570 = vmul.f32 %v1555, %v1563
      %v1571 = vmul.f32 %v1553, %v1567
      %v1572 = vmul.f32 %v1556, %v1563
      %v1573 = vmul.f32 %v1554, %v1567
      %1574 = vst [vmem:[#allocation2 + $0x160] sm:$0xff] %v1570
      %1575 = vst [vmem:[#allocation2 + $0x168] sm:$0xff] %v1571
      %1576 = vst [vmem:[#allocation2 + $0x170] sm:$0xff] %v1572
      %1577 = vst [vmem:[#allocation2 + $0x178] sm:$0xff] %v1573
      %1578 = vrot.lane.b32.xlu0 %v1207, 5
      %v1579 = vpop.permute.xlu0 %1578
      %1580 = vrot.lane.b32.xlu0 %v1213, 5
      %v1581 = vpop.permute.xlu0 %1580
      %1582 = vrot.lane.b32.xlu0 %v1209, 5
      %v1583 = vpop.permute.xlu0 %1582
      %1584 = vrot.lane.b32.xlu0 %v1215, 5
      %v1585 = vpop.permute.xlu0 %1584
      %vm1586 = vcmp.lt.s32.totalorder %v558, 5
      %v1587 = vsel %vm1586, %v1579, %v1583
      %v1588 = vsel %vm1586, %v1581, %v1585
      %v1589 = vsel %vm1586, %v1583, %v1579
      %v1590 = vsel %vm1586, %v1585, %v1581
      %s1591 = scalar_lea.vmem %s1, 50
      %v1592 = vld [vmem:[%s1591] ss:$8 sm:$0x3]
      %v1594 = vlaneseq
      %v1595 = vshrl.u32 %v1594, 7
      %v1596 = vsub.s32 0, %v1595
      %v1597 = vrot.slane %v1592, %v1596
      %v1598 = vlaneseq
      %v1599 = vshrl.u32 %v1598, 7
      %v1600 = vsub.s32 1, %v1599
      %v1601 = vrot.slane %v1592, %v1600
      %v1604 = vmul.f32 %v1589, %v1597
      %v1605 = vmul.f32 %v1587, %v1601
      %v1606 = vmul.f32 %v1590, %v1597
      %v1607 = vmul.f32 %v1588, %v1601
      %1608 = vst [vmem:[#allocation2 + $0x180] sm:$0xff] %v1604
      %1609 = vst [vmem:[#allocation2 + $0x188] sm:$0xff] %v1605
      %1610 = vst [vmem:[#allocation2 + $0x190] sm:$0xff] %v1606
      %1611 = vst [vmem:[#allocation2 + $0x198] sm:$0xff] %v1607
      %1612 = vrot.lane.b32.xlu0 %v1207, 123
      %v1613 = vpop.permute.xlu0 %1612
      %1614 = vrot.lane.b32.xlu0 %v1213, 123
      %v1615 = vpop.permute.xlu0 %1614
      %1616 = vrot.lane.b32.xlu0 %v1209, 123
      %v1617 = vpop.permute.xlu0 %1616
      %1618 = vrot.lane.b32.xlu0 %v1215, 123
      %v1619 = vpop.permute.xlu0 %1618
      %vm1620 = vcmp.lt.s32.totalorder %v558, 123
      %v1621 = vsel %vm1620, %v1613, %v1617
      %v1622 = vsel %vm1620, %v1615, %v1619
      %v1623 = vsel %vm1620, %v1617, %v1613
      %v1624 = vsel %vm1620, %v1619, %v1615
      %s1625 = scalar_lea.vmem %s1, 51
      %v1626 = vld [vmem:[%s1625] ss:$8 sm:$0x3]
      %v1628 = vlaneseq
      %v1629 = vshrl.u32 %v1628, 7
      %v1630 = vsub.s32 0, %v1629
      %v1631 = vrot.slane %v1626, %v1630
      %v1632 = vlaneseq
      %v1633 = vshrl.u32 %v1632, 7
      %v1634 = vsub.s32 1, %v1633
      %v1635 = vrot.slane %v1626, %v1634
      %v1638 = vmul.f32 %v1621, %v1631
      %v1639 = vmul.f32 %v1623, %v1635
      %v1640 = vmul.f32 %v1622, %v1631
      %v1641 = vmul.f32 %v1624, %v1635
      %1642 = vst [vmem:[#allocation2 + $0x1a0] sm:$0xff] %v1638
      %1643 = vst [vmem:[#allocation2 + $0x1a8] sm:$0xff] %v1639
      %1644 = vst [vmem:[#allocation2 + $0x1b0] sm:$0xff] %v1640
      %1645 = vst [vmem:[#allocation2 + $0x1b8] sm:$0xff] %v1641
      %1646 = vrot.lane.b32.xlu0 %v1207, 53
      %v1647 = vpop.permute.xlu0 %1646
      %1648 = vrot.lane.b32.xlu0 %v1213, 53
      %v1649 = vpop.permute.xlu0 %1648
      %1650 = vrot.lane.b32.xlu0 %v1209, 53
      %v1651 = vpop.permute.xlu0 %1650
      %1652 = vrot.lane.b32.xlu0 %v1215, 53
      %v1653 = vpop.permute.xlu0 %1652
      %vm1654 = vcmp.lt.s32.totalorder %v558, 53
      %v1655 = vsel %vm1654, %v1647, %v1651
      %v1656 = vsel %vm1654, %v1649, %v1653
      %v1657 = vsel %vm1654, %v1651, %v1647
      %v1658 = vsel %vm1654, %v1653, %v1649
      %s1659 = scalar_lea.vmem %s1, 52
      %v1660 = vld [vmem:[%s1659] ss:$8 sm:$0x3]
      %v1662 = vlaneseq
      %v1663 = vshrl.u32 %v1662, 7
      %v1664 = vsub.s32 0, %v1663
      %v1665 = vrot.slane %v1660, %v1664
      %v1666 = vlaneseq
      %v1667 = vshrl.u32 %v1666, 7
      %v1668 = vsub.s32 1, %v1667
      %v1669 = vrot.slane %v1660, %v1668
      %v1672 = vmul.f32 %v1655, %v1665
      %v1673 = vmul.f32 %v1657, %v1669
      %v1674 = vmul.f32 %v1656, %v1665
      %v1675 = vmul.f32 %v1658, %v1669
      %1676 = vst [vmem:[#allocation2 + $0x1c0] sm:$0xff] %v1672
      %1677 = vst [vmem:[#allocation2 + $0x1c8] sm:$0xff] %v1673
      %1678 = vst [vmem:[#allocation2 + $0x1d0] sm:$0xff] %v1674
      %1679 = vst [vmem:[#allocation2 + $0x1d8] sm:$0xff] %v1675
      %s1680 = scalar_lea.vmem %s1, 53
      %v1681 = vld [vmem:[%s1680] ss:$8 sm:$0x3]
      %v1683 = vlaneseq
      %v1684 = vshrl.u32 %v1683, 7
      %v1685 = vsub.s32 0, %v1684
      %v1686 = vrot.slane %v1681, %v1685
      %v1687 = vlaneseq
      %v1688 = vshrl.u32 %v1687, 7
      %v1689 = vsub.s32 1, %v1688
      %v1690 = vrot.slane %v1681, %v1689
      %v1693 = vmul.f32 %v1259, %v1686
      %v1694 = vmul.f32 %v1261, %v1690
      %v1695 = vmul.f32 %v1260, %v1686
      %v1696 = vmul.f32 %v1262, %v1690
      %1697 = vst [vmem:[#allocation2 + $0x1e0] sm:$0xff] %v1693
      %1698 = vst [vmem:[#allocation2 + $0x1e8] sm:$0xff] %v1694
      %1699 = vst [vmem:[#allocation2 + $0x1f0] sm:$0xff] %v1695
      %1700 = vst [vmem:[#allocation2 + $0x1f8] sm:$0xff] %v1696
      %1701 = vrot.lane.b32.xlu0 %v1207, 43
      %v1702 = vpop.permute.xlu0 %1701
      %1703 = vrot.lane.b32.xlu0 %v1213, 43
      %v1704 = vpop.permute.xlu0 %1703
      %1705 = vrot.lane.b32.xlu0 %v1209, 43
      %v1706 = vpop.permute.xlu0 %1705
      %1707 = vrot.lane.b32.xlu0 %v1215, 43
      %v1708 = vpop.permute.xlu0 %1707
      %vm1709 = vcmp.lt.s32.totalorder %v558, 43
      %v1710 = vsel %vm1709, %v1702, %v1706
      %v1711 = vsel %vm1709, %v1704, %v1708
      %v1712 = vsel %vm1709, %v1706, %v1702
      %v1713 = vsel %vm1709, %v1708, %v1704
      %s1714 = scalar_lea.vmem %s1, 54
      %v1715 = vld [vmem:[%s1714] ss:$8 sm:$0x3]
      %v1717 = vlaneseq
      %v1718 = vshrl.u32 %v1717, 7
      %v1719 = vsub.s32 0, %v1718
      %v1720 = vrot.slane %v1715, %v1719
      %v1721 = vlaneseq
      %v1722 = vshrl.u32 %v1721, 7
      %v1723 = vsub.s32 1, %v1722
      %v1724 = vrot.slane %v1715, %v1723
      %v1727 = vmul.f32 %v1710, %v1720
      %v1728 = vmul.f32 %v1712, %v1724
      %v1729 = vmul.f32 %v1711, %v1720
      %v1730 = vmul.f32 %v1713, %v1724
      %1731 = vst [vmem:[#allocation2 + $0x200] sm:$0xff] %v1727
      %1732 = vst [vmem:[#allocation2 + $0x208] sm:$0xff] %v1728
      %1733 = vst [vmem:[#allocation2 + $0x210] sm:$0xff] %v1729
      %1734 = vst [vmem:[#allocation2 + $0x218] sm:$0xff] %v1730
      %1735 = vrot.lane.b32.xlu0 %v1207, 119
      %v1736 = vpop.permute.xlu0 %1735
      %1737 = vrot.lane.b32.xlu0 %v1213, 119
      %v1738 = vpop.permute.xlu0 %1737
      %1739 = vrot.lane.b32.xlu0 %v1209, 119
      %v1740 = vpop.permute.xlu0 %1739
      %1741 = vrot.lane.b32.xlu0 %v1215, 119
      %v1742 = vpop.permute.xlu0 %1741
      %vm1743 = vcmp.lt.s32.totalorder %v558, 119
      %v1744 = vsel %vm1743, %v1736, %v1740
      %v1745 = vsel %vm1743, %v1738, %v1742
      %v1746 = vsel %vm1743, %v1740, %v1736
      %v1747 = vsel %vm1743, %v1742, %v1738
      %s1748 = scalar_lea.vmem %s1, 55
      %v1749 = vld [vmem:[%s1748] ss:$8 sm:$0x3]
      %v1751 = vlaneseq
      %v1752 = vshrl.u32 %v1751, 7
      %v1753 = vsub.s32 0, %v1752
      %v1754 = vrot.slane %v1749, %v1753
      %v1755 = vlaneseq
      %v1756 = vshrl.u32 %v1755, 7
      %v1757 = vsub.s32 1, %v1756
      %v1758 = vrot.slane %v1749, %v1757
      %v1761 = vmul.f32 %v1746, %v1754
      %v1762 = vmul.f32 %v1744, %v1758
      %v1763 = vmul.f32 %v1747, %v1754
      %v1764 = vmul.f32 %v1745, %v1758
      %1765 = vst [vmem:[#allocation2 + $0x220] sm:$0xff] %v1761
      %1766 = vst [vmem:[#allocation2 + $0x228] sm:$0xff] %v1762
      %1767 = vst [vmem:[#allocation2 + $0x230] sm:$0xff] %v1763
      %1768 = vst [vmem:[#allocation2 + $0x238] sm:$0xff] %v1764
      %1769 = vrot.lane.b32.xlu0 %v1207, 112
      %v1770 = vpop.permute.xlu0 %1769
      %1771 = vrot.lane.b32.xlu0 %v1213, 112
      %v1772 = vpop.permute.xlu0 %1771
      %1773 = vrot.lane.b32.xlu0 %v1209, 112
      %v1774 = vpop.permute.xlu0 %1773
      %1775 = vrot.lane.b32.xlu0 %v1215, 112
      %v1776 = vpop.permute.xlu0 %1775
      %v1777 = vsel %vm998, %v1770, %v1774
      %v1778 = vsel %vm998, %v1772, %v1776
      %v1779 = vsel %vm998, %v1774, %v1770
      %v1780 = vsel %vm998, %v1776, %v1772
      %s1781 = scalar_lea.vmem %s1, 64
      %v1782 = vld [vmem:[%s1781] ss:$8 sm:$0x3]
      %v1784 = vlaneseq
      %v1785 = vshrl.u32 %v1784, 7
      %v1786 = vsub.s32 0, %v1785
      %v1787 = vrot.slane %v1782, %v1786
      %v1788 = vlaneseq
      %v1789 = vshrl.u32 %v1788, 7
      %v1790 = vsub.s32 1, %v1789
      %v1791 = vrot.slane %v1782, %v1790
      %v1794 = vmul.f32 %v1779, %v1787
      %v1795 = vmul.f32 %v1777, %v1791
      %v1796 = vmul.f32 %v1780, %v1787
      %v1797 = vmul.f32 %v1778, %v1791
      %1798 = vst [vmem:[#allocation2 + $0x240] sm:$0xff] %v1794
      %1799 = vst [vmem:[#allocation2 + $0x248] sm:$0xff] %v1795
      %1800 = vst [vmem:[#allocation2 + $0x250] sm:$0xff] %v1796
      %1801 = vst [vmem:[#allocation2 + $0x258] sm:$0xff] %v1797
      %1802 = vrot.lane.b32.xlu0 %v1207, 105
      %v1803 = vpop.permute.xlu0 %1802
      %1804 = vrot.lane.b32.xlu0 %v1213, 105
      %v1805 = vpop.permute.xlu0 %1804
      %1806 = vrot.lane.b32.xlu0 %v1209, 105
      %v1807 = vpop.permute.xlu0 %1806
      %1808 = vrot.lane.b32.xlu0 %v1215, 105
      %v1809 = vpop.permute.xlu0 %1808
      %vm1810 = vcmp.lt.s32.totalorder %v558, 105
      %v1811 = vsel %vm1810, %v1803, %v1807
      %v1812 = vsel %vm1810, %v1805, %v1809
      %v1813 = vsel %vm1810, %v1807, %v1803
      %v1814 = vsel %vm1810, %v1809, %v1805
      %s1815 = scalar_lea.vmem %s1, 65
      %v1816 = vld [vmem:[%s1815] ss:$8 sm:$0x3]
      %v1818 = vlaneseq
      %v1819 = vshrl.u32 %v1818, 7
      %v1820 = vsub.s32 0, %v1819
      %v1821 = vrot.slane %v1816, %v1820
      %v1822 = vlaneseq
      %v1823 = vshrl.u32 %v1822, 7
      %v1824 = vsub.s32 1, %v1823
      %v1825 = vrot.slane %v1816, %v1824
      %v1828 = vmul.f32 %v1813, %v1821
      %v1829 = vmul.f32 %v1811, %v1825
      %v1830 = vmul.f32 %v1814, %v1821
      %v1831 = vmul.f32 %v1812, %v1825
      %1832 = vst [vmem:[#allocation2 + $0x260] sm:$0xff] %v1828
      %1833 = vst [vmem:[#allocation2 + $0x268] sm:$0xff] %v1829
      %1834 = vst [vmem:[#allocation2 + $0x270] sm:$0xff] %v1830
      %1835 = vst [vmem:[#allocation2 + $0x278] sm:$0xff] %v1831
      %1836 = vrot.lane.b32.xlu0 %v1207, 7
      %v1837 = vpop.permute.xlu0 %1836
      %1838 = vrot.lane.b32.xlu0 %v1213, 7
      %v1839 = vpop.permute.xlu0 %1838
      %1840 = vrot.lane.b32.xlu0 %v1209, 7
      %v1841 = vpop.permute.xlu0 %1840
      %1842 = vrot.lane.b32.xlu0 %v1215, 7
      %v1843 = vpop.permute.xlu0 %1842
      %vm1844 = vcmp.lt.s32.totalorder %v558, 7
      %v1845 = vsel %vm1844, %v1837, %v1841
      %v1846 = vsel %vm1844, %v1839, %v1843
      %v1847 = vsel %vm1844, %v1841, %v1837
      %v1848 = vsel %vm1844, %v1843, %v1839
      %s1849 = scalar_lea.vmem %s1, 66
      %v1850 = vld [vmem:[%s1849] ss:$8 sm:$0x3]
      %v1852 = vlaneseq
      %v1853 = vshrl.u32 %v1852, 7
      %v1854 = vsub.s32 0, %v1853
      %v1855 = vrot.slane %v1850, %v1854
      %v1856 = vlaneseq
      %v1857 = vshrl.u32 %v1856, 7
      %v1858 = vsub.s32 1, %v1857
      %v1859 = vrot.slane %v1850, %v1858
      %v1862 = vmul.f32 %v1847, %v1855
      %v1863 = vmul.f32 %v1845, %v1859
      %v1864 = vmul.f32 %v1848, %v1855
      %v1865 = vmul.f32 %v1846, %v1859
      %1866 = vst [vmem:[#allocation2 + $0x280] sm:$0xff] %v1862
      %1867 = vst [vmem:[#allocation2 + $0x288] sm:$0xff] %v1863
      %1868 = vst [vmem:[#allocation2 + $0x290] sm:$0xff] %v1864
      %1869 = vst [vmem:[#allocation2 + $0x298] sm:$0xff] %v1865
      %1870 = vrot.lane.b32.xlu0 %v1207, 121
      %v1871 = vpop.permute.xlu0 %1870
      %1872 = vrot.lane.b32.xlu0 %v1213, 121
      %v1873 = vpop.permute.xlu0 %1872
      %1874 = vrot.lane.b32.xlu0 %v1209, 121
      %v1875 = vpop.permute.xlu0 %1874
      %1876 = vrot.lane.b32.xlu0 %v1215, 121
      %v1877 = vpop.permute.xlu0 %1876
      %vm1878 = vcmp.lt.s32.totalorder %v558, 121
      %v1879 = vsel %vm1878, %v1871, %v1875
      %v1880 = vsel %vm1878, %v1873, %v1877
      %v1881 = vsel %vm1878, %v1875, %v1871
      %v1882 = vsel %vm1878, %v1877, %v1873
      %s1883 = scalar_lea.vmem %s1, 67
      %v1884 = vld [vmem:[%s1883] ss:$8 sm:$0x3]
      %v1886 = vlaneseq
      %v1887 = vshrl.u32 %v1886, 7
      %v1888 = vsub.s32 0, %v1887
      %v1889 = vrot.slane %v1884, %v1888
      %v1890 = vlaneseq
      %v1891 = vshrl.u32 %v1890, 7
      %v1892 = vsub.s32 1, %v1891
      %v1893 = vrot.slane %v1884, %v1892
      %v1896 = vmul.f32 %v1879, %v1889
      %v1897 = vmul.f32 %v1881, %v1893
      %v1898 = vmul.f32 %v1880, %v1889
      %v1899 = vmul.f32 %v1882, %v1893
      %1900 = vst [vmem:[#allocation2 + $0x2a0] sm:$0xff] %v1896
      %1901 = vst [vmem:[#allocation2 + $0x2a8] sm:$0xff] %v1897
      %1902 = vst [vmem:[#allocation2 + $0x2b0] sm:$0xff] %v1898
      %1903 = vst [vmem:[#allocation2 + $0x2b8] sm:$0xff] %v1899
      %1904 = vrot.lane.b32.xlu0 %v1207, 23
      %v1905 = vpop.permute.xlu0 %1904
      %1906 = vrot.lane.b32.xlu0 %v1213, 23
      %v1907 = vpop.permute.xlu0 %1906
      %1908 = vrot.lane.b32.xlu0 %v1209, 23
      %v1909 = vpop.permute.xlu0 %1908
      %1910 = vrot.lane.b32.xlu0 %v1215, 23
      %v1911 = vpop.permute.xlu0 %1910
      %vm1912 = vcmp.lt.s32.totalorder %v558, 23
      %v1913 = vsel %vm1912, %v1905, %v1909
      %v1914 = vsel %vm1912, %v1907, %v1911
      %v1915 = vsel %vm1912, %v1909, %v1905
      %v1916 = vsel %vm1912, %v1911, %v1907
      %s1917 = scalar_lea.vmem %s1, 68
      %v1918 = vld [vmem:[%s1917] ss:$8 sm:$0x3]
      %v1920 = vlaneseq
      %v1921 = vshrl.u32 %v1920, 7
      %v1922 = vsub.s32 0, %v1921
      %v1923 = vrot.slane %v1918, %v1922
      %v1924 = vlaneseq
      %v1925 = vshrl.u32 %v1924, 7
      %v1926 = vsub.s32 1, %v1925
      %v1927 = vrot.slane %v1918, %v1926
      %v1930 = vmul.f32 %v1913, %v1923
      %v1931 = vmul.f32 %v1915, %v1927
      %v1932 = vmul.f32 %v1914, %v1923
      %v1933 = vmul.f32 %v1916, %v1927
      %1934 = vst [vmem:[#allocation2 + $0x2c0] sm:$0xff] %v1930
      %1935 = vst [vmem:[#allocation2 + $0x2c8] sm:$0xff] %v1931
      %1936 = vst [vmem:[#allocation2 + $0x2d0] sm:$0xff] %v1932
      %1937 = vst [vmem:[#allocation2 + $0x2d8] sm:$0xff] %v1933
      %1938 = vrot.lane.b32.xlu0 %v1207, 16
      %v1939 = vpop.permute.xlu0 %1938
      %1940 = vrot.lane.b32.xlu0 %v1213, 16
      %v1941 = vpop.permute.xlu0 %1940
      %1942 = vrot.lane.b32.xlu0 %v1209, 16
      %v1943 = vpop.permute.xlu0 %1942
      %1944 = vrot.lane.b32.xlu0 %v1215, 16
      %v1945 = vpop.permute.xlu0 %1944
      %v1946 = vsel %vm960, %v1939, %v1943
      %v1947 = vsel %vm960, %v1941, %v1945
      %v1948 = vsel %vm960, %v1943, %v1939
      %v1949 = vsel %vm960, %v1945, %v1941
      %s1950 = scalar_lea.vmem %s1, 69
      %v1951 = vld [vmem:[%s1950] ss:$8 sm:$0x3]
      %v1953 = vlaneseq
      %v1954 = vshrl.u32 %v1953, 7
      %v1955 = vsub.s32 0, %v1954
      %v1956 = vrot.slane %v1951, %v1955
      %v1957 = vlaneseq
      %v1958 = vshrl.u32 %v1957, 7
      %v1959 = vsub.s32 1, %v1958
      %v1960 = vrot.slane %v1951, %v1959
      %v1963 = vmul.f32 %v1946, %v1956
      %v1964 = vmul.f32 %v1948, %v1960
      %v1965 = vmul.f32 %v1947, %v1956
      %v1966 = vmul.f32 %v1949, %v1960
      %1967 = vst [vmem:[#allocation2 + $0x2e0] sm:$0xff] %v1963
      %1968 = vst [vmem:[#allocation2 + $0x2e8] sm:$0xff] %v1964
      %1969 = vst [vmem:[#allocation2 + $0x2f0] sm:$0xff] %v1965
      %1970 = vst [vmem:[#allocation2 + $0x2f8] sm:$0xff] %v1966
      %1971 = vrot.lane.b32.xlu0 %v1207, 9
      %v1972 = vpop.permute.xlu0 %1971
      %1973 = vrot.lane.b32.xlu0 %v1213, 9
      %v1974 = vpop.permute.xlu0 %1973
      %1975 = vrot.lane.b32.xlu0 %v1209, 9
      %v1976 = vpop.permute.xlu0 %1975
      %1977 = vrot.lane.b32.xlu0 %v1215, 9
      %v1978 = vpop.permute.xlu0 %1977
      %vm1979 = vcmp.lt.s32.totalorder %v558, 9
      %v1980 = vsel %vm1979, %v1972, %v1976
      %v1981 = vsel %vm1979, %v1974, %v1978
      %v1982 = vsel %vm1979, %v1976, %v1972
      %v1983 = vsel %vm1979, %v1978, %v1974
      %s1984 = scalar_lea.vmem %s1, 70
      %v1985 = vld [vmem:[%s1984] ss:$8 sm:$0x3]
      %v1987 = vlaneseq
      %v1988 = vshrl.u32 %v1987, 7
      %v1989 = vsub.s32 0, %v1988
      %v1990 = vrot.slane %v1985, %v1989
      %v1991 = vlaneseq
      %v1992 = vshrl.u32 %v1991, 7
      %v1993 = vsub.s32 1, %v1992
      %v1994 = vrot.slane %v1985, %v1993
      %v1997 = vmul.f32 %v1980, %v1990
      %v1998 = vmul.f32 %v1982, %v1994
      %v1999 = vmul.f32 %v1981, %v1990
      %v2000 = vmul.f32 %v1983, %v1994
      %2001 = vst [vmem:[#allocation2 + $0x300] sm:$0xff] %v1997
      %2002 = vst [vmem:[#allocation2 + $0x308] sm:$0xff] %v1998
      %2003 = vst [vmem:[#allocation2 + $0x310] sm:$0xff] %v1999
      %2004 = vst [vmem:[#allocation2 + $0x318] sm:$0xff] %v2000
      %v2005 = vld [vmem:[%s8] sm:$0xff]
      %v2006 = vld [vmem:[%s8 + $0x8] sm:$0xff]
      %v2007 = vld [vmem:[%s8 + $0x10] sm:$0xff]
      %v2008 = vld [vmem:[%s8 + $0x18] sm:$0xff]
      %v2009 = vld [vmem:[%s8 + $0x20] sm:$0xff]
      %v2010 = vld [vmem:[%s8 + $0x28] sm:$0xff]
      %v2011 = vld [vmem:[%s8 + $0x30] sm:$0xff]
      %v2012 = vld [vmem:[%s8 + $0x38] sm:$0xff]
      %v2013 = vld [vmem:[#allocation2] sm:$0xff]
      %v2014 = vld [vmem:[#allocation2 + $0x8] sm:$0xff]
      %v2015 = vld [vmem:[#allocation2 + $0x10] sm:$0xff]
      %v2016 = vld [vmem:[#allocation2 + $0x18] sm:$0xff]
      %v2017 = vld [vmem:[#allocation2 + $0x20] sm:$0xff]
      %v2018 = vld [vmem:[#allocation2 + $0x28] sm:$0xff]
      %v2019 = vld [vmem:[#allocation2 + $0x30] sm:$0xff]
      %v2020 = vld [vmem:[#allocation2 + $0x38] sm:$0xff]
      %v2021 = vld [vmem:[#allocation2 + $0x40] sm:$0xff]
      %v2022 = vld [vmem:[#allocation2 + $0x48] sm:$0xff]
      %v2023 = vld [vmem:[#allocation2 + $0x50] sm:$0xff]
      %v2024 = vld [vmem:[#allocation2 + $0x58] sm:$0xff]
      %v2025 = vld [vmem:[#allocation2 + $0x60] sm:$0xff]
      %v2026 = vld [vmem:[#allocation2 + $0x68] sm:$0xff]
      %v2027 = vld [vmem:[#allocation2 + $0x70] sm:$0xff]
      %v2028 = vld [vmem:[#allocation2 + $0x78] sm:$0xff]
      %v2029 = vld [vmem:[#allocation2 + $0x80] sm:$0xff]
      %v2030 = vld [vmem:[#allocation2 + $0x88] sm:$0xff]
      %v2031 = vld [vmem:[#allocation2 + $0x90] sm:$0xff]
      %v2032 = vld [vmem:[#allocation2 + $0x98] sm:$0xff]
      %v2033 = vld [vmem:[#allocation2 + $0xa0] sm:$0xff]
      %v2034 = vld [vmem:[#allocation2 + $0xa8] sm:$0xff]
      %v2035 = vld [vmem:[#allocation2 + $0xb0] sm:$0xff]
      %v2036 = vld [vmem:[#allocation2 + $0xb8] sm:$0xff]
      %v2037 = vld [vmem:[#allocation2 + $0xc0] sm:$0xff]
      %v2038 = vld [vmem:[#allocation2 + $0xc8] sm:$0xff]
      %v2039 = vld [vmem:[#allocation2 + $0xd0] sm:$0xff]
      %v2040 = vld [vmem:[#allocation2 + $0xd8] sm:$0xff]
      %v2041 = vld [vmem:[#allocation2 + $0xe0] sm:$0xff]
      %v2042 = vld [vmem:[#allocation2 + $0xe8] sm:$0xff]
      %v2043 = vld [vmem:[#allocation2 + $0xf0] sm:$0xff]
      %v2044 = vld [vmem:[#allocation2 + $0xf8] sm:$0xff]
      %v2045 = vld [vmem:[#allocation2 + $0x100] sm:$0xff]
      %v2046 = vld [vmem:[#allocation2 + $0x108] sm:$0xff]
      %v2047 = vld [vmem:[#allocation2 + $0x110] sm:$0xff]
      %v2048 = vld [vmem:[#allocation2 + $0x118] sm:$0xff]
      %v2049 = vld [vmem:[#allocation2 + $0x120] sm:$0xff]
      %v2050 = vld [vmem:[#allocation2 + $0x128] sm:$0xff]
      %v2051 = vld [vmem:[#allocation2 + $0x130] sm:$0xff]
      %v2052 = vld [vmem:[#allocation2 + $0x138] sm:$0xff]
      %v2053 = vld [vmem:[#allocation2 + $0x140] sm:$0xff]
      %v2054 = vld [vmem:[#allocation2 + $0x148] sm:$0xff]
      %v2055 = vld [vmem:[#allocation2 + $0x150] sm:$0xff]
      %v2056 = vld [vmem:[#allocation2 + $0x158] sm:$0xff]
      %v2057 = vld [vmem:[#allocation2 + $0x160] sm:$0xff]
      %v2058 = vld [vmem:[#allocation2 + $0x168] sm:$0xff]
      %v2059 = vld [vmem:[#allocation2 + $0x170] sm:$0xff]
      %v2060 = vld [vmem:[#allocation2 + $0x178] sm:$0xff]
      %v2061 = vld [vmem:[#allocation2 + $0x180] sm:$0xff]
      %v2062 = vld [vmem:[#allocation2 + $0x188] sm:$0xff]
      %v2063 = vld [vmem:[#allocation2 + $0x190] sm:$0xff]
      %v2064 = vld [vmem:[#allocation2 + $0x198] sm:$0xff]
      %v2065 = vld [vmem:[#allocation2 + $0x1a0] sm:$0xff]
      %v2066 = vld [vmem:[#allocation2 + $0x1a8] sm:$0xff]
      %v2067 = vld [vmem:[#allocation2 + $0x1b0] sm:$0xff]
      %v2068 = vld [vmem:[#allocation2 + $0x1b8] sm:$0xff]
      %v2069 = vld [vmem:[#allocation2 + $0x1c0] sm:$0xff]
      %v2070 = vld [vmem:[#allocation2 + $0x1c8] sm:$0xff]
      %v2071 = vld [vmem:[#allocation2 + $0x1d0] sm:$0xff]
      %v2072 = vld [vmem:[#allocation2 + $0x1d8] sm:$0xff]
      %v2073 = vld [vmem:[#allocation2 + $0x1e0] sm:$0xff]
      %v2074 = vld [vmem:[#allocation2 + $0x1e8] sm:$0xff]
      %v2075 = vld [vmem:[#allocation2 + $0x1f0] sm:$0xff]
      %v2076 = vld [vmem:[#allocation2 + $0x1f8] sm:$0xff]
      %v2077 = vld [vmem:[#allocation2 + $0x200] sm:$0xff]
      %v2078 = vld [vmem:[#allocation2 + $0x208] sm:$0xff]
      %v2079 = vld [vmem:[#allocation2 + $0x210] sm:$0xff]
      %v2080 = vld [vmem:[#allocation2 + $0x218] sm:$0xff]
      %v2081 = vld [vmem:[#allocation2 + $0x220] sm:$0xff]
      %v2082 = vld [vmem:[#allocation2 + $0x228] sm:$0xff]
      %v2083 = vld [vmem:[#allocation2 + $0x230] sm:$0xff]
      %v2084 = vld [vmem:[#allocation2 + $0x238] sm:$0xff]
      %v2085 = vld [vmem:[#allocation2 + $0x240] sm:$0xff]
      %v2086 = vld [vmem:[#allocation2 + $0x248] sm:$0xff]
      %v2087 = vld [vmem:[#allocation2 + $0x250] sm:$0xff]
      %v2088 = vld [vmem:[#allocation2 + $0x258] sm:$0xff]
      %v2089 = vld [vmem:[#allocation2 + $0x260] sm:$0xff]
      %v2090 = vld [vmem:[#allocation2 + $0x268] sm:$0xff]
      %v2091 = vld [vmem:[#allocation2 + $0x270] sm:$0xff]
      %v2092 = vld [vmem:[#allocation2 + $0x278] sm:$0xff]
      %v2093 = vld [vmem:[#allocation2 + $0x280] sm:$0xff]
      %v2094 = vld [vmem:[#allocation2 + $0x288] sm:$0xff]
      %v2095 = vld [vmem:[#allocation2 + $0x290] sm:$0xff]
      %v2096 = vld [vmem:[#allocation2 + $0x298] sm:$0xff]
      %v2097 = vld [vmem:[#allocation2 + $0x2a0] sm:$0xff]
      %v2098 = vld [vmem:[#allocation2 + $0x2a8] sm:$0xff]
      %v2099 = vld [vmem:[#allocation2 + $0x2b0] sm:$0xff]
      %v2100 = vld [vmem:[#allocation2 + $0x2b8] sm:$0xff]
      %v2101 = vld [vmem:[#allocation2 + $0x2c0] sm:$0xff]
      %v2102 = vld [vmem:[#allocation2 + $0x2c8] sm:$0xff]
      %v2103 = vld [vmem:[#allocation2 + $0x2d0] sm:$0xff]
      %v2104 = vld [vmem:[#allocation2 + $0x2d8] sm:$0xff]
      %v2105 = vld [vmem:[#allocation2 + $0x2e0] sm:$0xff]
      %v2106 = vld [vmem:[#allocation2 + $0x2e8] sm:$0xff]
      %v2107 = vld [vmem:[#allocation2 + $0x2f0] sm:$0xff]
      %v2108 = vld [vmem:[#allocation2 + $0x2f8] sm:$0xff]
      %v2109 = vld [vmem:[#allocation2 + $0x300] sm:$0xff]
      %v2110 = vld [vmem:[#allocation2 + $0x308] sm:$0xff]
      %v2111 = vld [vmem:[#allocation2 + $0x310] sm:$0xff]
      %v2112 = vld [vmem:[#allocation2 + $0x318] sm:$0xff]
      %v2113 = vld [vmem:[%s9] sm:$0xff]
      %v2114 = vld [vmem:[%s9 + $0x8] sm:$0xff]
      %2116 = vset.pattern.permute.xlu0 0
      %2117 = vperm.xlu0 %2116, %v2113
      %v2118 = vpop.permute.xlu0 %2117
      %2121 = vset.pattern.permute.xlu0 0
      %2122 = vperm.xlu0 %2121, %v2114
      %v2123 = vpop.permute.xlu0 %2122
      %vm2125 = vcmask 130048
      %v2127 = vsel %vm2125, %v2008, 0
      %v2130 = vsel %vm2125, %v2012, 0
      %2132 = vmatprep.subr.mxu0 %v2014
      %2133 = vmatpush1.msra.mxu0 %v2013
      %2134 = vmatprep.subr.mxu0 %v2016
      %2135 = vmatpush1.msra.mxu0 %v2015
      %2136 = vmatprep.subr.mxu0 %v2018
      %2137 = vmatpush1.msra.mxu0 %v2017
      %2138 = vmatprep.subr.mxu0 %v2020
      %2139 = vmatpush1.msra.mxu0 %v2019
      %2140 = vmatprep.subr.mxu0 %v2022
      %2141 = vmatpush1.msra.mxu0 %v2021
      %2142 = vmatprep.subr.mxu0 %v2024
      %2143 = vmatpush1.msra.mxu0 %v2023
      %2144 = vmatprep.subr.mxu0 %v2026
      %2145 = vmatpush1.msra.mxu0 %v2025
      %2146 = vmatprep.subr.mxu0 %v2028
      %2147 = vmatpush1.msra.mxu0 %v2027
      %2148 = vmatprep.subr.mxu0 %v2030
      %2149 = vmatpush1.msra.mxu0 %v2029
      %2150 = vmatprep.subr.mxu0 %v2032
      %2151 = vmatpush1.msra.mxu0 %v2031
      %2152 = vmatprep.subr.mxu0 %v2034
      %2153 = vmatpush1.msra.mxu0 %v2033
      %2154 = vmatprep.subr.mxu0 %v2036
      %2155 = vmatpush1.msra.mxu0 %v2035
      %2156 = vmatprep.subr.mxu0 %v2038
      %2157 = vmatpush1.msra.mxu0 %v2037
      %2158 = vmatprep.subr.mxu0 %v2040
      %2159 = vmatpush1.msra.mxu0 %v2039
      %2160 = vmatprep.subr.mxu0 %v2042
      %2161 = vmatpush1.msra.mxu0 %v2041
      %2162 = vmatprep.subr.mxu0 %v2044
      %2163 = vmatpush1.msra.mxu0 %v2043
      %2164 = vmatprep.subr.mxu0 %v2046
      %2165 = vmatpush1.msra.mxu0 %v2045
      %2166 = vmatprep.subr.mxu0 %v2048
      %2167 = vmatpush1.msra.mxu0 %v2047
      %2168 = vmatprep.subr.mxu0 %v2050
      %2169 = vmatpush1.msra.mxu0 %v2049
      %2170 = vmatprep.subr.mxu0 %v2052
      %2171 = vmatpush1.msra.mxu0 %v2051
      %2172 = vmatprep.subr.mxu0 %v2054
      %2173 = vmatpush1.msra.mxu0 %v2053
      %2174 = vmatprep.subr.mxu0 %v2056
      %2175 = vmatpush1.msra.mxu0 %v2055
      %2176 = vmatprep.subr.mxu0 %v2058
      %2177 = vmatpush1.msra.mxu0 %v2057
      %2178 = vmatprep.subr.mxu0 %v2060
      %2179 = vmatpush1.msra.mxu0 %v2059
      %2180 = vmatprep.subr.mxu0 %v2062
      %2181 = vmatpush1.msra.mxu0 %v2061
      %2182 = vmatprep.subr.mxu0 %v2064
      %2183 = vmatpush1.msra.mxu0 %v2063
      %2184 = vmatprep.subr.mxu0 %v2066
      %2185 = vmatpush1.msra.mxu0 %v2065
      %2186 = vmatprep.subr.mxu0 %v2068
      %2187 = vmatpush1.msra.mxu0 %v2067
      %2188 = vmatprep.subr.mxu0 %v2070
      %2189 = vmatpush1.msra.mxu0 %v2069
      %2190 = vmatprep.subr.mxu0 %v2072
      %2191 = vmatpush1.msra.mxu0 %v2071
      %2192 = vmatprep.subr.mxu0 %v2074
      %2193 = vmatpush1.msra.mxu0 %v2073
      %2194 = vmatprep.subr.mxu0 %v2076
      %2195 = vmatpush1.msra.mxu0 %v2075
      %2196 = vmatprep.mubr.f32.mxu0 %v2006
      %2197 = vmatmul.mubr.f32.gmra.mrb[0].mxu0 %v2005
      %v2198 = vpop.f32.mrb[0].mxu0
      %v2199 = vadd.f32 %v2118, %v2198
      %v2200 = vpop.f32.mrb[0].mxu0
      %v2201 = vadd.f32 %v2118, %v2200
      %2202 = vmatprep.mubr.f32.mxu0 %v2010
      %2203 = vmatmul.mubr.f32.gmra.mrb[0].mxu0 %v2009
      %v2204 = vpop.f32.mrb[0].mxu0
      %v2205 = vadd.f32 %v2123, %v2204
      %v2206 = vpop.f32.mrb[0].mxu0
      %v2207 = vadd.f32 %v2123, %v2206
      %2208 = vdwg.mxu0
      %2209 = vmatprep.subr.mxu0 %v2078
      %2210 = vmatpush1.msra.mxu0 %v2077
      %2211 = vmatprep.subr.mxu0 %v2080
      %2212 = vmatpush1.msra.mxu0 %v2079
      %2213 = vmatprep.subr.mxu0 %v2082
      %2214 = vmatpush1.msra.mxu0 %v2081
      %2215 = vmatprep.subr.mxu0 %v2084
      %2216 = vmatpush1.msra.mxu0 %v2083
      %2217 = vmatprep.subr.mxu0 %v2086
      %2218 = vmatpush1.msra.mxu0 %v2085
      %2219 = vmatprep.subr.mxu0 %v2088
      %2220 = vmatpush1.msra.mxu0 %v2087
      %2221 = vmatprep.subr.mxu0 %v2090
      %2222 = vmatpush1.msra.mxu0 %v2089
      %2223 = vmatprep.subr.mxu0 %v2092
      %2224 = vmatpush1.msra.mxu0 %v2091
      %2225 = vmatprep.subr.mxu0 %v2094
      %2226 = vmatpush1.msra.mxu0 %v2093
      %2227 = vmatprep.subr.mxu0 %v2096
      %2228 = vmatpush1.msra.mxu0 %v2095
      %2229 = vmatprep.subr.mxu0 %v2098
      %2230 = vmatpush1.msra.mxu0 %v2097
      %2231 = vmatprep.subr.mxu0 %v2100
      %2232 = vmatpush1.msra.mxu0 %v2099
      %2233 = vmatprep.subr.mxu0 %v2102
      %2234 = vmatpush1.msra.mxu0 %v2101
      %2235 = vmatprep.subr.mxu0 %v2104
      %2236 = vmatpush1.msra.mxu0 %v2103
      %2237 = vmatprep.subr.mxu0 %v2106
      %2238 = vmatpush1.msra.mxu0 %v2105
      %2239 = vmatprep.subr.mxu0 %v2108
      %2240 = vmatpush1.msra.mxu0 %v2107
      %2241 = vmatprep.subr.mxu0 %v2110
      %2242 = vmatpush1.msra.mxu0 %v2109
      %2243 = vmatprep.subr.mxu0 %v2112
      %2244 = vmatpush1.msra.mxu0 %v2111
      %2245 = vmatprep.subr.mxu0 0.0
      %2246 = vmatpush1.msra.mxu0 0.0
      %2247 = vmatprep.subr.mxu0 0.0
      %2248 = vmatpush1.msra.mxu0 0.0
      %2249 = vmatprep.subr.mxu0 0.0
      %2250 = vmatpush1.msra.mxu0 0.0
      %2251 = vmatprep.subr.mxu0 0.0
      %2252 = vmatpush1.msra.mxu0 0.0
      %2253 = vmatprep.subr.mxu0 0.0
      %2254 = vmatpush1.msra.mxu0 0.0
      %2255 = vmatprep.subr.mxu0 0.0
      %2256 = vmatpush1.msra.mxu0 0.0
      %2257 = vmatprep.subr.mxu0 0.0
      %2258 = vmatpush1.msra.mxu0 0.0
      %2259 = vmatprep.subr.mxu0 0.0
      %2260 = vmatpush1.msra.mxu0 0.0
      %2261 = vmatprep.subr.mxu0 0.0
      %2262 = vmatpush1.msra.mxu0 0.0
      %2263 = vmatprep.subr.mxu0 0.0
      %2264 = vmatpush1.msra.mxu0 0.0
      %2265 = vmatprep.subr.mxu0 0.0
      %2266 = vmatpush1.msra.mxu0 0.0
      %2267 = vmatprep.subr.mxu0 0.0
      %2268 = vmatpush1.msra.mxu0 0.0
      %2269 = vmatprep.subr.mxu0 0.0
      %2270 = vmatpush1.msra.mxu0 0.0
      %2271 = vmatprep.subr.mxu0 0.0
      %2272 = vmatpush1.msra.mxu0 0.0
      %2273 = vmatprep.mubr.f32.mxu0 %v2127
      %2274 = vmatmul.mubr.f32.gmra.mrb[0].mxu0 %v2007
      %v2275 = vpop.f32.mrb[0].mxu0
      %v2276 = vadd.f32 %v2199, %v2275
      %v2277 = vpop.f32.mrb[0].mxu0
      %v2278 = vadd.f32 %v2201, %v2277
      %2279 = vmatprep.mubr.f32.mxu0 %v2130
      %2280 = vmatmul.mubr.f32.gmra.mrb[0].mxu0 %v2011
      %v2281 = vpop.f32.mrb[0].mxu0
      %v2282 = vadd.f32 %v2205, %v2281
      %v2283 = vpop.f32.mrb[0].mxu0
      %v2284 = vadd.f32 %v2207, %v2283
      %2285 = vdwg.mxu0
      %2286 = vrot.lane.b32.xlu0 %v527, 17
      %v2287 = vpop.permute.xlu0 %2286
      %2288 = vrot.lane.b32.xlu0 %v529, 17
      %v2289 = vpop.permute.xlu0 %2288
      %vm2290 = vcmp.lt.s32.totalorder %v558, 17
      %v2291 = vsel %vm2290, %v2287, %v2289
      %v2292 = vsel %vm2290, %v2289, %v2287
      %s2293 = scalar_lea.vmem %s1, 71
      %v2294 = vld [vmem:[%s2293] ss:$8 sm:$0x3]
      %v2296 = vlaneseq
      %v2297 = vshrl.u32 %v2296, 7
      %v2298 = vsub.s32 0, %v2297
      %v2299 = vrot.slane %v2294, %v2298
      %v2300 = vlaneseq
      %v2301 = vshrl.u32 %v2300, 7
      %v2302 = vsub.s32 1, %v2301
      %v2303 = vrot.slane %v2294, %v2302
      %v2306 = vmul.f32 %v2292, %v2299
      %v2307 = vmul.f32 %v2291, %v2303
      %2308 = vst [vmem:[#allocation2] sm:$0xff] %v2306
      %2309 = vst [vmem:[#allocation2 + $0x8] sm:$0xff] %v2307
      %2310 = vrot.lane.b32.xlu0 %v2276, 17
      %v2311 = vpop.permute.xlu0 %2310
      %2312 = vrot.lane.b32.xlu0 %v2282, 17
      %v2313 = vpop.permute.xlu0 %2312
      %2314 = vrot.lane.b32.xlu0 %v2278, 17
      %v2315 = vpop.permute.xlu0 %2314
      %2316 = vrot.lane.b32.xlu0 %v2284, 17
      %v2317 = vpop.permute.xlu0 %2316
      %v2318 = vsel %vm2290, %v2311, %v2315
      %v2319 = vsel %vm2290, %v2313, %v2317
      %v2320 = vsel %vm2290, %v2315, %v2311
      %v2321 = vsel %vm2290, %v2317, %v2313
      %v2322 = vld [vmem:[%s2293] ss:$8 sm:$0x3]
      %v2324 = vlaneseq
      %v2325 = vshrl.u32 %v2324, 7
      %v2326 = vsub.s32 0, %v2325
      %v2327 = vrot.slane %v2322, %v2326
      %v2328 = vlaneseq
      %v2329 = vshrl.u32 %v2328, 7
      %v2330 = vsub.s32 1, %v2329
      %v2331 = vrot.slane %v2322, %v2330
      %v2334 = vmul.f32 %v2320, %v2327
      %v2335 = vmul.f32 %v2318, %v2331
      %v2336 = vmul.f32 %v2321, %v2327
      %v2337 = vmul.f32 %v2319, %v2331
      %2338 = vst [vmem:[#allocation2 + $0x10] sm:$0xff] %v2334
      %2339 = vst [vmem:[#allocation2 + $0x18] sm:$0xff] %v2335
      %2340 = vst [vmem:[#allocation2 + $0x20] sm:$0xff] %v2336
      %2341 = vst [vmem:[#allocation2 + $0x28] sm:$0xff] %v2337
      %2342 = vrot.lane.b32.xlu0 %v527, 16
      %v2343 = vpop.permute.xlu0 %2342
      %2344 = vrot.lane.b32.xlu0 %v529, 16
      %v2345 = vpop.permute.xlu0 %2344
      %v2346 = vsel %vm960, %v2343, %v2345
      %v2347 = vsel %vm960, %v2345, %v2343
      %s2348 = scalar_lea.vmem %s1, 80
      %v2349 = vld [vmem:[%s2348] ss:$8 sm:$0x3]
      %v2351 = vlaneseq
      %v2352 = vshrl.u32 %v2351, 7
      %v2353 = vsub.s32 0, %v2352
      %v2354 = vrot.slane %v2349, %v2353
      %v2355 = vlaneseq
      %v2356 = vshrl.u32 %v2355, 7
      %v2357 = vsub.s32 1, %v2356
      %v2358 = vrot.slane %v2349, %v2357
      %v2361 = vmul.f32 %v2347, %v2354
      %v2362 = vmul.f32 %v2346, %v2358
      %2363 = vst [vmem:[#allocation2 + $0x30] sm:$0xff] %v2361
      %2364 = vst [vmem:[#allocation2 + $0x38] sm:$0xff] %v2362
      %2365 = vrot.lane.b32.xlu0 %v2276, 16
      %v2366 = vpop.permute.xlu0 %2365
      %2367 = vrot.lane.b32.xlu0 %v2282, 16
      %v2368 = vpop.permute.xlu0 %2367
      %2369 = vrot.lane.b32.xlu0 %v2278, 16
      %v2370 = vpop.permute.xlu0 %2369
      %2371 = vrot.lane.b32.xlu0 %v2284, 16
      %v2372 = vpop.permute.xlu0 %2371
      %v2373 = vsel %vm960, %v2366, %v2370
      %v2374 = vsel %vm960, %v2368, %v2372
      %v2375 = vsel %vm960, %v2370, %v2366
      %v2376 = vsel %vm960, %v2372, %v2368
      %v2377 = vld [vmem:[%s2348] ss:$8 sm:$0x3]
      %v2379 = vlaneseq
      %v2380 = vshrl.u32 %v2379, 7
      %v2381 = vsub.s32 0, %v2380
      %v2382 = vrot.slane %v2377, %v2381
      %v2383 = vlaneseq
      %v2384 = vshrl.u32 %v2383, 7
      %v2385 = vsub.s32 1, %v2384
      %v2386 = vrot.slane %v2377, %v2385
      %v2389 = vmul.f32 %v2375, %v2382
      %v2390 = vmul.f32 %v2373, %v2386
      %v2391 = vmul.f32 %v2376, %v2382
      %v2392 = vmul.f32 %v2374, %v2386
      %2393 = vst [vmem:[#allocation2 + $0x40] sm:$0xff] %v2389
      %2394 = vst [vmem:[#allocation2 + $0x48] sm:$0xff] %v2390
      %2395 = vst [vmem:[#allocation2 + $0x50] sm:$0xff] %v2391
      %2396 = vst [vmem:[#allocation2 + $0x58] sm:$0xff] %v2392
      %2397 = vrot.lane.b32.xlu0 %v527, 15
      %v2398 = vpop.permute.xlu0 %2397
      %2399 = vrot.lane.b32.xlu0 %v529, 15
      %v2400 = vpop.permute.xlu0 %2399
      %vm2401 = vcmp.lt.s32.totalorder %v558, 15
      %v2402 = vsel %vm2401, %v2398, %v2400
      %v2403 = vsel %vm2401, %v2400, %v2398
      %s2404 = scalar_lea.vmem %s1, 81
      %v2405 = vld [vmem:[%s2404] ss:$8 sm:$0x3]
      %v2407 = vlaneseq
      %v2408 = vshrl.u32 %v2407, 7
      %v2409 = vsub.s32 0, %v2408
      %v2410 = vrot.slane %v2405, %v2409
      %v2411 = vlaneseq
      %v2412 = vshrl.u32 %v2411, 7
      %v2413 = vsub.s32 1, %v2412
      %v2414 = vrot.slane %v2405, %v2413
      %v2417 = vmul.f32 %v2403, %v2410
      %v2418 = vmul.f32 %v2402, %v2414
      %2419 = vst [vmem:[#allocation2 + $0x60] sm:$0xff] %v2417
      %2420 = vst [vmem:[#allocation2 + $0x68] sm:$0xff] %v2418
      %2421 = vrot.lane.b32.xlu0 %v2276, 15
      %v2422 = vpop.permute.xlu0 %2421
      %2423 = vrot.lane.b32.xlu0 %v2282, 15
      %v2424 = vpop.permute.xlu0 %2423
      %2425 = vrot.lane.b32.xlu0 %v2278, 15
      %v2426 = vpop.permute.xlu0 %2425
      %2427 = vrot.lane.b32.xlu0 %v2284, 15
      %v2428 = vpop.permute.xlu0 %2427
      %v2429 = vsel %vm2401, %v2422, %v2426
      %v2430 = vsel %vm2401, %v2424, %v2428
      %v2431 = vsel %vm2401, %v2426, %v2422
      %v2432 = vsel %vm2401, %v2428, %v2424
      %v2433 = vld [vmem:[%s2404] ss:$8 sm:$0x3]
      %v2435 = vlaneseq
      %v2436 = vshrl.u32 %v2435, 7
      %v2437 = vsub.s32 0, %v2436
      %v2438 = vrot.slane %v2433, %v2437
      %v2439 = vlaneseq
      %v2440 = vshrl.u32 %v2439, 7
      %v2441 = vsub.s32 1, %v2440
      %v2442 = vrot.slane %v2433, %v2441
      %v2445 = vmul.f32 %v2431, %v2438
      %v2446 = vmul.f32 %v2429, %v2442
      %v2447 = vmul.f32 %v2432, %v2438
      %v2448 = vmul.f32 %v2430, %v2442
      %2449 = vst [vmem:[#allocation2 + $0x70] sm:$0xff] %v2445
      %2450 = vst [vmem:[#allocation2 + $0x78] sm:$0xff] %v2446
      %2451 = vst [vmem:[#allocation2 + $0x80] sm:$0xff] %v2447
      %2452 = vst [vmem:[#allocation2 + $0x88] sm:$0xff] %v2448
      %2453 = vrot.lane.b32.xlu0 %v527, 1
      %v2454 = vpop.permute.xlu0 %2453
      %2455 = vrot.lane.b32.xlu0 %v529, 1
      %v2456 = vpop.permute.xlu0 %2455
      %v2457 = vsel %vm626, %v2454, %v2456
      %v2458 = vsel %vm626, %v2456, %v2454
      %s2459 = scalar_lea.vmem %s1, 82
      %v2460 = vld [vmem:[%s2459] ss:$8 sm:$0x3]
      %v2462 = vlaneseq
      %v2463 = vshrl.u32 %v2462, 7
      %v2464 = vsub.s32 0, %v2463
      %v2465 = vrot.slane %v2460, %v2464
      %v2466 = vlaneseq
      %v2467 = vshrl.u32 %v2466, 7
      %v2468 = vsub.s32 1, %v2467
      %v2469 = vrot.slane %v2460, %v2468
      %v2472 = vmul.f32 %v2458, %v2465
      %v2473 = vmul.f32 %v2457, %v2469
      %2474 = vst [vmem:[#allocation2 + $0x90] sm:$0xff] %v2472
      %2475 = vst [vmem:[#allocation2 + $0x98] sm:$0xff] %v2473
      %2476 = vrot.lane.b32.xlu0 %v2276, 1
      %v2477 = vpop.permute.xlu0 %2476
      %2478 = vrot.lane.b32.xlu0 %v2282, 1
      %v2479 = vpop.permute.xlu0 %2478
      %2480 = vrot.lane.b32.xlu0 %v2278, 1
      %v2481 = vpop.permute.xlu0 %2480
      %2482 = vrot.lane.b32.xlu0 %v2284, 1
      %v2483 = vpop.permute.xlu0 %2482
      %v2484 = vsel %vm626, %v2477, %v2481
      %v2485 = vsel %vm626, %v2479, %v2483
      %v2486 = vsel %vm626, %v2481, %v2477
      %v2487 = vsel %vm626, %v2483, %v2479
      %v2488 = vld [vmem:[%s2459] ss:$8 sm:$0x3]
      %v2490 = vlaneseq
      %v2491 = vshrl.u32 %v2490, 7
      %v2492 = vsub.s32 0, %v2491
      %v2493 = vrot.slane %v2488, %v2492
      %v2494 = vlaneseq
      %v2495 = vshrl.u32 %v2494, 7
      %v2496 = vsub.s32 1, %v2495
      %v2497 = vrot.slane %v2488, %v2496
      %v2500 = vmul.f32 %v2486, %v2493
      %v2501 = vmul.f32 %v2484, %v2497
      %v2502 = vmul.f32 %v2487, %v2493
      %v2503 = vmul.f32 %v2485, %v2497
      %2504 = vst [vmem:[#allocation2 + $0xa0] sm:$0xff] %v2500
      %2505 = vst [vmem:[#allocation2 + $0xa8] sm:$0xff] %v2501
      %2506 = vst [vmem:[#allocation2 + $0xb0] sm:$0xff] %v2502
      %2507 = vst [vmem:[#allocation2 + $0xb8] sm:$0xff] %v2503
      %2508 = vst [vmem:[#allocation2 + $0xc0] sm:$0xff] %v527
      %2509 = vst [vmem:[#allocation2 + $0xc8] sm:$0xff] %v529
      %2510 = vst [vmem:[#allocation2 + $0xd0] sm:$0xff] %v2276
      %2511 = vst [vmem:[#allocation2 + $0xd8] sm:$0xff] %v2278
      %2512 = vst [vmem:[#allocation2 + $0xe0] sm:$0xff] %v2282
      %2513 = vst [vmem:[#allocation2 + $0xe8] sm:$0xff] %v2284
      %2514 = vrot.lane.b32.xlu0 %v527, 127
      %v2515 = vpop.permute.xlu0 %2514
      %2516 = vrot.lane.b32.xlu0 %v529, 127
      %v2517 = vpop.permute.xlu0 %2516
      %v2518 = vsel %vm664, %v2515, %v2517
      %v2519 = vsel %vm664, %v2517, %v2515
      %s2520 = scalar_lea.vmem %s1, 84
      %v2521 = vld [vmem:[%s2520] ss:$8 sm:$0x3]
      %v2523 = vlaneseq
      %v2524 = vshrl.u32 %v2523, 7
      %v2525 = vsub.s32 0, %v2524
      %v2526 = vrot.slane %v2521, %v2525
      %v2527 = vlaneseq
      %v2528 = vshrl.u32 %v2527, 7
      %v2529 = vsub.s32 1, %v2528
      %v2530 = vrot.slane %v2521, %v2529
      %v2533 = vmul.f32 %v2518, %v2526
      %v2534 = vmul.f32 %v2519, %v2530
      %2535 = vst [vmem:[#allocation2 + $0xf0] sm:$0xff] %v2533
      %2536 = vst [vmem:[#allocation2 + $0xf8] sm:$0xff] %v2534
      %2537 = vrot.lane.b32.xlu0 %v2276, 127
      %v2538 = vpop.permute.xlu0 %2537
      %2539 = vrot.lane.b32.xlu0 %v2282, 127
      %v2540 = vpop.permute.xlu0 %2539
      %2541 = vrot.lane.b32.xlu0 %v2278, 127
      %v2542 = vpop.permute.xlu0 %2541
      %2543 = vrot.lane.b32.xlu0 %v2284, 127
      %v2544 = vpop.permute.xlu0 %2543
      %v2545 = vsel %vm664, %v2538, %v2542
      %v2546 = vsel %vm664, %v2540, %v2544
      %v2547 = vsel %vm664, %v2542, %v2538
      %v2548 = vsel %vm664, %v2544, %v2540
      %v2549 = vld [vmem:[%s2520] ss:$8 sm:$0x3]
      %v2551 = vlaneseq
      %v2552 = vshrl.u32 %v2551, 7
      %v2553 = vsub.s32 0, %v2552
      %v2554 = vrot.slane %v2549, %v2553
      %v2555 = vlaneseq
      %v2556 = vshrl.u32 %v2555, 7
      %v2557 = vsub.s32 1, %v2556
      %v2558 = vrot.slane %v2549, %v2557
      %v2561 = vmul.f32 %v2545, %v2554
      %v2562 = vmul.f32 %v2547, %v2558
      %v2563 = vmul.f32 %v2546, %v2554
      %v2564 = vmul.f32 %v2548, %v2558
      %2565 = vst [vmem:[#allocation2 + $0x100] sm:$0xff] %v2561
      %2566 = vst [vmem:[#allocation2 + $0x108] sm:$0xff] %v2562
      %2567 = vst [vmem:[#allocation2 + $0x110] sm:$0xff] %v2563
      %2568 = vst [vmem:[#allocation2 + $0x118] sm:$0xff] %v2564
      %2569 = vrot.lane.b32.xlu0 %v527, 113
      %v2570 = vpop.permute.xlu0 %2569
      %2571 = vrot.lane.b32.xlu0 %v529, 113
      %v2572 = vpop.permute.xlu0 %2571
      %vm2573 = vcmp.lt.s32.totalorder %v558, 113
      %v2574 = vsel %vm2573, %v2570, %v2572
      %v2575 = vsel %vm2573, %v2572, %v2570
      %s2576 = scalar_lea.vmem %s1, 85
      %v2577 = vld [vmem:[%s2576] ss:$8 sm:$0x3]
      %v2579 = vlaneseq
      %v2580 = vshrl.u32 %v2579, 7
      %v2581 = vsub.s32 0, %v2580
      %v2582 = vrot.slane %v2577, %v2581
      %v2583 = vlaneseq
      %v2584 = vshrl.u32 %v2583, 7
      %v2585 = vsub.s32 1, %v2584
      %v2586 = vrot.slane %v2577, %v2585
      %v2589 = vmul.f32 %v2574, %v2582
      %v2590 = vmul.f32 %v2575, %v2586
      %2591 = vst [vmem:[#allocation2 + $0x120] sm:$0xff] %v2589
      %2592 = vst [vmem:[#allocation2 + $0x128] sm:$0xff] %v2590
      %2593 = vrot.lane.b32.xlu0 %v2276, 113
      %v2594 = vpop.permute.xlu0 %2593
      %2595 = vrot.lane.b32.xlu0 %v2282, 113
      %v2596 = vpop.permute.xlu0 %2595
      %2597 = vrot.lane.b32.xlu0 %v2278, 113
      %v2598 = vpop.permute.xlu0 %2597
      %2599 = vrot.lane.b32.xlu0 %v2284, 113
      %v2600 = vpop.permute.xlu0 %2599
      %v2601 = vsel %vm2573, %v2594, %v2598
      %v2602 = vsel %vm2573, %v2596, %v2600
      %v2603 = vsel %vm2573, %v2598, %v2594
      %v2604 = vsel %vm2573, %v2600, %v2596
      %v2605 = vld [vmem:[%s2576] ss:$8 sm:$0x3]
      %v2607 = vlaneseq
      %v2608 = vshrl.u32 %v2607, 7
      %v2609 = vsub.s32 0, %v2608
      %v2610 = vrot.slane %v2605, %v2609
      %v2611 = vlaneseq
      %v2612 = vshrl.u32 %v2611, 7
      %v2613 = vsub.s32 1, %v2612
      %v2614 = vrot.slane %v2605, %v2613
      %v2617 = vmul.f32 %v2601, %v2610
      %v2618 = vmul.f32 %v2603, %v2614
      %v2619 = vmul.f32 %v2602, %v2610
      %v2620 = vmul.f32 %v2604, %v2614
      %2621 = vst [vmem:[#allocation2 + $0x130] sm:$0xff] %v2617
      %2622 = vst [vmem:[#allocation2 + $0x138] sm:$0xff] %v2618
      %2623 = vst [vmem:[#allocation2 + $0x140] sm:$0xff] %v2619
      %2624 = vst [vmem:[#allocation2 + $0x148] sm:$0xff] %v2620
      %2625 = vrot.lane.b32.xlu0 %v527, 112
      %v2626 = vpop.permute.xlu0 %2625
      %2627 = vrot.lane.b32.xlu0 %v529, 112
      %v2628 = vpop.permute.xlu0 %2627
      %v2629 = vsel %vm998, %v2626, %v2628
      %v2630 = vsel %vm998, %v2628, %v2626
      %s2631 = scalar_lea.vmem %s1, 86
      %v2632 = vld [vmem:[%s2631] ss:$8 sm:$0x3]
      %v2634 = vlaneseq
      %v2635 = vshrl.u32 %v2634, 7
      %v2636 = vsub.s32 0, %v2635
      %v2637 = vrot.slane %v2632, %v2636
      %v2638 = vlaneseq
      %v2639 = vshrl.u32 %v2638, 7
      %v2640 = vsub.s32 1, %v2639
      %v2641 = vrot.slane %v2632, %v2640
      %v2644 = vmul.f32 %v2629, %v2637
      %v2645 = vmul.f32 %v2630, %v2641
      %2646 = vst [vmem:[#allocation2 + $0x150] sm:$0xff] %v2644
      %2647 = vst [vmem:[#allocation2 + $0x158] sm:$0xff] %v2645
      %2648 = vrot.lane.b32.xlu0 %v2276, 112
      %v2649 = vpop.permute.xlu0 %2648
      %2650 = vrot.lane.b32.xlu0 %v2282, 112
      %v2651 = vpop.permute.xlu0 %2650
      %2652 = vrot.lane.b32.xlu0 %v2278, 112
      %v2653 = vpop.permute.xlu0 %2652
      %2654 = vrot.lane.b32.xlu0 %v2284, 112
      %v2655 = vpop.permute.xlu0 %2654
      %v2656 = vsel %vm998, %v2649, %v2653
      %v2657 = vsel %vm998, %v2651, %v2655
      %v2658 = vsel %vm998, %v2653, %v2649
      %v2659 = vsel %vm998, %v2655, %v2651
      %v2660 = vld [vmem:[%s2631] ss:$8 sm:$0x3]
      %v2662 = vlaneseq
      %v2663 = vshrl.u32 %v2662, 7
      %v2664 = vsub.s32 0, %v2663
      %v2665 = vrot.slane %v2660, %v2664
      %v2666 = vlaneseq
      %v2667 = vshrl.u32 %v2666, 7
      %v2668 = vsub.s32 1, %v2667
      %v2669 = vrot.slane %v2660, %v2668
      %v2672 = vmul.f32 %v2656, %v2665
      %v2673 = vmul.f32 %v2658, %v2669
      %v2674 = vmul.f32 %v2657, %v2665
      %v2675 = vmul.f32 %v2659, %v2669
      %2676 = vst [vmem:[#allocation2 + $0x160] sm:$0xff] %v2672
      %2677 = vst [vmem:[#allocation2 + $0x168] sm:$0xff] %v2673
      %2678 = vst [vmem:[#allocation2 + $0x170] sm:$0xff] %v2674
      %2679 = vst [vmem:[#allocation2 + $0x178] sm:$0xff] %v2675
      %2680 = vrot.lane.b32.xlu0 %v527, 111
      %v2681 = vpop.permute.xlu0 %2680
      %2682 = vrot.lane.b32.xlu0 %v529, 111
      %v2683 = vpop.permute.xlu0 %2682
      %vm2684 = vcmp.lt.s32.totalorder %v558, 111
      %v2685 = vsel %vm2684, %v2681, %v2683
      %v2686 = vsel %vm2684, %v2683, %v2681
      %s2687 = scalar_lea.vmem %s1, 87
      %v2688 = vld [vmem:[%s2687] ss:$8 sm:$0x3]
      %v2690 = vlaneseq
      %v2691 = vshrl.u32 %v2690, 7
      %v2692 = vsub.s32 0, %v2691
      %v2693 = vrot.slane %v2688, %v2692
      %v2694 = vlaneseq
      %v2695 = vshrl.u32 %v2694, 7
      %v2696 = vsub.s32 1, %v2695
      %v2697 = vrot.slane %v2688, %v2696
      %v2700 = vmul.f32 %v2685, %v2693
      %v2701 = vmul.f32 %v2686, %v2697
      %2702 = vst [vmem:[#allocation2 + $0x180] sm:$0xff] %v2700
      %2703 = vst [vmem:[#allocation2 + $0x188] sm:$0xff] %v2701
      %2704 = vrot.lane.b32.xlu0 %v2276, 111
      %v2705 = vpop.permute.xlu0 %2704
      %2706 = vrot.lane.b32.xlu0 %v2282, 111
      %v2707 = vpop.permute.xlu0 %2706
      %2708 = vrot.lane.b32.xlu0 %v2278, 111
      %v2709 = vpop.permute.xlu0 %2708
      %2710 = vrot.lane.b32.xlu0 %v2284, 111
      %v2711 = vpop.permute.xlu0 %2710
      %v2712 = vsel %vm2684, %v2705, %v2709
      %v2713 = vsel %vm2684, %v2707, %v2711
      %v2714 = vsel %vm2684, %v2709, %v2705
      %v2715 = vsel %vm2684, %v2711, %v2707
      %v2716 = vld [vmem:[%s2687] ss:$8 sm:$0x3]
      %v2718 = vlaneseq
      %v2719 = vshrl.u32 %v2718, 7
      %v2720 = vsub.s32 0, %v2719
      %v2721 = vrot.slane %v2716, %v2720
      %v2722 = vlaneseq
      %v2723 = vshrl.u32 %v2722, 7
      %v2724 = vsub.s32 1, %v2723
      %v2725 = vrot.slane %v2716, %v2724
      %v2728 = vmul.f32 %v2712, %v2721
      %v2729 = vmul.f32 %v2714, %v2725
      %v2730 = vmul.f32 %v2713, %v2721
      %v2731 = vmul.f32 %v2715, %v2725
      %2732 = vst [vmem:[#allocation2 + $0x190] sm:$0xff] %v2728
      %2733 = vst [vmem:[#allocation2 + $0x198] sm:$0xff] %v2729
      %2734 = vst [vmem:[#allocation2 + $0x1a0] sm:$0xff] %v2730
      %2735 = vst [vmem:[#allocation2 + $0x1a8] sm:$0xff] %v2731
      %v2736 = vld [vmem:[%s10] sm:$0xff]
      %v2737 = vld [vmem:[%s10 + $0x8] sm:$0xff]
      %v2738 = vld [vmem:[#allocation2] sm:$0xff]
      %v2739 = vld [vmem:[#allocation2 + $0x8] sm:$0xff]
      %v2740 = vld [vmem:[#allocation2 + $0x10] sm:$0xff]
      %v2741 = vld [vmem:[#allocation2 + $0x18] sm:$0xff]
      %v2742 = vld [vmem:[#allocation2 + $0x20] sm:$0xff]
      %v2743 = vld [vmem:[#allocation2 + $0x28] sm:$0xff]
      %v2744 = vld [vmem:[#allocation2 + $0x30] sm:$0xff]
      %v2745 = vld [vmem:[#allocation2 + $0x38] sm:$0xff]
      %v2746 = vld [vmem:[#allocation2 + $0x40] sm:$0xff]
      %v2747 = vld [vmem:[#allocation2 + $0x48] sm:$0xff]
      %v2748 = vld [vmem:[#allocation2 + $0x50] sm:$0xff]
      %v2749 = vld [vmem:[#allocation2 + $0x58] sm:$0xff]
      %v2750 = vld [vmem:[#allocation2 + $0x60] sm:$0xff]
      %v2751 = vld [vmem:[#allocation2 + $0x68] sm:$0xff]
      %v2752 = vld [vmem:[#allocation2 + $0x70] sm:$0xff]
      %v2753 = vld [vmem:[#allocation2 + $0x78] sm:$0xff]
      %v2754 = vld [vmem:[#allocation2 + $0x80] sm:$0xff]
      %v2755 = vld [vmem:[#allocation2 + $0x88] sm:$0xff]
      %v2756 = vld [vmem:[#allocation2 + $0x90] sm:$0xff]
      %v2757 = vld [vmem:[#allocation2 + $0x98] sm:$0xff]
      %v2758 = vld [vmem:[#allocation2 + $0xa0] sm:$0xff]
      %v2759 = vld [vmem:[#allocation2 + $0xa8] sm:$0xff]
      %v2760 = vld [vmem:[#allocation2 + $0xb0] sm:$0xff]
      %v2761 = vld [vmem:[#allocation2 + $0xb8] sm:$0xff]
      %v2762 = vld [vmem:[#allocation2 + $0xc0] sm:$0xff]
      %v2763 = vld [vmem:[#allocation2 + $0xc8] sm:$0xff]
      %v2764 = vld [vmem:[#allocation2 + $0xd0] sm:$0xff]
      %v2765 = vld [vmem:[#allocation2 + $0xd8] sm:$0xff]
      %v2766 = vld [vmem:[#allocation2 + $0xe0] sm:$0xff]
      %v2767 = vld [vmem:[#allocation2 + $0xe8] sm:$0xff]
      %v2768 = vld [vmem:[#allocation2 + $0xf0] sm:$0xff]
      %v2769 = vld [vmem:[#allocation2 + $0xf8] sm:$0xff]
      %v2770 = vld [vmem:[#allocation2 + $0x100] sm:$0xff]
      %v2771 = vld [vmem:[#allocation2 + $0x108] sm:$0xff]
      %v2772 = vld [vmem:[#allocation2 + $0x110] sm:$0xff]
      %v2773 = vld [vmem:[#allocation2 + $0x118] sm:$0xff]
      %v2774 = vld [vmem:[#allocation2 + $0x120] sm:$0xff]
      %v2775 = vld [vmem:[#allocation2 + $0x128] sm:$0xff]
      %v2776 = vld [vmem:[#allocation2 + $0x130] sm:$0xff]
      %v2777 = vld [vmem:[#allocation2 + $0x138] sm:$0xff]
      %v2778 = vld [vmem:[#allocation2 + $0x140] sm:$0xff]
      %v2779 = vld [vmem:[#allocation2 + $0x148] sm:$0xff]
      %v2780 = vld [vmem:[#allocation2 + $0x150] sm:$0xff]
      %v2781 = vld [vmem:[#allocation2 + $0x158] sm:$0xff]
      %v2782 = vld [vmem:[#allocation2 + $0x160] sm:$0xff]
      %v2783 = vld [vmem:[#allocation2 + $0x168] sm:$0xff]
      %v2784 = vld [vmem:[#allocation2 + $0x170] sm:$0xff]
      %v2785 = vld [vmem:[#allocation2 + $0x178] sm:$0xff]
      %v2786 = vld [vmem:[#allocation2 + $0x180] sm:$0xff]
      %v2787 = vld [vmem:[#allocation2 + $0x188] sm:$0xff]
      %v2788 = vld [vmem:[#allocation2 + $0x190] sm:$0xff]
      %v2789 = vld [vmem:[#allocation2 + $0x198] sm:$0xff]
      %v2790 = vld [vmem:[#allocation2 + $0x1a0] sm:$0xff]
      %v2791 = vld [vmem:[#allocation2 + $0x1a8] sm:$0xff]
      %v2792 = vld [vmem:[%s11] sm:$0xff]
      %2794 = vset.pattern.permute.xlu0 0
      %2795 = vperm.xlu0 %2794, %v2792
      %v2796 = vpop.permute.xlu0 %2795
      %vm2798 = vcmask 719872
      %v2800 = vsel %vm2798, %v2737, 0
      %2802 = vmatprep.subr.mxu0 %v2739
      %2803 = vmatpush1.msra.mxu0 %v2738
      %2804 = vmatprep.subr.mxu0 %v2741
      %2805 = vmatpush1.msra.mxu0 %v2740
      %2806 = vmatprep.subr.mxu0 %v2743
      %2807 = vmatpush1.msra.mxu0 %v2742
      %2808 = vmatprep.subr.mxu0 %v2745
      %2809 = vmatpush1.msra.mxu0 %v2744
      %2810 = vmatprep.subr.mxu0 %v2747
      %2811 = vmatpush1.msra.mxu0 %v2746
      %2812 = vmatprep.subr.mxu0 %v2749
      %2813 = vmatpush1.msra.mxu0 %v2748
      %2814 = vmatprep.subr.mxu0 %v2751
      %2815 = vmatpush1.msra.mxu0 %v2750
      %2816 = vmatprep.subr.mxu0 %v2753
      %2817 = vmatpush1.msra.mxu0 %v2752
      %2818 = vmatprep.subr.mxu0 %v2755
      %2819 = vmatpush1.msra.mxu0 %v2754
      %2820 = vmatprep.subr.mxu0 %v2757
      %2821 = vmatpush1.msra.mxu0 %v2756
      %2822 = vmatprep.subr.mxu0 %v2759
      %2823 = vmatpush1.msra.mxu0 %v2758
      %2824 = vmatprep.subr.mxu0 %v2761
      %2825 = vmatpush1.msra.mxu0 %v2760
      %2826 = vmatprep.subr.mxu0 %v2763
      %2827 = vmatpush1.msra.mxu0 %v2762
      %2828 = vmatprep.subr.mxu0 %v2765
      %2829 = vmatpush1.msra.mxu0 %v2764
      %2830 = vmatprep.subr.mxu0 %v2767
      %2831 = vmatpush1.msra.mxu0 %v2766
      %2832 = vmatprep.subr.mxu0 %v2769
      %2833 = vmatpush1.msra.mxu0 %v2768
      %2834 = vmatprep.subr.mxu0 %v2771
      %2835 = vmatpush1.msra.mxu0 %v2770
      %2836 = vmatprep.subr.mxu0 %v2773
      %2837 = vmatpush1.msra.mxu0 %v2772
      %2838 = vmatprep.subr.mxu0 %v2775
      %2839 = vmatpush1.msra.mxu0 %v2774
      %2840 = vmatprep.subr.mxu0 %v2777
      %2841 = vmatpush1.msra.mxu0 %v2776
      %2842 = vmatprep.subr.mxu0 %v2779
      %2843 = vmatpush1.msra.mxu0 %v2778
      %2844 = vmatprep.subr.mxu0 %v2781
      %2845 = vmatpush1.msra.mxu0 %v2780
      %2846 = vmatprep.subr.mxu0 %v2783
      %2847 = vmatpush1.msra.mxu0 %v2782
      %2848 = vmatprep.subr.mxu0 %v2785
      %2849 = vmatpush1.msra.mxu0 %v2784
      %2850 = vmatprep.subr.mxu0 %v2787
      %2851 = vmatpush1.msra.mxu0 %v2786
      %2852 = vmatprep.subr.mxu0 %v2789
      %2853 = vmatpush1.msra.mxu0 %v2788
      %2854 = vmatprep.subr.mxu0 %v2791
      %2855 = vmatpush1.msra.mxu0 %v2790
      %2856 = vmatprep.subr.mxu0 0.0
      %2857 = vmatpush1.msra.mxu0 0.0
      %2858 = vmatprep.subr.mxu0 0.0
      %2859 = vmatpush1.msra.mxu0 0.0
      %2860 = vmatprep.subr.mxu0 0.0
      %2861 = vmatpush1.msra.mxu0 0.0
      %2862 = vmatprep.subr.mxu0 0.0
      %2863 = vmatpush1.msra.mxu0 0.0
      %2864 = vmatprep.subr.mxu0 0.0
      %2865 = vmatpush1.msra.mxu0 0.0
      %2866 = vmatprep.mubr.f32.mxu0 %v2800
      %2867 = vmatmul.mubr.f32.gmra.mrb[0].mxu0 %v2736
      %v2868 = vpop.f32.mrb[0].mxu0
      %v2869 = vadd.f32 %v2796, %v2868
      %v2870 = vpop.f32.mrb[0].mxu0
      %v2871 = vadd.f32 %v2796, %v2870
      %2872 = vdwg.mxu0
      %v2873 = vadd.f32 %v2869, %v545
      %v2874 = vadd.f32 %v2871, %v547
      %v2875 = vmax.f32 %v2873, 0.0
      %v2876 = vmax.f32 %v2874, 0.0
      %2877 = vst [vmem:[%s415] sm:$0xff] %v2875
      %2878 = vst [vmem:[%s415 + $0x8] sm:$0xff] %v2876
      %s2879 = smul.u32 2, %s23
      %p2880 = scmp.lt.s32.totalorder %s2879, 3
      %s2881 = scalar_select %p2880, %s2879, 3
      %s2882 = smul.addr %s2881, 8
      %s2883 = scalar_lea.vmem %s12, %s2882
      // Predicated region
      $region69: #{e_forward.1} parent=67 // pred_check
        %p2884 = pneg %p298
      $region70: #{e_forward.1} parent=67 // pred_check_branch
        %2886 = sbr.rel (%p2884) target = $region72
      $region71: #{e_forward.1} parent=67 // pred_region
        %s2887 = smul.u32 2, %s23
      $region72: #{e_forward.1} parent=67 // pred_fallthru
        _
    $region68: #{e_forward.1} parent=5 // pred_fallthru
      _
    %p2888 = scmp.le.s32.totalorder 2, %s18
    // Predicated region
    $region73: #{e_forward.1} parent=5 // pred_check
      %p2889 = pneg %p2888
    $region74: #{e_forward.1} parent=5 // pred_check_branch
      %2891 = sbr.rel (%p2889) target = $region76
    $region75: #{e_forward.1} parent=5 // pred_region
      %s2892 = ssub.s32 %s18, 2
      // Predicated region
      $region77: #{e_forward.1} parent=75 // pred_check
        %p2893 = pneg %p304
      $region78: #{e_forward.1} parent=75 // pred_check_branch
        %2895 = sbr.rel (%p2893) target = $region80
      $region79: #{e_forward.1} parent=75 // pred_region
        %s2896 = smul.u32 2, %s24
        %p2897 = scmp.lt.s32.totalorder %s2896, 3
        %s2898 = scalar_select %p2897, %s2896, 3
        %s2899 = smul.addr %s2898, 8
        %s2900 = scalar_lea.vmem %s12, %s2899
      $region80: #{e_forward.1} parent=75 // pred_fallthru
        _
    $region76: #{e_forward.1} parent=5 // pred_fallthru
      _
  $region6: #{e_forward.1} parent=0 // loop_footer
    %s22 = sadd.s32 1, %s18
  $region7: #{e_forward.1} parent=0 // loop_footer_branch
    %17 = sbr.rel target = $region3
  $region8: #{e_forward.1} parent=0 // loop_exit
    _

</llo_original>
